<compile_context>
chip_gen: v7x
topology: tpu7x:2x2x1
jax: 0.10.0
libtpu: 0.0.40
codegen_flags: <defaults>
</compile_context>

<pallas_src>
import math
import functools

import jax
import jax.numpy as jnp
from jax.experimental import pallas as pl
from jax.experimental.pallas import tpu as pltpu

LN_EPS = 1e-5
MASK_BIAS = -1e30  # large finite negative: exp underflows to exactly 0, no NaN


def _layernorm_f32(x, gamma, beta):
    # x: (R, D) f32; gamma/beta: (1, D) f32
    mu = jnp.mean(x, axis=-1, keepdims=True)
    var = jnp.mean((x - mu) ** 2, axis=-1, keepdims=True)
    return (x - mu) * jax.lax.rsqrt(var + LN_EPS) * gamma + beta


def _gelu_f32(z):
    # 0.5 z (1 + tanh(sqrt(2/pi) (z + 0.044715 z^3))) -- cube via multiplies (no jnp.power)
    z3 = z * z * z
    return 0.5 * z * (1.0 + jnp.tanh(math.sqrt(2.0 / math.pi) * (z + 0.044715 * z3)))


def transformer_layer_kernel(
    *refs,
    num_head, head_dim, tq, no_res, compute_dtype, causal, return_attn,
):
    it = iter(refs)
    bias_ref = None if causal else next(it)
    x_ref = next(it)
    g1_ref, bn1_ref = next(it), next(it)
    wq_ref, bq_ref = next(it), next(it)
    wkv_ref, bkv_ref = next(it), next(it)
    wo_ref, bo_ref = next(it), next(it)
    g2_ref, bn2_ref = next(it), next(it)
    w1_ref, bf1_ref = next(it), next(it)
    w2_ref, bf2_ref = next(it), next(it)
    xout_ref = next(it)
    attn_ref = next(it) if return_attn else None
    h1_s, ctx_s = next(it), next(it)

    hd = head_dim
    h = pl.program_id(2)                                   # head index (sequential)
    q_start = pl.multiple_of(pl.program_id(1) * tq, tq)    # query-tile row offset
    scale = 1.0 / math.sqrt(hd)

    # ---- once per (batch, query-tile): LayerNorm1 over the FULL sequence (K/V need
    # all rows).  Recomputed per query tile so the tile axis may be sharded parallel.
    @pl.when(h == 0)
    def _init():
        h1 = _layernorm_f32(x_ref[0], g1_ref[...], bn1_ref[...])     # (S, D) f32 math
        h1_s[...] = h1.astype(compute_dtype)

    h1 = h1_s[...]                                  # (S, D)   compute dtype
    h1_q = h1_s[pl.ds(q_start, tq), :]              # (tq, D)  query-tile rows

    # ---- fused per-head K|V projection (full sequence, 2*hd output columns) and a
    # query-tile-only Q projection (no redundant Q recompute across tiles).
    kv = jnp.dot(h1, wkv_ref[0], preferred_element_type=jnp.float32) + bkv_ref[0]   # (S, 2hd)
    q = jnp.dot(h1_q, wq_ref[0], preferred_element_type=jnp.float32) + bq_ref[0]    # (tq, hd)

    qc = (q * scale).astype(compute_dtype)          # fold 1/sqrt(hd) into q (tq*hd, not tq*S)
    kc = kv[:, :hd].astype(compute_dtype)
    vc = kv[:, hd:].astype(compute_dtype)

    # scores = q @ k^T via dot_general contracting the last dims (no explicit transpose)
    scores = jax.lax.dot_general(
        qc, kc, (((1,), (1,)), ((), ())), preferred_element_type=jnp.float32)       # (tq, S)

    if causal:
        # in-kernel causal bias: no (S,S) slab in VMEM/HBM, just VPU iota + select
        rows = q_start + jax.lax.broadcasted_iota(jnp.int32, scores.shape, 0)
        cols = jax.lax.broadcasted_iota(jnp.int32, scores.shape, 1)
        scores = jnp.where(cols > rows, jnp.float32(MASK_BIAS), scores)
    else:
        scores = scores + bias_ref[...]             # additive mask bias (single add)

    # TODO(synk): on v6e/v7x the exp could run in bf16 (bf16-capable EUP) with the
    # row-sum kept in f32; gated per generation, so left in f32 here.
    smax = jnp.max(scores, axis=-1, keepdims=True)
    p = jnp.exp(scores - smax)
    denom = jnp.sum(p, axis=-1, keepdims=True)

    if return_attn:
        p = p * pl.reciprocal(denom, approx=True)   # EUP reciprocal, not VALU divide
        attn_ref[0, 0] = p.astype(attn_ref.dtype)
        ctx = jnp.dot(p.astype(compute_dtype), vc, preferred_element_type=jnp.float32)
    else:
        # normalize AFTER p@v: a (tq, hd) multiply instead of (tq, S)
        ctx = jnp.dot(p.astype(compute_dtype), vc, preferred_element_type=jnp.float32)
        ctx = ctx * pl.reciprocal(denom, approx=True)

    # stage this head's context; the output projection is done once, at full K=D.
    ctx_s[h] = ctx.astype(compute_dtype)

    # ---- after the last head: one full out-projection + residual + norm2 + FFN ----
    @pl.when(h == num_head - 1)
    def _finalize():
        # static lane-concat of the per-head slots -> (tq, D), then a single K=D matmul
        ctx_all = jnp.concatenate([ctx_s[hh] for hh in range(num_head)], axis=-1)
        t = jnp.dot(ctx_all, wo_ref[...], preferred_element_type=jnp.float32) + bo_ref[...]
        x_q = x_ref[0, pl.ds(q_start, tq), :]                      # (tq, D) f32
        x1 = t if no_res else x_q + t
        h2 = _layernorm_f32(x1, g2_ref[...], bn2_ref[...]).astype(compute_dtype)
        f = jnp.dot(h2, w1_ref[...], preferred_element_type=jnp.float32) + bf1_ref[...]
        f = _gelu_f32(f).astype(compute_dtype)
        f = jnp.dot(f, w2_ref[...], preferred_element_type=jnp.float32) + bf2_ref[...]
        x2 = f if no_res else x1 + f
        xout_ref[0] = x2.astype(xout_ref.dtype)
        # TODO(synk): for very large feedforward_dim, tile the FFN over F (extra grid
        # axis or pltpu.emit_pipeline) or split LN2+FFN into a second pallas_call so
        # w1/w2 are not resident for the whole (B, qt, H) grid.


def _pick_tq(seq_len):
    for cand in (512, 256, 128):
        if seq_len % cand == 0:
            return cand
    return seq_len


def _vmem_limit_bytes():
    # Explicit per-generation ceiling (32 MiB scoped default is too small at real
    # sizes; v7x tops out at 64 MiB physical, v5e/v6e at 128 MiB).
    try:
        cap = int(pltpu.get_tpu_info().vmem_capacity_bytes)
    except Exception:
        cap = 64 * 1024 * 1024
    return min(cap * 7 // 8, 112 * 1024 * 1024)


def transformer_layer(x, attn_mask, params, *, num_head, no_res=False, causal=False,
                      return_attn=True, tq=None,
                      compute_dtype=jnp.bfloat16, attn_dtype=jnp.bfloat16):
    """x: (B, S, D) f32.

    attn_mask: (S, S) bool, True == masked (shared across batch & heads); ignored when
               causal=True (mask generated in-kernel from iota).
    return_attn: when False, the (B, H, S, S) attention-prob output (and its HBM
               writeback) is skipped entirely and the second return value is None.
    compute_dtype: MXU operand dtype (bf16 recommended on v6e/v7x); accumulation is f32.
    attn_dtype:  dtype of returned attention probabilities (bf16 halves HBM writeback).
    """
    B, S, D = x.shape
    H = num_head
    assert D % H == 0, "embed_dim must be divisible by num_head"
    hd = D // H
    F_dim = params["w1"].shape[1]
    if tq is None:
        tq = _pick_tq(S)
    assert S % tq == 0
    n_qt = S // tq
    if not causal:
        assert attn_mask is not None
    # TODO(synk): per-batch / per-head masks would need a (B,H,S,S) bias input with a
    # (1,1,tq,S) BlockSpec indexed by (b,h,qt); the shared (S,S) slab + causal flag
    # cover the common cases.
    # TODO(synk): when hd < 128, processing two heads per grid step would restore
    # lane-dense per-head operands; not done here.

    row = lambda p: p.reshape(1, -1).astype(jnp.float32)

    # per-head Q weights and fused per-head K|V weights (one (D, 2*hd) matmul per head)
    wq_h = params["wq"].reshape(D, H, hd).transpose(1, 0, 2).astype(compute_dtype)    # (H,D,hd)
    bq_h = params["bq"].reshape(H, 1, hd).astype(jnp.float32)
    wkv_h = jnp.concatenate(
        [params["wk"].reshape(D, H, hd), params["wv"].reshape(D, H, hd)],
        axis=-1).transpose(1, 0, 2).astype(compute_dtype)                             # (H,D,2hd)
    bkv_h = jnp.concatenate(
        [params["bk"].reshape(H, 1, hd), params["bv"].reshape(H, 1, hd)],
        axis=-1).astype(jnp.float32)                                                  # (H,1,2hd)
    wo = params["wo"].astype(compute_dtype)                                           # (D, D) full
    w1 = params["w1"].astype(compute_dtype)
    w2 = params["w2"].astype(compute_dtype)

    head3 = lambda b, qt, h: (h, 0, 0)
    batch3 = lambda b, qt, h: (b, 0, 0)

    kernel = functools.partial(
        transformer_layer_kernel, num_head=H, head_dim=hd, tq=tq, no_res=no_res,
        compute_dtype=compute_dtype, causal=causal, return_attn=return_attn)

    # advisory cost estimate so XLA schedules neighbours around this long call
    flops = 2 * B * S * (4 * D * D + 2 * S * D + 2 * D * F_dim)
    transcend = B * H * S * S + B * S * F_dim
    attn_bytes = B * H * S * S * jnp.dtype(attn_dtype).itemsize if return_attn else 0
    bytes_accessed = 8 * B * S * D + 4 * (4 * D * D + 2 * D * F_dim) + attn_bytes
    cost = pl.CostEstimate(flops=int(flops), transcendentals=int(transcend),
                           bytes_accessed=int(bytes_accessed))

    def _call(single_buffer):
        def const_spec(shape):
            zero = lambda b, qt, h: (0,) * len(shape)
            if single_buffer:
                # fetched once for the whole grid -> single buffer halves resident VMEM
                return pl.BlockSpec(shape, zero, pipeline_mode=pl.Buffered(1))
            return pl.BlockSpec(shape, zero)

        in_specs, inputs = [], []
        if not causal:
            bias = jnp.where(attn_mask, jnp.float32(MASK_BIAS), jnp.float32(0.0))   # (S, S)
            in_specs.append(pl.BlockSpec((tq, S), lambda b, qt, h: (qt, 0)))
            inputs.append(bias)
        in_specs += [
            pl.BlockSpec((1, S, D), batch3),              # x (full sequence per batch elem)
            const_spec((1, D)), const_spec((1, D)),       # norm1 gamma / beta
            pl.BlockSpec((1, D, hd), head3),              # wq head slice
            pl.BlockSpec((1, 1, hd), head3),              # bq head slice
            pl.BlockSpec((1, D, 2 * hd), head3),          # fused wk|wv head slice
            pl.BlockSpec((1, 1, 2 * hd), head3),          # fused bk|bv head slice
            const_spec((D, D)), const_spec((1, D)),       # wo (full), bo
            const_spec((1, D)), const_spec((1, D)),       # norm2 gamma / beta
            const_spec((D, F_dim)), const_spec((1, F_dim)),   # fc1 weight / bias
            const_spec((F_dim, D)), const_spec((1, D)),       # fc2 weight / bias
        ]
        inputs += [
            x,
            row(params["g1"]), row(params["bn1"]),
            wq_h, bq_h, wkv_h, bkv_h,
            wo, row(params["bo"]),
            row(params["g2"]), row(params["bn2"]),
            w1, row(params["bf1"]), w2, row(params["bf2"]),
        ]

        xout_spec = pl.BlockSpec((1, tq, D), lambda b, qt, h: (b, qt, 0))
        xout_shape = jax.ShapeDtypeStruct((B, S, D), jnp.float32)
        if return_attn:
            out_specs = (xout_spec,
                         pl.BlockSpec((1, 1, tq, S), lambda b, qt, h: (b, h, qt, 0)))
            out_shape = (xout_shape, jax.ShapeDtypeStruct((B, H, S, S), attn_dtype))
        else:
            out_specs = xout_spec
            out_shape = xout_shape

        return pl.pallas_call(
            kernel,
            out_shape=out_shape,
            grid=(B, n_qt, H),
            in_specs=in_specs,
            out_specs=out_specs,
            scratch_shapes=[
                pltpu.VMEM((S, D), compute_dtype),        # LayerNorm1(x), all rows
                pltpu.VMEM((H, tq, hd), compute_dtype),   # per-head context slots
            ],
            compiler_params=pltpu.CompilerParams(
                # head axis must stay "arbitrary": per-head context staging + the
                # last-head finalize require sequential head iteration per (b, qt).
                dimension_semantics=("parallel", "parallel", "arbitrary"),
                vmem_limit_bytes=_vmem_limit_bytes()),
            cost_estimate=cost,
        )(*inputs)

    try:
        out = _call(True)
    except Exception:
        # Fallback for Pallas builds that reject pipeline_mode=pl.Buffered(1):
        # identical kernel with default double-buffered constant blocks.
        out = _call(False)

    if return_attn:
        return out
    return out, None


def reference_transformer_layer(x, attn_mask, p, *, num_head, no_res=False):
    """Pure-JAX reference mirroring the PyTorch module (dropout = 0). attn_mask: (B,H,S,S) bool."""
    def ln(z, g, b):
        mu = z.mean(-1, keepdims=True)
        var = ((z - mu) ** 2).mean(-1, keepdims=True)
        return (z - mu) / jnp.sqrt(var + LN_EPS) * g + b

    B, S, D = x.shape
    H = num_head
    hd = D // H

    h1 = ln(x, p["g1"], p["bn1"])
    q = h1 @ p["wq"] + p["bq"]
    k = h1 @ p["wk"] + p["bk"]
    v = h1 @ p["wv"] + p["bv"]
    q = q.reshape(B, S, H, hd).transpose(0, 2, 1, 3)
    k = k.reshape(B, S, H, hd).transpose(0, 2, 1, 3)
    v = v.reshape(B, S, H, hd).transpose(0, 2, 1, 3)
    scores = jnp.einsum("bhqd,bhkd->bhqk", q, k) / math.sqrt(hd)
    scores = jnp.where(attn_mask, -jnp.inf, scores)
    attn = jax.nn.softmax(scores, axis=-1)
    out = jnp.einsum("bhqk,bhkd->bhqd", attn, v).transpose(0, 2, 1, 3).reshape(B, S, D)
    t = out @ p["wo"] + p["bo"]
    x1 = t if no_res else x + t
    h2 = ln(x1, p["g2"], p["bn2"])
    f = h2 @ p["w1"] + p["bf1"]
    f = 0.5 * f * (1.0 + jnp.tanh(math.sqrt(2.0 / math.pi) * (f + 0.044715 * f ** 3)))
    f = f @ p["w2"] + p["bf2"]
    x2 = f if no_res else x1 + f
    return x2, attn


if __name__ == "__main__":
    B, S, D, H, FF = 2, 8, 32, 4, 64
    no_res = False

    key = jax.random.PRNGKey(0)
    keys = jax.random.split(key, 16)

    def init_w(k, shape, fan_in):
        return jax.random.normal(k, shape, dtype=jnp.float32) * (1.0 / math.sqrt(fan_in))

    params = {
        "g1": jnp.ones((D,), jnp.float32),
        "bn1": jnp.zeros((D,), jnp.float32),
        "wq": init_w(keys[0], (D, D), D), "bq": 0.01 * jax.random.normal(keys[1], (D,)),
        "wk": init_w(keys[2], (D, D), D), "bk": 0.01 * jax.random.normal(keys[3], (D,)),
        "wv": init_w(keys[4], (D, D), D), "bv": 0.01 * jax.random.normal(keys[5], (D,)),
        "wo": init_w(keys[6], (D, D), D), "bo": 0.01 * jax.random.normal(keys[7], (D,)),
        "g2": jnp.ones((D,), jnp.float32),
        "bn2": jnp.zeros((D,), jnp.float32),
        "w1": init_w(keys[8], (D, FF), D), "bf1": 0.01 * jax.random.normal(keys[9], (FF,)),
        "w2": init_w(keys[10], (FF, D), FF), "bf2": 0.01 * jax.random.normal(keys[11], (D,)),
    }

    x = jax.random.normal(keys[12], (B, S, D), dtype=jnp.float32)
    # Causal mask: True == masked (future positions); shared across batch & heads.
    causal_mask = jnp.triu(jnp.ones((S, S), dtype=bool), k=1)
    mask4d = jnp.broadcast_to(causal_mask, (B, H, S, S))

    ref_x, ref_attn = reference_transformer_layer(x, mask4d, params, num_head=H, no_res=no_res)

    # 1) f32 MXU operands + explicit mask slab (generic-mask path): semantic check.
    out_x, out_attn = transformer_layer(
        x, causal_mask, params, num_head=H, no_res=no_res,
        compute_dtype=jnp.float32, attn_dtype=jnp.float32)
    jax.block_until_ready((out_x, out_attn))
    assert out_x.shape == (B, S, D) and out_attn.shape == (B, H, S, S)
    assert jnp.allclose(out_x, ref_x, atol=1e-2, rtol=1e-2), "x mismatch (f32 path)"
    assert jnp.allclose(out_attn, ref_attn, atol=1e-2, rtol=1e-2), "attn mismatch (f32 path)"

    # 2) defaults: bf16 MXU operands, in-kernel causal mask, bf16 attention output.
    out_x16, out_attn16 = transformer_layer(
        x, None, params, num_head=H, no_res=no_res, causal=True)
    jax.block_until_ready((out_x16, out_attn16))
    assert jnp.allclose(out_x16, ref_x, atol=1e-1, rtol=1e-1), "x mismatch (bf16 path)"
    assert jnp.allclose(out_attn16.astype(jnp.float32), ref_attn, atol=1e-1, rtol=1e-1), \
        "attn mismatch (bf16 path)"

    # 3) no-attention-output path (skips the (B,H,S,S) writeback entirely).
    out_x_na, attn_na = transformer_layer(
        x, None, params, num_head=H, no_res=no_res, causal=True,
        return_attn=False, compute_dtype=jnp.float32)
    jax.block_until_ready(out_x_na)
    assert attn_na is None
    assert jnp.allclose(out_x_na, ref_x, atol=1e-2, rtol=1e-2), "x mismatch (no-attn path)"

    print("KERNEL_OK")
</pallas_src>

<mosaic_0001>
module attributes {stable_mosaic.version = 11 : i64} {
  func.func @transformer_layer_kernel(%arg0: i32, %arg1: i32, %arg2: i32, %arg3: memref<8x8xf32, #tpu.memory_space<vmem>>, %arg4: memref<1x8x32xf32, #tpu.memory_space<vmem>>, %arg5: memref<1x32xf32, #tpu.memory_space<vmem>>, %arg6: memref<1x32xf32, #tpu.memory_space<vmem>>, %arg7: memref<1x32x8xf32, #tpu.memory_space<vmem>>, %arg8: memref<1x1x8xf32, #tpu.memory_space<vmem>>, %arg9: memref<1x32x16xf32, #tpu.memory_space<vmem>>, %arg10: memref<1x1x16xf32, #tpu.memory_space<vmem>>, %arg11: memref<32x32xf32, #tpu.memory_space<vmem>>, %arg12: memref<1x32xf32, #tpu.memory_space<vmem>>, %arg13: memref<1x32xf32, #tpu.memory_space<vmem>>, %arg14: memref<1x32xf32, #tpu.memory_space<vmem>>, %arg15: memref<32x64xf32, #tpu.memory_space<vmem>>, %arg16: memref<1x64xf32, #tpu.memory_space<vmem>>, %arg17: memref<64x32xf32, #tpu.memory_space<vmem>>, %arg18: memref<1x32xf32, #tpu.memory_space<vmem>>, %arg19: memref<1x8x32xf32, #tpu.memory_space<vmem>>, %arg20: memref<1x1x8x8xf32, #tpu.memory_space<vmem>>, %arg21: memref<8x32xf32, #tpu.memory_space<vmem>>, %arg22: memref<4x8x8xf32, #tpu.memory_space<vmem>>) attributes {dimension_semantics = [#tpu.dimension_semantics<parallel>, #tpu.dimension_semantics<parallel>, #tpu.dimension_semantics<arbitrary>], iteration_bounds = array<i64: 2, 1, 4>, scalar_prefetch = 0 : i64, scratch_operands = 2 : i64, tpu.core_type = #tpu.core_type<tc>, window_params = [{transform_indices = @transform_0, window_bounds = array<i64: 8, 8>}, {transform_indices = @transform_1, window_bounds = array<i64: 1, 8, 32>}, {pipeline_mode = #tpu.pipeline_mode<synchronous>, transform_indices = @transform_2, window_bounds = array<i64: 1, 32>}, {pipeline_mode = #tpu.pipeline_mode<synchronous>, transform_indices = @transform_3, window_bounds = array<i64: 1, 32>}, {transform_indices = @transform_4, window_bounds = array<i64: 1, 32, 8>}, {transform_indices = @transform_5, window_bounds = array<i64: 1, 1, 8>}, {transform_indices = @transform_6, window_bounds = array<i64: 1, 32, 16>}, {transform_indices = @transform_7, window_bounds = array<i64: 1, 1, 16>}, {pipeline_mode = #tpu.pipeline_mode<synchronous>, transform_indices = @transform_8, window_bounds = array<i64: 32, 32>}, {pipeline_mode = #tpu.pipeline_mode<synchronous>, transform_indices = @transform_9, window_bounds = array<i64: 1, 32>}, {pipeline_mode = #tpu.pipeline_mode<synchronous>, transform_indices = @transform_10, window_bounds = array<i64: 1, 32>}, {pipeline_mode = #tpu.pipeline_mode<synchronous>, transform_indices = @transform_11, window_bounds = array<i64: 1, 32>}, {pipeline_mode = #tpu.pipeline_mode<synchronous>, transform_indices = @transform_12, window_bounds = array<i64: 32, 64>}, {pipeline_mode = #tpu.pipeline_mode<synchronous>, transform_indices = @transform_13, window_bounds = array<i64: 1, 64>}, {pipeline_mode = #tpu.pipeline_mode<synchronous>, transform_indices = @transform_14, window_bounds = array<i64: 64, 32>}, {pipeline_mode = #tpu.pipeline_mode<synchronous>, transform_indices = @transform_15, window_bounds = array<i64: 1, 32>}, {transform_indices = @transform_16, window_bounds = array<i64: 1, 8, 32>}, {transform_indices = @transform_17, window_bounds = array<i64: 1, 1, 8, 8>}]} {
    %c8_i32 = arith.constant 8 : i32
    %0 = arith.muli %arg1, %c8_i32 : i32
    %1 = tpu.assume_multiple %0, 8 : i32
    %c0_i32 = arith.constant 0 : i32
    %2 = arith.cmpi eq, %arg2, %c0_i32 : i32
    %3 = arith.extui %2 : i1 to i32
    %c0_i32_0 = arith.constant 0 : i32
    %4 = arith.cmpi ne, %3, %c0_i32_0 : i32
    scf.if %4 {
      %c0_30 = arith.constant 0 : index
      %c0_31 = arith.constant 0 : index
      %c0_32 = arith.constant 0 : index
      %50 = vector.load %arg4[%c0_30, %c0_31, %c0_32] : memref<1x8x32xf32, #tpu.memory_space<vmem>>, vector<1x8x32xf32>
      %51 = vector.shape_cast %50 : vector<1x8x32xf32> to vector<8x32xf32>
      %c0_33 = arith.constant 0 : index
      %c0_34 = arith.constant 0 : index
      %52 = vector.load %arg5[%c0_33, %c0_34] : memref<1x32xf32, #tpu.memory_space<vmem>>, vector<1x32xf32>
      %c0_35 = arith.constant 0 : index
      %c0_36 = arith.constant 0 : index
      %53 = vector.load %arg6[%c0_35, %c0_36] : memref<1x32xf32, #tpu.memory_space<vmem>>, vector<1x32xf32>
      %cst_37 = arith.constant dense<0.000000e+00> : vector<8xf32>
      %54 = vector.multi_reduction <add>, %51, %cst_37 [1] : vector<8x32xf32> to vector<8xf32>
      %55 = vector.shape_cast %54 : vector<8xf32> to vector<8x1xf32>
      %cst_38 = arith.constant 3.200000e+01 : f32
      %56 = vector.broadcast %cst_38 : f32 to vector<8x1xf32>
      %57 = arith.divf %55, %56 : vector<8x1xf32>
      %58 = vector.broadcast %57 : vector<8x1xf32> to vector<8x32xf32>
      %59 = arith.subf %51, %58 : vector<8x32xf32>
      %60 = arith.mulf %59, %59 : vector<8x32xf32>
      %cst_39 = arith.constant dense<0.000000e+00> : vector<8xf32>
      %61 = vector.multi_reduction <add>, %60, %cst_39 [1] : vector<8x32xf32> to vector<8xf32>
      %62 = vector.shape_cast %61 : vector<8xf32> to vector<8x1xf32>
      %cst_40 = arith.constant 3.200000e+01 : f32
      %63 = vector.broadcast %cst_40 : f32 to vector<8x1xf32>
      %64 = arith.divf %62, %63 : vector<8x1xf32>
      %65 = vector.broadcast %57 : vector<8x1xf32> to vector<8x32xf32>
      %66 = arith.subf %51, %65 : vector<8x32xf32>
      %cst_41 = arith.constant 9.99999974E-6 : f32
      %67 = vector.broadcast %cst_41 : f32 to vector<8x1xf32>
      %68 = arith.addf %64, %67 : vector<8x1xf32>
      %69 = math.rsqrt %68 : vector<8x1xf32>
      %70 = vector.broadcast %69 : vector<8x1xf32> to vector<8x32xf32>
      %71 = arith.mulf %66, %70 : vector<8x32xf32>
      %72 = vector.broadcast %52 : vector<1x32xf32> to vector<8x32xf32>
      %73 = arith.mulf %71, %72 : vector<8x32xf32>
      %74 = vector.broadcast %53 : vector<1x32xf32> to vector<8x32xf32>
      %75 = arith.addf %73, %74 : vector<8x32xf32>
      %c0_42 = arith.constant 0 : index
      %c0_43 = arith.constant 0 : index
      %76 = vector.load %arg21[%c0_42, %c0_43] : memref<8x32xf32, #tpu.memory_space<vmem>>, vector<8x32xf32>
      tpu.vector_store %arg21[%c0_42, %c0_43], %75 {strides = array<i32>} : memref<8x32xf32, #tpu.memory_space<vmem>>, vector<8x32xf32>,
    } else {
    }
    %c0 = arith.constant 0 : index
    %c0_1 = arith.constant 0 : index
    %5 = vector.load %arg21[%c0, %c0_1] : memref<8x32xf32, #tpu.memory_space<vmem>>, vector<8x32xf32>
    %6 = arith.index_cast %1 : i32 to index
    %c0_2 = arith.constant 0 : index
    %7 = vector.load %arg21[%6, %c0_2] : memref<8x32xf32, #tpu.memory_space<vmem>>, vector<8x32xf32>
    %c0_3 = arith.constant 0 : index
    %c0_4 = arith.constant 0 : index
    %c0_5 = arith.constant 0 : index
    %8 = vector.load %arg9[%c0_3, %c0_4, %c0_5] : memref<1x32x16xf32, #tpu.memory_space<vmem>>, vector<1x32x16xf32>
    %9 = vector.shape_cast %8 : vector<1x32x16xf32> to vector<32x16xf32>
    %cst = arith.constant dense<0.000000e+00> : vector<8x16xf32>
    %10 = tpu.matmul %5, %9, %cst {dimension_numbers = #tpu.dot_dimension_numbers<[1], [0], [0], [1], [0, 0, 1, 1], [], []>} : vector<8x32xf32>, vector<32x16xf32>, vector<8x16xf32> -> vector<8x16xf32>
    %c0_6 = arith.constant 0 : index
    %c0_7 = arith.constant 0 : index
    %c0_8 = arith.constant 0 : index
    %11 = vector.load %arg10[%c0_6, %c0_7, %c0_8] : memref<1x1x16xf32, #tpu.memory_space<vmem>>, vector<1x1x16xf32>
    %12 = vector.shape_cast %11 : vector<1x1x16xf32> to vector<1x16xf32>
    %13 = vector.broadcast %12 : vector<1x16xf32> to vector<8x16xf32>
    %14 = arith.addf %10, %13 : vector<8x16xf32>
    %c0_9 = arith.constant 0 : index
    %c0_10 = arith.constant 0 : index
    %c0_11 = arith.constant 0 : index
    %15 = vector.load %arg7[%c0_9, %c0_10, %c0_11] : memref<1x32x8xf32, #tpu.memory_space<vmem>>, vector<1x32x8xf32>
    %16 = vector.shape_cast %15 : vector<1x32x8xf32> to vector<32x8xf32>
    %cst_12 = arith.constant dense<0.000000e+00> : vector<8x8xf32>
    %17 = tpu.matmul %7, %16, %cst_12 {dimension_numbers = #tpu.dot_dimension_numbers<[1], [0], [0], [1], [0, 0, 1, 1], [], []>} : vector<8x32xf32>, vector<32x8xf32>, vector<8x8xf32> -> vector<8x8xf32>
    %c0_13 = arith.constant 0 : index
    %c0_14 = arith.constant 0 : index
    %c0_15 = arith.constant 0 : index
    %18 = vector.load %arg8[%c0_13, %c0_14, %c0_15] : memref<1x1x8xf32, #tpu.memory_space<vmem>>, vector<1x1x8xf32>
    %19 = vector.shape_cast %18 : vector<1x1x8xf32> to vector<1x8xf32>
    %20 = vector.broadcast %19 : vector<1x8xf32> to vector<8x8xf32>
    %21 = arith.addf %17, %20 : vector<8x8xf32>
    %cst_16 = arith.constant 0.353553385 : f32
    %22 = vector.broadcast %cst_16 : f32 to vector<8x8xf32>
    %23 = arith.mulf %21, %22 : vector<8x8xf32>
    %24 = vector.extract_strided_slice %14 {offsets = [0, 0], sizes = [8, 8], strides = [1, 1]} : vector<8x16xf32> to vector<8x8xf32>
    %25 = vector.extract_strided_slice %14 {offsets = [0, 8], sizes = [8, 8], strides = [1, 1]} : vector<8x16xf32> to vector<8x8xf32>
    %cst_17 = arith.constant dense<0.000000e+00> : vector<8x8xf32>
    %26 = tpu.matmul %23, %24, %cst_17 {dimension_numbers = #tpu.dot_dimension_numbers<[1], [1], [0], [0], [0, 0, 1, 0], [], []>} : vector<8x8xf32>, vector<8x8xf32>, vector<8x8xf32> -> vector<8x8xf32>
    %c0_18 = arith.constant 0 : index
    %c0_19 = arith.constant 0 : index
    %27 = vector.load %arg3[%c0_18, %c0_19] : memref<8x8xf32, #tpu.memory_space<vmem>>, vector<8x8xf32>
    %28 = arith.addf %26, %27 : vector<8x8xf32>
    %cst_20 = arith.constant dense<0xFF800000> : vector<8xf32>
    %29 = vector.multi_reduction <maximumf>, %28, %cst_20 [1] : vector<8x8xf32> to vector<8xf32>
    %30 = vector.shape_cast %29 : vector<8xf32> to vector<8x1xf32>
    %31 = vector.broadcast %30 : vector<8x1xf32> to vector<8x8xf32>
    %32 = arith.subf %28, %31 : vector<8x8xf32>
    %33 = math.exp %32 : vector<8x8xf32>
    %cst_21 = arith.constant dense<0.000000e+00> : vector<8xf32>
    %34 = vector.multi_reduction <add>, %33, %cst_21 [1] : vector<8x8xf32> to vector<8xf32>
    %35 = vector.shape_cast %34 : vector<8xf32> to vector<8x1xf32>
    %36 = tpu.reciprocal %35 {approx = true} : vector<8x1xf32> -> vector<8x1xf32>
    %37 = vector.broadcast %36 : vector<8x1xf32> to vector<8x8xf32>
    %38 = arith.mulf %33, %37 : vector<8x8xf32>
    %c0_22 = arith.constant 0 : index
    %c0_23 = arith.constant 0 : index
    %c0_24 = arith.constant 0 : index
    %c0_25 = arith.constant 0 : index
    %39 = vector.load %arg20[%c0_22, %c0_23, %c0_24, %c0_25] : memref<1x1x8x8xf32, #tpu.memory_space<vmem>>, vector<1x1x8x8xf32>
    %40 = vector.shape_cast %39 : vector<1x1x8x8xf32> to vector<8x8xf32>
    %41 = vector.shape_cast %38 : vector<8x8xf32> to vector<1x1x8x8xf32>
    tpu.vector_store %arg20[%c0_22, %c0_23, %c0_24, %c0_25], %41 {strides = array<i32>} : memref<1x1x8x8xf32, #tpu.memory_space<vmem>>, vector<1x1x8x8xf32>,
    %cst_26 = arith.constant dense<0.000000e+00> : vector<8x8xf32>
    %42 = tpu.matmul %38, %25, %cst_26 {dimension_numbers = #tpu.dot_dimension_numbers<[1], [0], [0], [1], [0, 0, 1, 1], [], []>} : vector<8x8xf32>, vector<8x8xf32>, vector<8x8xf32> -> vector<8x8xf32>
    %43 = arith.index_cast %arg2 : i32 to index
    %c0_27 = arith.constant 0 : index
    %c0_28 = arith.constant 0 : index
    %44 = vector.load %arg22[%43, %c0_27, %c0_28] : memref<4x8x8xf32, #tpu.memory_space<vmem>>, vector<1x8x8xf32>
    %45 = vector.shape_cast %44 : vector<1x8x8xf32> to vector<8x8xf32>
    %46 = vector.shape_cast %42 : vector<8x8xf32> to vector<1x8x8xf32>
    tpu.vector_store %arg22[%43, %c0_27, %c0_28], %46 {strides = array<i32>} : memref<4x8x8xf32, #tpu.memory_space<vmem>>, vector<1x8x8xf32>,
    %c3_i32 = arith.constant 3 : i32
    %47 = arith.cmpi eq, %arg2, %c3_i32 : i32
    %48 = arith.extui %47 : i1 to i32
    %c0_i32_29 = arith.constant 0 : i32
    %49 = arith.cmpi ne, %48, %c0_i32_29 : i32
    scf.if %49 {
      %c0_30 = arith.constant 0 : index
      %c0_31 = arith.constant 0 : index
      %c0_32 = arith.constant 0 : index
      %50 = vector.load %arg22[%c0_30, %c0_31, %c0_32] : memref<4x8x8xf32, #tpu.memory_space<vmem>>, vector<1x8x8xf32>
      %51 = vector.shape_cast %50 : vector<1x8x8xf32> to vector<8x8xf32>
      %c1 = arith.constant 1 : index
      %c0_33 = arith.constant 0 : index
      %c0_34 = arith.constant 0 : index
      %52 = vector.load %arg22[%c1, %c0_33, %c0_34] : memref<4x8x8xf32, #tpu.memory_space<vmem>>, vector<1x8x8xf32>
      %53 = vector.shape_cast %52 : vector<1x8x8xf32> to vector<8x8xf32>
      %c2 = arith.constant 2 : index
      %c0_35 = arith.constant 0 : index
      %c0_36 = arith.constant 0 : index
      %54 = vector.load %arg22[%c2, %c0_35, %c0_36] : memref<4x8x8xf32, #tpu.memory_space<vmem>>, vector<1x8x8xf32>
      %55 = vector.shape_cast %54 : vector<1x8x8xf32> to vector<8x8xf32>
      %c3 = arith.constant 3 : index
      %c0_37 = arith.constant 0 : index
      %c0_38 = arith.constant 0 : index
      %56 = vector.load %arg22[%c3, %c0_37, %c0_38] : memref<4x8x8xf32, #tpu.memory_space<vmem>>, vector<1x8x8xf32>
      %57 = vector.shape_cast %56 : vector<1x8x8xf32> to vector<8x8xf32>
      %58 = tpu.concatenate %51, %53, %55, %57 in 1 : vector<8x8xf32>, vector<8x8xf32>, vector<8x8xf32>, vector<8x8xf32> -> vector<8x32xf32>
      %c0_39 = arith.constant 0 : index
      %c0_40 = arith.constant 0 : index
      %59 = vector.load %arg11[%c0_39, %c0_40] : memref<32x32xf32, #tpu.memory_space<vmem>>, vector<32x32xf32>
      %cst_41 = arith.constant dense<0.000000e+00> : vector<8x32xf32>
      %60 = tpu.matmul %58, %59, %cst_41 {dimension_numbers = #tpu.dot_dimension_numbers<[1], [0], [0], [1], [0, 0, 1, 1], [], []>} : vector<8x32xf32>, vector<32x32xf32>, vector<8x32xf32> -> vector<8x32xf32>
      %c0_42 = arith.constant 0 : index
      %c0_43 = arith.constant 0 : index
      %61 = vector.load %arg12[%c0_42, %c0_43] : memref<1x32xf32, #tpu.memory_space<vmem>>, vector<1x32xf32>
      %62 = vector.broadcast %61 : vector<1x32xf32> to vector<8x32xf32>
      %63 = arith.addf %60, %62 : vector<8x32xf32>
      %c0_44 = arith.constant 0 : index
      %64 = arith.index_cast %1 : i32 to index
      %c0_45 = arith.constant 0 : index
      %65 = vector.load %arg4[%c0_44, %64, %c0_45] : memref<1x8x32xf32, #tpu.memory_space<vmem>>, vector<1x8x32xf32>
      %66 = vector.shape_cast %65 : vector<1x8x32xf32> to vector<8x32xf32>
      %67 = arith.addf %66, %63 : vector<8x32xf32>
      %c0_46 = arith.constant 0 : index
      %c0_47 = arith.constant 0 : index
      %68 = vector.load %arg13[%c0_46, %c0_47] : memref<1x32xf32, #tpu.memory_space<vmem>>, vector<1x32xf32>
      %c0_48 = arith.constant 0 : index
      %c0_49 = arith.constant 0 : index
      %69 = vector.load %arg14[%c0_48, %c0_49] : memref<1x32xf32, #tpu.memory_space<vmem>>, vector<1x32xf32>
      %cst_50 = arith.constant dense<0.000000e+00> : vector<8xf32>
      %70 = vector.multi_reduction <add>, %67, %cst_50 [1] : vector<8x32xf32> to vector<8xf32>
      %71 = vector.shape_cast %70 : vector<8xf32> to vector<8x1xf32>
      %cst_51 = arith.constant 3.200000e+01 : f32
      %72 = vector.broadcast %cst_51 : f32 to vector<8x1xf32>
      %73 = arith.divf %71, %72 : vector<8x1xf32>
      %74 = vector.broadcast %73 : vector<8x1xf32> to vector<8x32xf32>
      %75 = arith.subf %67, %74 : vector<8x32xf32>
      %76 = arith.mulf %75, %75 : vector<8x32xf32>
      %cst_52 = arith.constant dense<0.000000e+00> : vector<8xf32>
      %77 = vector.multi_reduction <add>, %76, %cst_52 [1] : vector<8x32xf32> to vector<8xf32>
      %78 = vector.shape_cast %77 : vector<8xf32> to vector<8x1xf32>
      %cst_53 = arith.constant 3.200000e+01 : f32
      %79 = vector.broadcast %cst_53 : f32 to vector<8x1xf32>
      %80 = arith.divf %78, %79 : vector<8x1xf32>
      %81 = vector.broadcast %73 : vector<8x1xf32> to vector<8x32xf32>
      %82 = arith.subf %67, %81 : vector<8x32xf32>
      %cst_54 = arith.constant 9.99999974E-6 : f32
      %83 = vector.broadcast %cst_54 : f32 to vector<8x1xf32>
      %84 = arith.addf %80, %83 : vector<8x1xf32>
      %85 = math.rsqrt %84 : vector<8x1xf32>
      %86 = vector.broadcast %85 : vector<8x1xf32> to vector<8x32xf32>
      %87 = arith.mulf %82, %86 : vector<8x32xf32>
      %88 = vector.broadcast %68 : vector<1x32xf32> to vector<8x32xf32>
      %89 = arith.mulf %87, %88 : vector<8x32xf32>
      %90 = vector.broadcast %69 : vector<1x32xf32> to vector<8x32xf32>
      %91 = arith.addf %89, %90 : vector<8x32xf32>
      %c0_55 = arith.constant 0 : index
      %c0_56 = arith.constant 0 : index
      %92 = vector.load %arg15[%c0_55, %c0_56] : memref<32x64xf32, #tpu.memory_space<vmem>>, vector<32x64xf32>
      %cst_57 = arith.constant dense<0.000000e+00> : vector<8x64xf32>
      %93 = tpu.matmul %91, %92, %cst_57 {dimension_numbers = #tpu.dot_dimension_numbers<[1], [0], [0], [1], [0, 0, 1, 1], [], []>} : vector<8x32xf32>, vector<32x64xf32>, vector<8x64xf32> -> vector<8x64xf32>
      %c0_58 = arith.constant 0 : index
      %c0_59 = arith.constant 0 : index
      %94 = vector.load %arg16[%c0_58, %c0_59] : memref<1x64xf32, #tpu.memory_space<vmem>>, vector<1x64xf32>
      %95 = vector.broadcast %94 : vector<1x64xf32> to vector<8x64xf32>
      %96 = arith.addf %93, %95 : vector<8x64xf32>
      %97 = arith.mulf %96, %96 : vector<8x64xf32>
      %98 = arith.mulf %97, %96 : vector<8x64xf32>
      %cst_60 = arith.constant 5.000000e-01 : f32
      %99 = vector.broadcast %cst_60 : f32 to vector<8x64xf32>
      %100 = arith.mulf %99, %96 : vector<8x64xf32>
      %cst_61 = arith.constant 4.471500e-02 : f32
      %101 = vector.broadcast %cst_61 : f32 to vector<8x64xf32>
      %102 = arith.mulf %101, %98 : vector<8x64xf32>
      %103 = arith.addf %96, %102 : vector<8x64xf32>
      %cst_62 = arith.constant 0.797884583 : f32
      %104 = vector.broadcast %cst_62 : f32 to vector<8x64xf32>
      %105 = arith.mulf %104, %103 : vector<8x64xf32>
      %106 = math.tanh %105 : vector<8x64xf32>
      %cst_63 = arith.constant 1.000000e+00 : f32
      %107 = vector.broadcast %cst_63 : f32 to vector<8x64xf32>
      %108 = arith.addf %107, %106 : vector<8x64xf32>
      %109 = arith.mulf %100, %108 : vector<8x64xf32>
      %c0_64 = arith.constant 0 : index
      %c0_65 = arith.constant 0 : index
      %110 = vector.load %arg17[%c0_64, %c0_65] : memref<64x32xf32, #tpu.memory_space<vmem>>, vector<64x32xf32>
      %cst_66 = arith.constant dense<0.000000e+00> : vector<8x32xf32>
      %111 = tpu.matmul %109, %110, %cst_66 {dimension_numbers = #tpu.dot_dimension_numbers<[1], [0], [0], [1], [0, 0, 1, 1], [], []>} : vector<8x64xf32>, vector<64x32xf32>, vector<8x32xf32> -> vector<8x32xf32>
      %c0_67 = arith.constant 0 : index
      %c0_68 = arith.constant 0 : index
      %112 = vector.load %arg18[%c0_67, %c0_68] : memref<1x32xf32, #tpu.memory_space<vmem>>, vector<1x32xf32>
      %113 = vector.broadcast %112 : vector<1x32xf32> to vector<8x32xf32>
      %114 = arith.addf %111, %113 : vector<8x32xf32>
      %115 = arith.addf %67, %114 : vector<8x32xf32>
      %c0_69 = arith.constant 0 : index
      %c0_70 = arith.constant 0 : index
      %c0_71 = arith.constant 0 : index
      %116 = vector.load %arg19[%c0_69, %c0_70, %c0_71] : memref<1x8x32xf32, #tpu.memory_space<vmem>>, vector<1x8x32xf32>
      %117 = vector.shape_cast %116 : vector<1x8x32xf32> to vector<8x32xf32>
      %118 = vector.shape_cast %115 : vector<8x32xf32> to vector<1x8x32xf32>
      tpu.vector_store %arg19[%c0_69, %c0_70, %c0_71], %118 {strides = array<i32>} : memref<1x8x32xf32, #tpu.memory_space<vmem>>, vector<1x8x32xf32>,
    } else {
    }
    return
  }
  func.func @transform_0(%arg0: i32, %arg1: i32, %arg2: i32) -> (i32, i32) {
    %c0_i32 = arith.constant 0 : i32
    %c0_i32_0 = arith.constant 0 : i32
    return %arg1, %c0_i32 : i32, i32
  }
  func.func @transform_1(%arg0: i32, %arg1: i32, %arg2: i32) -> (i32, i32, i32) {
    %c0_i32 = arith.constant 0 : i32
    %c0_i32_0 = arith.constant 0 : i32
    %c0_i32_1 = arith.constant 0 : i32
    return %arg0, %c0_i32, %c0_i32_0 : i32, i32, i32
  }
  func.func @transform_2(%arg0: i32, %arg1: i32, %arg2: i32) -> (i32, i32) {
    %c0_i32 = arith.constant 0 : i32
    %c0_i32_0 = arith.constant 0 : i32
    %c0_i32_1 = arith.constant 0 : i32
    return %c0_i32, %c0_i32_0 : i32, i32
  }
  func.func @transform_3(%arg0: i32, %arg1: i32, %arg2: i32) -> (i32, i32) {
    %c0_i32 = arith.constant 0 : i32
    %c0_i32_0 = arith.constant 0 : i32
    %c0_i32_1 = arith.constant 0 : i32
    return %c0_i32, %c0_i32_0 : i32, i32
  }
  func.func @transform_4(%arg0: i32, %arg1: i32, %arg2: i32) -> (i32, i32, i32) {
    %c0_i32 = arith.constant 0 : i32
    %c0_i32_0 = arith.constant 0 : i32
    %c0_i32_1 = arith.constant 0 : i32
    return %arg2, %c0_i32, %c0_i32_0 : i32, i32, i32
  }
  func.func @transform_5(%arg0: i32, %arg1: i32, %arg2: i32) -> (i32, i32, i32) {
    %c0_i32 = arith.constant 0 : i32
    %c0_i32_0 = arith.constant 0 : i32
    %c0_i32_1 = arith.constant 0 : i32
    return %arg2, %c0_i32, %c0_i32_0 : i32, i32, i32
  }
  func.func @transform_6(%arg0: i32, %arg1: i32, %arg2: i32) -> (i32, i32, i32) {
    %c0_i32 = arith.constant 0 : i32
    %c0_i32_0 = arith.constant 0 : i32
    %c0_i32_1 = arith.constant 0 : i32
    return %arg2, %c0_i32, %c0_i32_0 : i32, i32, i32
  }
  func.func @transform_7(%arg0: i32, %arg1: i32, %arg2: i32) -> (i32, i32, i32) {
    %c0_i32 = arith.constant 0 : i32
    %c0_i32_0 = arith.constant 0 : i32
    %c0_i32_1 = arith.constant 0 : i32
    return %arg2, %c0_i32, %c0_i32_0 : i32, i32, i32
  }
  func.func @transform_8(%arg0: i32, %arg1: i32, %arg2: i32) -> (i32, i32) {
    %c0_i32 = arith.constant 0 : i32
    %c0_i32_0 = arith.constant 0 : i32
    %c0_i32_1 = arith.constant 0 : i32
    return %c0_i32, %c0_i32_0 : i32, i32
  }
  func.func @transform_9(%arg0: i32, %arg1: i32, %arg2: i32) -> (i32, i32) {
    %c0_i32 = arith.constant 0 : i32
    %c0_i32_0 = arith.constant 0 : i32
    %c0_i32_1 = arith.constant 0 : i32
    return %c0_i32, %c0_i32_0 : i32, i32
  }
  func.func @transform_10(%arg0: i32, %arg1: i32, %arg2: i32) -> (i32, i32) {
    %c0_i32 = arith.constant 0 : i32
    %c0_i32_0 = arith.constant 0 : i32
    %c0_i32_1 = arith.constant 0 : i32
    return %c0_i32, %c0_i32_0 : i32, i32
  }
  func.func @transform_11(%arg0: i32, %arg1: i32, %arg2: i32) -> (i32, i32) {
    %c0_i32 = arith.constant 0 : i32
    %c0_i32_0 = arith.constant 0 : i32
    %c0_i32_1 = arith.constant 0 : i32
    return %c0_i32, %c0_i32_0 : i32, i32
  }
  func.func @transform_12(%arg0: i32, %arg1: i32, %arg2: i32) -> (i32, i32) {
    %c0_i32 = arith.constant 0 : i32
    %c0_i32_0 = arith.constant 0 : i32
    %c0_i32_1 = arith.constant 0 : i32
    return %c0_i32, %c0_i32_0 : i32, i32
  }
  func.func @transform_13(%arg0: i32, %arg1: i32, %arg2: i32) -> (i32, i32) {
    %c0_i32 = arith.constant 0 : i32
    %c0_i32_0 = arith.constant 0 : i32
    %c0_i32_1 = arith.constant 0 : i32
    return %c0_i32, %c0_i32_0 : i32, i32
  }
  func.func @transform_14(%arg0: i32, %arg1: i32, %arg2: i32) -> (i32, i32) {
    %c0_i32 = arith.constant 0 : i32
    %c0_i32_0 = arith.constant 0 : i32
    %c0_i32_1 = arith.constant 0 : i32
    return %c0_i32, %c0_i32_0 : i32, i32
  }
  func.func @transform_15(%arg0: i32, %arg1: i32, %arg2: i32) -> (i32, i32) {
    %c0_i32 = arith.constant 0 : i32
    %c0_i32_0 = arith.constant 0 : i32
    %c0_i32_1 = arith.constant 0 : i32
    return %c0_i32, %c0_i32_0 : i32, i32
  }
  func.func @transform_16(%arg0: i32, %arg1: i32, %arg2: i32) -> (i32, i32, i32) {
    %c0_i32 = arith.constant 0 : i32
    %c0_i32_0 = arith.constant 0 : i32
    return %arg0, %arg1, %c0_i32 : i32, i32, i32
  }
  func.func @transform_17(%arg0: i32, %arg1: i32, %arg2: i32) -> (i32, i32, i32, i32) {
    %c0_i32 = arith.constant 0 : i32
    %c0_i32_0 = arith.constant 0 : i32
    return %arg0, %arg2, %arg1, %c0_i32 : i32, i32, i32, i32
  }
}

module attributes {stable_mosaic.version = 11 : i64} {
  func.func @transformer_layer_kernel(%arg0: i32, %arg1: i32, %arg2: i32, %arg3: memref<8x8xf32, #tpu.memory_space<vmem>>, %arg4: memref<1x8x32xf32, #tpu.memory_space<vmem>>, %arg5: memref<1x32xf32, #tpu.memory_space<vmem>>, %arg6: memref<1x32xf32, #tpu.memory_space<vmem>>, %arg7: memref<1x32x8xf32, #tpu.memory_space<vmem>>, %arg8: memref<1x1x8xf32, #tpu.memory_space<vmem>>, %arg9: memref<1x32x16xf32, #tpu.memory_space<vmem>>, %arg10: memref<1x1x16xf32, #tpu.memory_space<vmem>>, %arg11: memref<32x32xf32, #tpu.memory_space<vmem>>, %arg12: memref<1x32xf32, #tpu.memory_space<vmem>>, %arg13: memref<1x32xf32, #tpu.memory_space<vmem>>, %arg14: memref<1x32xf32, #tpu.memory_space<vmem>>, %arg15: memref<32x64xf32, #tpu.memory_space<vmem>>, %arg16: memref<1x64xf32, #tpu.memory_space<vmem>>, %arg17: memref<64x32xf32, #tpu.memory_space<vmem>>, %arg18: memref<1x32xf32, #tpu.memory_space<vmem>>, %arg19: memref<1x8x32xf32, #tpu.memory_space<vmem>>, %arg20: memref<1x1x8x8xf32, #tpu.memory_space<vmem>>, %arg21: memref<8x32xf32, #tpu.memory_space<vmem>>, %arg22: memref<4x8x8xf32, #tpu.memory_space<vmem>>) attributes {dimension_semantics = [#tpu.dimension_semantics<parallel>, #tpu.dimension_semantics<parallel>, #tpu.dimension_semantics<arbitrary>], iteration_bounds = array<i64: 2, 1, 4>, scalar_prefetch = 0 : i64, scratch_operands = 2 : i64, tpu.core_type = #tpu.core_type<tc>, window_params = [{transform_indices = @transform_0, window_bounds = array<i64: 8, 8>}, {transform_indices = @transform_1, window_bounds = array<i64: 1, 8, 32>}, {pipeline_mode = #tpu.pipeline_mode<synchronous>, transform_indices = @transform_2, window_bounds = array<i64: 1, 32>}, {pipeline_mode = #tpu.pipeline_mode<synchronous>, transform_indices = @transform_3, window_bounds = array<i64: 1, 32>}, {transform_indices = @transform_4, window_bounds = array<i64: 1, 32, 8>}, {transform_indices = @transform_5, window_bounds = array<i64: 1, 1, 8>}, {transform_indices = @transform_6, window_bounds = array<i64: 1, 32, 16>}, {transform_indices = @transform_7, window_bounds = array<i64: 1, 1, 16>}, {pipeline_mode = #tpu.pipeline_mode<synchronous>, transform_indices = @transform_8, window_bounds = array<i64: 32, 32>}, {pipeline_mode = #tpu.pipeline_mode<synchronous>, transform_indices = @transform_9, window_bounds = array<i64: 1, 32>}, {pipeline_mode = #tpu.pipeline_mode<synchronous>, transform_indices = @transform_10, window_bounds = array<i64: 1, 32>}, {pipeline_mode = #tpu.pipeline_mode<synchronous>, transform_indices = @transform_11, window_bounds = array<i64: 1, 32>}, {pipeline_mode = #tpu.pipeline_mode<synchronous>, transform_indices = @transform_12, window_bounds = array<i64: 32, 64>}, {pipeline_mode = #tpu.pipeline_mode<synchronous>, transform_indices = @transform_13, window_bounds = array<i64: 1, 64>}, {pipeline_mode = #tpu.pipeline_mode<synchronous>, transform_indices = @transform_14, window_bounds = array<i64: 64, 32>}, {pipeline_mode = #tpu.pipeline_mode<synchronous>, transform_indices = @transform_15, window_bounds = array<i64: 1, 32>}, {transform_indices = @transform_16, window_bounds = array<i64: 1, 8, 32>}, {transform_indices = @transform_17, window_bounds = array<i64: 1, 1, 8, 8>}]} {
    %c8_i32 = arith.constant 8 : i32
    %0 = arith.muli %arg1, %c8_i32 : i32
    %1 = tpu.assume_multiple %0, 8 : i32
    %c0_i32 = arith.constant 0 : i32
    %2 = arith.cmpi eq, %arg2, %c0_i32 : i32
    %3 = arith.extui %2 : i1 to i32
    %c0_i32_0 = arith.constant 0 : i32
    %4 = arith.cmpi ne, %3, %c0_i32_0 : i32
    scf.if %4 {
      %c0_30 = arith.constant 0 : index
      %c0_31 = arith.constant 0 : index
      %c0_32 = arith.constant 0 : index
      %50 = vector.load %arg4[%c0_30, %c0_31, %c0_32] : memref<1x8x32xf32, #tpu.memory_space<vmem>>, vector<1x8x32xf32>
      %51 = vector.shape_cast %50 : vector<1x8x32xf32> to vector<8x32xf32>
      %c0_33 = arith.constant 0 : index
      %c0_34 = arith.constant 0 : index
      %52 = vector.load %arg5[%c0_33, %c0_34] : memref<1x32xf32, #tpu.memory_space<vmem>>, vector<1x32xf32>
      %c0_35 = arith.constant 0 : index
      %c0_36 = arith.constant 0 : index
      %53 = vector.load %arg6[%c0_35, %c0_36] : memref<1x32xf32, #tpu.memory_space<vmem>>, vector<1x32xf32>
      %cst_37 = arith.constant dense<0.000000e+00> : vector<8xf32>
      %54 = vector.multi_reduction <add>, %51, %cst_37 [1] : vector<8x32xf32> to vector<8xf32>
      %55 = vector.shape_cast %54 : vector<8xf32> to vector<8x1xf32>
      %cst_38 = arith.constant 3.200000e+01 : f32
      %56 = vector.broadcast %cst_38 : f32 to vector<8x1xf32>
      %57 = arith.divf %55, %56 : vector<8x1xf32>
      %58 = vector.broadcast %57 : vector<8x1xf32> to vector<8x32xf32>
      %59 = arith.subf %51, %58 : vector<8x32xf32>
      %60 = arith.mulf %59, %59 : vector<8x32xf32>
      %cst_39 = arith.constant dense<0.000000e+00> : vector<8xf32>
      %61 = vector.multi_reduction <add>, %60, %cst_39 [1] : vector<8x32xf32> to vector<8xf32>
      %62 = vector.shape_cast %61 : vector<8xf32> to vector<8x1xf32>
      %cst_40 = arith.constant 3.200000e+01 : f32
      %63 = vector.broadcast %cst_40 : f32 to vector<8x1xf32>
      %64 = arith.divf %62, %63 : vector<8x1xf32>
      %65 = vector.broadcast %57 : vector<8x1xf32> to vector<8x32xf32>
      %66 = arith.subf %51, %65 : vector<8x32xf32>
      %cst_41 = arith.constant 9.99999974E-6 : f32
      %67 = vector.broadcast %cst_41 : f32 to vector<8x1xf32>
      %68 = arith.addf %64, %67 : vector<8x1xf32>
      %69 = math.rsqrt %68 : vector<8x1xf32>
      %70 = vector.broadcast %69 : vector<8x1xf32> to vector<8x32xf32>
      %71 = arith.mulf %66, %70 : vector<8x32xf32>
      %72 = vector.broadcast %52 : vector<1x32xf32> to vector<8x32xf32>
      %73 = arith.mulf %71, %72 : vector<8x32xf32>
      %74 = vector.broadcast %53 : vector<1x32xf32> to vector<8x32xf32>
      %75 = arith.addf %73, %74 : vector<8x32xf32>
      %c0_42 = arith.constant 0 : index
      %c0_43 = arith.constant 0 : index
      %76 = vector.load %arg21[%c0_42, %c0_43] : memref<8x32xf32, #tpu.memory_space<vmem>>, vector<8x32xf32>
      tpu.vector_store %arg21[%c0_42, %c0_43], %75 {strides = array<i32>} : memref<8x32xf32, #tpu.memory_space<vmem>>, vector<8x32xf32>,
    } else {
    }
    %c0 = arith.constant 0 : index
    %c0_1 = arith.constant 0 : index
    %5 = vector.load %arg21[%c0, %c0_1] : memref<8x32xf32, #tpu.memory_space<vmem>>, vector<8x32xf32>
    %6 = arith.index_cast %1 : i32 to index
    %c0_2 = arith.constant 0 : index
    %7 = vector.load %arg21[%6, %c0_2] : memref<8x32xf32, #tpu.memory_space<vmem>>, vector<8x32xf32>
    %c0_3 = arith.constant 0 : index
    %c0_4 = arith.constant 0 : index
    %c0_5 = arith.constant 0 : index
    %8 = vector.load %arg9[%c0_3, %c0_4, %c0_5] : memref<1x32x16xf32, #tpu.memory_space<vmem>>, vector<1x32x16xf32>
    %9 = vector.shape_cast %8 : vector<1x32x16xf32> to vector<32x16xf32>
    %cst = arith.constant dense<0.000000e+00> : vector<8x16xf32>
    %10 = tpu.matmul %5, %9, %cst {dimension_numbers = #tpu.dot_dimension_numbers<[1], [0], [0], [1], [0, 0, 1, 1], [], []>} : vector<8x32xf32>, vector<32x16xf32>, vector<8x16xf32> -> vector<8x16xf32>
    %c0_6 = arith.constant 0 : index
    %c0_7 = arith.constant 0 : index
    %c0_8 = arith.constant 0 : index
    %11 = vector.load %arg10[%c0_6, %c0_7, %c0_8] : memref<1x1x16xf32, #tpu.memory_space<vmem>>, vector<1x1x16xf32>
    %12 = vector.shape_cast %11 : vector<1x1x16xf32> to vector<1x16xf32>
    %13 = vector.broadcast %12 : vector<1x16xf32> to vector<8x16xf32>
    %14 = arith.addf %10, %13 : vector<8x16xf32>
    %c0_9 = arith.constant 0 : index
    %c0_10 = arith.constant 0 : index
    %c0_11 = arith.constant 0 : index
    %15 = vector.load %arg7[%c0_9, %c0_10, %c0_11] : memref<1x32x8xf32, #tpu.memory_space<vmem>>, vector<1x32x8xf32>
    %16 = vector.shape_cast %15 : vector<1x32x8xf32> to vector<32x8xf32>
    %cst_12 = arith.constant dense<0.000000e+00> : vector<8x8xf32>
    %17 = tpu.matmul %7, %16, %cst_12 {dimension_numbers = #tpu.dot_dimension_numbers<[1], [0], [0], [1], [0, 0, 1, 1], [], []>} : vector<8x32xf32>, vector<32x8xf32>, vector<8x8xf32> -> vector<8x8xf32>
    %c0_13 = arith.constant 0 : index
    %c0_14 = arith.constant 0 : index
    %c0_15 = arith.constant 0 : index
    %18 = vector.load %arg8[%c0_13, %c0_14, %c0_15] : memref<1x1x8xf32, #tpu.memory_space<vmem>>, vector<1x1x8xf32>
    %19 = vector.shape_cast %18 : vector<1x1x8xf32> to vector<1x8xf32>
    %20 = vector.broadcast %19 : vector<1x8xf32> to vector<8x8xf32>
    %21 = arith.addf %17, %20 : vector<8x8xf32>
    %cst_16 = arith.constant 0.353553385 : f32
    %22 = vector.broadcast %cst_16 : f32 to vector<8x8xf32>
    %23 = arith.mulf %21, %22 : vector<8x8xf32>
    %24 = vector.extract_strided_slice %14 {offsets = [0, 0], sizes = [8, 8], strides = [1, 1]} : vector<8x16xf32> to vector<8x8xf32>
    %25 = vector.extract_strided_slice %14 {offsets = [0, 8], sizes = [8, 8], strides = [1, 1]} : vector<8x16xf32> to vector<8x8xf32>
    %cst_17 = arith.constant dense<0.000000e+00> : vector<8x8xf32>
    %26 = tpu.matmul %23, %24, %cst_17 {dimension_numbers = #tpu.dot_dimension_numbers<[1], [1], [0], [0], [0, 0, 1, 0], [], []>} : vector<8x8xf32>, vector<8x8xf32>, vector<8x8xf32> -> vector<8x8xf32>
    %c0_18 = arith.constant 0 : index
    %c0_19 = arith.constant 0 : index
    %27 = vector.load %arg3[%c0_18, %c0_19] : memref<8x8xf32, #tpu.memory_space<vmem>>, vector<8x8xf32>
    %28 = arith.addf %26, %27 : vector<8x8xf32>
    %cst_20 = arith.constant dense<0xFF800000> : vector<8xf32>
    %29 = vector.multi_reduction <maximumf>, %28, %cst_20 [1] : vector<8x8xf32> to vector<8xf32>
    %30 = vector.shape_cast %29 : vector<8xf32> to vector<8x1xf32>
    %31 = vector.broadcast %30 : vector<8x1xf32> to vector<8x8xf32>
    %32 = arith.subf %28, %31 : vector<8x8xf32>
    %33 = math.exp %32 : vector<8x8xf32>
    %cst_21 = arith.constant dense<0.000000e+00> : vector<8xf32>
    %34 = vector.multi_reduction <add>, %33, %cst_21 [1] : vector<8x8xf32> to vector<8xf32>
    %35 = vector.shape_cast %34 : vector<8xf32> to vector<8x1xf32>
    %36 = tpu.reciprocal %35 {approx = true} : vector<8x1xf32> -> vector<8x1xf32>
    %37 = vector.broadcast %36 : vector<8x1xf32> to vector<8x8xf32>
    %38 = arith.mulf %33, %37 : vector<8x8xf32>
    %c0_22 = arith.constant 0 : index
    %c0_23 = arith.constant 0 : index
    %c0_24 = arith.constant 0 : index
    %c0_25 = arith.constant 0 : index
    %39 = vector.load %arg20[%c0_22, %c0_23, %c0_24, %c0_25] : memref<1x1x8x8xf32, #tpu.memory_space<vmem>>, vector<1x1x8x8xf32>
    %40 = vector.shape_cast %39 : vector<1x1x8x8xf32> to vector<8x8xf32>
    %41 = vector.shape_cast %38 : vector<8x8xf32> to vector<1x1x8x8xf32>
    tpu.vector_store %arg20[%c0_22, %c0_23, %c0_24, %c0_25], %41 {strides = array<i32>} : memref<1x1x8x8xf32, #tpu.memory_space<vmem>>, vector<1x1x8x8xf32>,
    %cst_26 = arith.constant dense<0.000000e+00> : vector<8x8xf32>
    %42 = tpu.matmul %38, %25, %cst_26 {dimension_numbers = #tpu.dot_dimension_numbers<[1], [0], [0], [1], [0, 0, 1, 1], [], []>} : vector<8x8xf32>, vector<8x8xf32>, vector<8x8xf32> -> vector<8x8xf32>
    %43 = arith.index_cast %arg2 : i32 to index
    %c0_27 = arith.constant 0 : index
    %c0_28 = arith.constant 0 : index
    %44 = vector.load %arg22[%43, %c0_27, %c0_28] : memref<4x8x8xf32, #tpu.memory_space<vmem>>, vector<1x8x8xf32>
    %45 = vector.shape_cast %44 : vector<1x8x8xf32> to vector<8x8xf32>
    %46 = vector.shape_cast %42 : vector<8x8xf32> to vector<1x8x8xf32>
    tpu.vector_store %arg22[%43, %c0_27, %c0_28], %46 {strides = array<i32>} : memref<4x8x8xf32, #tpu.memory_space<vmem>>, vector<1x8x8xf32>,
    %c3_i32 = arith.constant 3 : i32
    %47 = arith.cmpi eq, %arg2, %c3_i32 : i32
    %48 = arith.extui %47 : i1 to i32
    %c0_i32_29 = arith.constant 0 : i32
    %49 = arith.cmpi ne, %48, %c0_i32_29 : i32
    scf.if %49 {
      %c0_30 = arith.constant 0 : index
      %c0_31 = arith.constant 0 : index
      %c0_32 = arith.constant 0 : index
      %50 = vector.load %arg22[%c0_30, %c0_31, %c0_32] : memref<4x8x8xf32, #tpu.memory_space<vmem>>, vector<1x8x8xf32>
      %51 = vector.shape_cast %50 : vector<1x8x8xf32> to vector<8x8xf32>
      %c1 = arith.constant 1 : index
      %c0_33 = arith.constant 0 : index
      %c0_34 = arith.constant 0 : index
      %52 = vector.load %arg22[%c1, %c0_33, %c0_34] : memref<4x8x8xf32, #tpu.memory_space<vmem>>, vector<1x8x8xf32>
      %53 = vector.shape_cast %52 : vector<1x8x8xf32> to vector<8x8xf32>
      %c2 = arith.constant 2 : index
      %c0_35 = arith.constant 0 : index
      %c0_36 = arith.constant 0 : index
      %54 = vector.load %arg22[%c2, %c0_35, %c0_36] : memref<4x8x8xf32, #tpu.memory_space<vmem>>, vector<1x8x8xf32>
      %55 = vector.shape_cast %54 : vector<1x8x8xf32> to vector<8x8xf32>
      %c3 = arith.constant 3 : index
      %c0_37 = arith.constant 0 : index
      %c0_38 = arith.constant 0 : index
      %56 = vector.load %arg22[%c3, %c0_37, %c0_38] : memref<4x8x8xf32, #tpu.memory_space<vmem>>, vector<1x8x8xf32>
      %57 = vector.shape_cast %56 : vector<1x8x8xf32> to vector<8x8xf32>
      %58 = tpu.concatenate %51, %53, %55, %57 in 1 : vector<8x8xf32>, vector<8x8xf32>, vector<8x8xf32>, vector<8x8xf32> -> vector<8x32xf32>
      %c0_39 = arith.constant 0 : index
      %c0_40 = arith.constant 0 : index
      %59 = vector.load %arg11[%c0_39, %c0_40] : memref<32x32xf32, #tpu.memory_space<vmem>>, vector<32x32xf32>
      %cst_41 = arith.constant dense<0.000000e+00> : vector<8x32xf32>
      %60 = tpu.matmul %58, %59, %cst_41 {dimension_numbers = #tpu.dot_dimension_numbers<[1], [0], [0], [1], [0, 0, 1, 1], [], []>} : vector<8x32xf32>, vector<32x32xf32>, vector<8x32xf32> -> vector<8x32xf32>
      %c0_42 = arith.constant 0 : index
      %c0_43 = arith.constant 0 : index
      %61 = vector.load %arg12[%c0_42, %c0_43] : memref<1x32xf32, #tpu.memory_space<vmem>>, vector<1x32xf32>
      %62 = vector.broadcast %61 : vector<1x32xf32> to vector<8x32xf32>
      %63 = arith.addf %60, %62 : vector<8x32xf32>
      %c0_44 = arith.constant 0 : index
      %64 = arith.index_cast %1 : i32 to index
      %c0_45 = arith.constant 0 : index
      %65 = vector.load %arg4[%c0_44, %64, %c0_45] : memref<1x8x32xf32, #tpu.memory_space<vmem>>, vector<1x8x32xf32>
      %66 = vector.shape_cast %65 : vector<1x8x32xf32> to vector<8x32xf32>
      %67 = arith.addf %66, %63 : vector<8x32xf32>
      %c0_46 = arith.constant 0 : index
      %c0_47 = arith.constant 0 : index
      %68 = vector.load %arg13[%c0_46, %c0_47] : memref<1x32xf32, #tpu.memory_space<vmem>>, vector<1x32xf32>
      %c0_48 = arith.constant 0 : index
      %c0_49 = arith.constant 0 : index
      %69 = vector.load %arg14[%c0_48, %c0_49] : memref<1x32xf32, #tpu.memory_space<vmem>>, vector<1x32xf32>
      %cst_50 = arith.constant dense<0.000000e+00> : vector<8xf32>
      %70 = vector.multi_reduction <add>, %67, %cst_50 [1] : vector<8x32xf32> to vector<8xf32>
      %71 = vector.shape_cast %70 : vector<8xf32> to vector<8x1xf32>
      %cst_51 = arith.constant 3.200000e+01 : f32
      %72 = vector.broadcast %cst_51 : f32 to vector<8x1xf32>
      %73 = arith.divf %71, %72 : vector<8x1xf32>
      %74 = vector.broadcast %73 : vector<8x1xf32> to vector<8x32xf32>
      %75 = arith.subf %67, %74 : vector<8x32xf32>
      %76 = arith.mulf %75, %75 : vector<8x32xf32>
      %cst_52 = arith.constant dense<0.000000e+00> : vector<8xf32>
      %77 = vector.multi_reduction <add>, %76, %cst_52 [1] : vector<8x32xf32> to vector<8xf32>
      %78 = vector.shape_cast %77 : vector<8xf32> to vector<8x1xf32>
      %cst_53 = arith.constant 3.200000e+01 : f32
      %79 = vector.broadcast %cst_53 : f32 to vector<8x1xf32>
      %80 = arith.divf %78, %79 : vector<8x1xf32>
      %81 = vector.broadcast %73 : vector<8x1xf32> to vector<8x32xf32>
      %82 = arith.subf %67, %81 : vector<8x32xf32>
      %cst_54 = arith.constant 9.99999974E-6 : f32
      %83 = vector.broadcast %cst_54 : f32 to vector<8x1xf32>
      %84 = arith.addf %80, %83 : vector<8x1xf32>
      %85 = math.rsqrt %84 : vector<8x1xf32>
      %86 = vector.broadcast %85 : vector<8x1xf32> to vector<8x32xf32>
      %87 = arith.mulf %82, %86 : vector<8x32xf32>
      %88 = vector.broadcast %68 : vector<1x32xf32> to vector<8x32xf32>
      %89 = arith.mulf %87, %88 : vector<8x32xf32>
      %90 = vector.broadcast %69 : vector<1x32xf32> to vector<8x32xf32>
      %91 = arith.addf %89, %90 : vector<8x32xf32>
      %c0_55 = arith.constant 0 : index
      %c0_56 = arith.constant 0 : index
      %92 = vector.load %arg15[%c0_55, %c0_56] : memref<32x64xf32, #tpu.memory_space<vmem>>, vector<32x64xf32>
      %cst_57 = arith.constant dense<0.000000e+00> : vector<8x64xf32>
      %93 = tpu.matmul %91, %92, %cst_57 {dimension_numbers = #tpu.dot_dimension_numbers<[1], [0], [0], [1], [0, 0, 1, 1], [], []>} : vector<8x32xf32>, vector<32x64xf32>, vector<8x64xf32> -> vector<8x64xf32>
      %c0_58 = arith.constant 0 : index
      %c0_59 = arith.constant 0 : index
      %94 = vector.load %arg16[%c0_58, %c0_59] : memref<1x64xf32, #tpu.memory_space<vmem>>, vector<1x64xf32>
      %95 = vector.broadcast %94 : vector<1x64xf32> to vector<8x64xf32>
      %96 = arith.addf %93, %95 : vector<8x64xf32>
      %97 = arith.mulf %96, %96 : vector<8x64xf32>
      %98 = arith.mulf %97, %96 : vector<8x64xf32>
      %cst_60 = arith.constant 5.000000e-01 : f32
      %99 = vector.broadcast %cst_60 : f32 to vector<8x64xf32>
      %100 = arith.mulf %99, %96 : vector<8x64xf32>
      %cst_61 = arith.constant 4.471500e-02 : f32
      %101 = vector.broadcast %cst_61 : f32 to vector<8x64xf32>
      %102 = arith.mulf %101, %98 : vector<8x64xf32>
      %103 = arith.addf %96, %102 : vector<8x64xf32>
      %cst_62 = arith.constant 0.797884583 : f32
      %104 = vector.broadcast %cst_62 : f32 to vector<8x64xf32>
      %105 = arith.mulf %104, %103 : vector<8x64xf32>
      %106 = math.tanh %105 : vector<8x64xf32>
      %cst_63 = arith.constant 1.000000e+00 : f32
      %107 = vector.broadcast %cst_63 : f32 to vector<8x64xf32>
      %108 = arith.addf %107, %106 : vector<8x64xf32>
      %109 = arith.mulf %100, %108 : vector<8x64xf32>
      %c0_64 = arith.constant 0 : index
      %c0_65 = arith.constant 0 : index
      %110 = vector.load %arg17[%c0_64, %c0_65] : memref<64x32xf32, #tpu.memory_space<vmem>>, vector<64x32xf32>
      %cst_66 = arith.constant dense<0.000000e+00> : vector<8x32xf32>
      %111 = tpu.matmul %109, %110, %cst_66 {dimension_numbers = #tpu.dot_dimension_numbers<[1], [0], [0], [1], [0, 0, 1, 1], [], []>} : vector<8x64xf32>, vector<64x32xf32>, vector<8x32xf32> -> vector<8x32xf32>
      %c0_67 = arith.constant 0 : index
      %c0_68 = arith.constant 0 : index
      %112 = vector.load %arg18[%c0_67, %c0_68] : memref<1x32xf32, #tpu.memory_space<vmem>>, vector<1x32xf32>
      %113 = vector.broadcast %112 : vector<1x32xf32> to vector<8x32xf32>
      %114 = arith.addf %111, %113 : vector<8x32xf32>
      %115 = arith.addf %67, %114 : vector<8x32xf32>
      %c0_69 = arith.constant 0 : index
      %c0_70 = arith.constant 0 : index
      %c0_71 = arith.constant 0 : index
      %116 = vector.load %arg19[%c0_69, %c0_70, %c0_71] : memref<1x8x32xf32, #tpu.memory_space<vmem>>, vector<1x8x32xf32>
      %117 = vector.shape_cast %116 : vector<1x8x32xf32> to vector<8x32xf32>
      %118 = vector.shape_cast %115 : vector<8x32xf32> to vector<1x8x32xf32>
      tpu.vector_store %arg19[%c0_69, %c0_70, %c0_71], %118 {strides = array<i32>} : memref<1x8x32xf32, #tpu.memory_space<vmem>>, vector<1x8x32xf32>,
    } else {
    }
    return
  }
  func.func @transform_0(%arg0: i32, %arg1: i32, %arg2: i32) -> (i32, i32) {
    %c0_i32 = arith.constant 0 : i32
    %c0_i32_0 = arith.constant 0 : i32
    return %arg1, %c0_i32 : i32, i32
  }
  func.func @transform_1(%arg0: i32, %arg1: i32, %arg2: i32) -> (i32, i32, i32) {
    %c0_i32 = arith.constant 0 : i32
    %c0_i32_0 = arith.constant 0 : i32
    %c0_i32_1 = arith.constant 0 : i32
    return %arg0, %c0_i32, %c0_i32_0 : i32, i32, i32
  }
  func.func @transform_2(%arg0: i32, %arg1: i32, %arg2: i32) -> (i32, i32) {
    %c0_i32 = arith.constant 0 : i32
    %c0_i32_0 = arith.constant 0 : i32
    %c0_i32_1 = arith.constant 0 : i32
    return %c0_i32, %c0_i32_0 : i32, i32
  }
  func.func @transform_3(%arg0: i32, %arg1: i32, %arg2: i32) -> (i32, i32) {
    %c0_i32 = arith.constant 0 : i32
    %c0_i32_0 = arith.constant 0 : i32
    %c0_i32_1 = arith.constant 0 : i32
    return %c0_i32, %c0_i32_0 : i32, i32
  }
  func.func @transform_4(%arg0: i32, %arg1: i32, %arg2: i32) -> (i32, i32, i32) {
    %c0_i32 = arith.constant 0 : i32
    %c0_i32_0 = arith.constant 0 : i32
    %c0_i32_1 = arith.constant 0 : i32
    return %arg2, %c0_i32, %c0_i32_0 : i32, i32, i32
  }
  func.func @transform_5(%arg0: i32, %arg1: i32, %arg2: i32) -> (i32, i32, i32) {
    %c0_i32 = arith.constant 0 : i32
    %c0_i32_0 = arith.constant 0 : i32
    %c0_i32_1 = arith.constant 0 : i32
    return %arg2, %c0_i32, %c0_i32_0 : i32, i32, i32
  }
  func.func @transform_6(%arg0: i32, %arg1: i32, %arg2: i32) -> (i32, i32, i32) {
    %c0_i32 = arith.constant 0 : i32
    %c0_i32_0 = arith.constant 0 : i32
    %c0_i32_1 = arith.constant 0 : i32
    return %arg2, %c0_i32, %c0_i32_0 : i32, i32, i32
  }
  func.func @transform_7(%arg0: i32, %arg1: i32, %arg2: i32) -> (i32, i32, i32) {
    %c0_i32 = arith.constant 0 : i32
    %c0_i32_0 = arith.constant 0 : i32
    %c0_i32_1 = arith.constant 0 : i32
    return %arg2, %c0_i32, %c0_i32_0 : i32, i32, i32
  }
  func.func @transform_8(%arg0: i32, %arg1: i32, %arg2: i32) -> (i32, i32) {
    %c0_i32 = arith.constant 0 : i32
    %c0_i32_0 = arith.constant 0 : i32
    %c0_i32_1 = arith.constant 0 : i32
    return %c0_i32, %c0_i32_0 : i32, i32
  }
  func.func @transform_9(%arg0: i32, %arg1: i32, %arg2: i32) -> (i32, i32) {
    %c0_i32 = arith.constant 0 : i32
    %c0_i32_0 = arith.constant 0 : i32
    %c0_i32_1 = arith.constant 0 : i32
    return %c0_i32, %c0_i32_0 : i32, i32
  }
  func.func @transform_10(%arg0: i32, %arg1: i32, %arg2: i32) -> (i32, i32) {
    %c0_i32 = arith.constant 0 : i32
    %c0_i32_0 = arith.constant 0 : i32
    %c0_i32_1 = arith.constant 0 : i32
    return %c0_i32, %c0_i32_0 : i32, i32
  }
  func.func @transform_11(%arg0: i32, %arg1: i32, %arg2: i32) -> (i32, i32) {
    %c0_i32 = arith.constant 0 : i32
    %c0_i32_0 = arith.constant 0 : i32
    %c0_i32_1 = arith.constant 0 : i32
    return %c0_i32, %c0_i32_0 : i32, i32
  }
  func.func @transform_12(%arg0: i32, %arg1: i32, %arg2: i32) -> (i32, i32) {
    %c0_i32 = arith.constant 0 : i32
    %c0_i32_0 = arith.constant 0 : i32
    %c0_i32_1 = arith.constant 0 : i32
    return %c0_i32, %c0_i32_0 : i32, i32
  }
  func.func @transform_13(%arg0: i32, %arg1: i32, %arg2: i32) -> (i32, i32) {
    %c0_i32 = arith.constant 0 : i32
    %c0_i32_0 = arith.constant 0 : i32
    %c0_i32_1 = arith.constant 0 : i32
    return %c0_i32, %c0_i32_0 : i32, i32
  }
  func.func @transform_14(%arg0: i32, %arg1: i32, %arg2: i32) -> (i32, i32) {
    %c0_i32 = arith.constant 0 : i32
    %c0_i32_0 = arith.constant 0 : i32
    %c0_i32_1 = arith.constant 0 : i32
    return %c0_i32, %c0_i32_0 : i32, i32
  }
  func.func @transform_15(%arg0: i32, %arg1: i32, %arg2: i32) -> (i32, i32) {
    %c0_i32 = arith.constant 0 : i32
    %c0_i32_0 = arith.constant 0 : i32
    %c0_i32_1 = arith.constant 0 : i32
    return %c0_i32, %c0_i32_0 : i32, i32
  }
  func.func @transform_16(%arg0: i32, %arg1: i32, %arg2: i32) -> (i32, i32, i32) {
    %c0_i32 = arith.constant 0 : i32
    %c0_i32_0 = arith.constant 0 : i32
    return %arg0, %arg1, %c0_i32 : i32, i32, i32
  }
  func.func @transform_17(%arg0: i32, %arg1: i32, %arg2: i32) -> (i32, i32, i32, i32) {
    %c0_i32 = arith.constant 0 : i32
    %c0_i32_0 = arith.constant 0 : i32
    return %arg0, %arg2, %arg1, %c0_i32 : i32, i32, i32, i32
  }
}

</mosaic_0001>

<llo_original>
// kernel: tpu_custom_call.1
$region0: #{tpu_custom_call.1}
  #allocation0 [shape = 'u32[]', space=smem, size = 0x4, offset = 0x4, fixed_abs, tag = 'smem constant byte address 0x4 - core index']
  #allocation1 [shape = 'u32[144,128]{1,0:T(1,128)}', space=vmem, size = 0x12000, scoped, tag = 'internal scratch']
  #allocation2 [shape = 'f32[8,32]{1,0:T(8,128)}', space=vmem, size = 0x1000, scoped, tag = 'scratch operand']
  #allocation3 [shape = 'f32[4,8,8]{2,1,0:T(8,128)}', space=vmem, size = 0x4000, scoped, tag = 'scratch operand']
  %s0 = inlined_call_operand.vmem [shape: f32[8,8], index: 0, kind: input, shape index: {}]
  %s1 = inlined_call_operand.vmem [shape: f32[2,8,32], index: 1, kind: input, shape index: {}]
  %s2 = inlined_call_operand.vmem [shape: f32[1,32], index: 2, kind: input, shape index: {}]
  %s3 = inlined_call_operand.vmem [shape: f32[1,32], index: 3, kind: input, shape index: {}]
  %s4 = inlined_call_operand.vmem [shape: f32[4,32,8], index: 4, kind: input, shape index: {}]
  %s5 = inlined_call_operand.vmem [shape: f32[4,1,8], index: 5, kind: input, shape index: {}]
  %s6 = inlined_call_operand.vmem [shape: f32[4,32,16], index: 6, kind: input, shape index: {}]
  %s7 = inlined_call_operand.vmem [shape: f32[4,1,16], index: 7, kind: input, shape index: {}]
  %s8 = inlined_call_operand.vmem [shape: f32[32,32], index: 8, kind: input, shape index: {}]
  %s9 = inlined_call_operand.vmem [shape: f32[1,32], index: 9, kind: input, shape index: {}]
  %s10 = inlined_call_operand.vmem [shape: f32[1,32], index: 10, kind: input, shape index: {}]
  %s11 = inlined_call_operand.vmem [shape: f32[1,32], index: 11, kind: input, shape index: {}]
  %s12 = inlined_call_operand.vmem [shape: f32[32,64], index: 12, kind: input, shape index: {}]
  %s13 = inlined_call_operand.vmem [shape: f32[1,64], index: 13, kind: input, shape index: {}]
  %s14 = inlined_call_operand.vmem [shape: f32[64,32], index: 14, kind: input, shape index: {}]
  %s15 = inlined_call_operand.vmem [shape: f32[1,32], index: 15, kind: input, shape index: {}]
  %s16 = inlined_call_operand.hbm [shape: f32[2,8,32], index: 16, kind: output, shape index: {0}]
  %s17 = inlined_call_operand.hbm [shape: f32[2,4,8,8], index: 17, kind: output, shape index: {1}]
  %18 = xla_tuple %s16, %s17
  %s19 = sld [smem:[#allocation0]]
  $region113: #{tpu_custom_call.1} parent=0
    _
  %s21 = ssub.s32 1, %s19
  %s22 = scalar_select 0, %s21, %s19
  $region1: #{tpu_custom_call.1} parent=0
    #allocation4 [shape = 'u8[8192]{0}', space=vmem, size = 0x2000, scoped, tag = 'output window, operand 0']
    #allocation5 [shape = 's32[2]{0}', space=sflag, size = 0x8, scoped, tag = 'scoped memory for tpu_custom_call.1']
    #allocation6 [shape = 'u8[8192]{0}', space=vmem, size = 0x2000, scoped, tag = 'output window, operand 1']
    #allocation7 [shape = 's32[2]{0}', space=sflag, size = 0x8, scoped, tag = 'scoped memory for tpu_custom_call.1']
    %23 = vsyncpa [#allocation5], 0
    %s24 = scalar_lea.sflag [#allocation5], 1
    %25 = vsyncpa %s24, 0
    %26 = vsyncpa [#allocation7], 0
    %s27 = scalar_lea.sflag [#allocation7], 1
    %28 = vsyncpa %s27, 0
    loop: start=0, step=1, limit=10
    $region2: #{tpu_custom_call.1} parent=1 // loop_pre_header
      _
    $region3: #{tpu_custom_call.1} parent=1 // loop_header
      %s30 = sphi 0, %s34
      %p31 = scmp.ge.s32.totalorder %s30, 10
      %s37 = sphi 0, %s56
      %s38 = sphi 0, %s52
      %s39 = sphi 0, %s48
      %s40 = sphi 0, %s37
      %s41 = sphi 0, %s38
      %s42 = sphi 0, %s39
      %s43 = sphi 0, %s40
      %s44 = sphi 0, %s41
      %s45 = sphi 0, %s42
      %s59 = sphi 0, %s61
      %s62 = sphi 0, %s59
      %s63 = sphi 0, %s62
      %s79 = sphi 0, %s63
      %s85 = sphi 0, %s87
      %s88 = sphi 0, %s85
      %s89 = sphi 0, %s88
      %s105 = sphi 0, %s89
      %s109 = sphi 0, %s109
      %s111 = sphi 0, %s109
      %s112 = sphi 0, %s111
      %s126 = sphi 0, %s112
      %s130 = sphi 0, %s130
      %s132 = sphi 0, %s130
      %s133 = sphi 0, %s132
      %s147 = sphi 0, %s133
      %s153 = sphi 0, %s155
      %s156 = sphi 0, %s153
      %s157 = sphi 0, %s156
      %s173 = sphi 0, %s157
      %s179 = sphi 0, %s181
      %s182 = sphi 0, %s179
      %s183 = sphi 0, %s182
      %s199 = sphi 0, %s183
      %s205 = sphi 0, %s207
      %s208 = sphi 0, %s205
      %s209 = sphi 0, %s208
      %s225 = sphi 0, %s209
      %s231 = sphi 0, %s233
      %s234 = sphi 0, %s231
      %s235 = sphi 0, %s234
      %s251 = sphi 0, %s235
      %s255 = sphi 0, %s255
      %s257 = sphi 0, %s255
      %s258 = sphi 0, %s257
      %s272 = sphi 0, %s258
      %s276 = sphi 0, %s276
      %s278 = sphi 0, %s276
      %s279 = sphi 0, %s278
      %s293 = sphi 0, %s279
      %s297 = sphi 0, %s297
      %s299 = sphi 0, %s297
      %s300 = sphi 0, %s299
      %s314 = sphi 0, %s300
      %s318 = sphi 0, %s318
      %s320 = sphi 0, %s318
      %s321 = sphi 0, %s320
      %s335 = sphi 0, %s321
      %s339 = sphi 0, %s339
      %s341 = sphi 0, %s339
      %s342 = sphi 0, %s341
      %s356 = sphi 0, %s342
      %s360 = sphi 0, %s360
      %s362 = sphi 0, %s360
      %s363 = sphi 0, %s362
      %s377 = sphi 0, %s363
      %s381 = sphi 0, %s381
      %s383 = sphi 0, %s381
      %s384 = sphi 0, %s383
      %s398 = sphi 0, %s384
      %s402 = sphi 0, %s402
      %s404 = sphi 0, %s402
      %s405 = sphi 0, %s404
      %s419 = sphi 0, %s405
      %s427 = sphi 0, %s429
      %s430 = sphi 0, %s427
      %s431 = sphi 0, %s430
      %s447 = sphi 0, %s431
      %s457 = sphi 0, %s459
      %s460 = sphi 0, %s457
      %s461 = sphi 0, %s460
      %s477 = sphi 0, %s461
    $region4: #{tpu_custom_call.1} parent=1 // loop_header_branch
      %33 = sbr.rel (%p31) target = $region8
    $region5: #{tpu_custom_call.1} parent=1 // loop_body
      %s35 = ssub.s32 %s30, 1
      %s36 = ssub.s32 %s30, 2
      %s46 = sadd.s32 1, %s39
      %p47 = scmp.ge.s32.totalorder %s46, 4
      %s48 = scalar_select %p47, 0, %s46
      %s49 = sadd.s32 1, %s38
      %s50 = scalar_select %p47, %s49, %s38
      %p51 = scmp.ge.s32.totalorder %s50, 1
      %s52 = scalar_select %p51, 0, %s50
      %s53 = sadd.s32 1, %s37
      %s54 = scalar_select %p51, %s53, %s37
      %p55 = scmp.ge.s32.totalorder %s54, 2
      %s56 = scalar_select %p55, 0, %s54
      %s57 = ssub.s32 %s38, %s52
      %p58 = scmp.eq.s32.totalorder %s57, 0
      %s60 = sadd.s32 %s59, 1
      %s61 = scalar_select %p58, %s59, %s60
      %p64 = pneg %p58
      %p65 = scmp.eq.s32.totalorder %s30, 7
      %p66 = por %p64, %p65
      %p67 = scmp.ne.s32.totalorder %s59, %s62
      %p68 = scmp.eq.s32.totalorder %s30, 0
      %p69 = por %p67, %p68
      %p70 = scmp.ne.s32.totalorder %s59, %s62
      %p71 = scmp.eq.s32.totalorder %s35, 7
      %p72 = por %p70, %p71
      %p73 = scmp.ne.s32.totalorder %s62, %s63
      %p74 = scmp.eq.s32.totalorder %s35, 0
      %p75 = por %p73, %p74
      %p76 = scmp.ne.s32.totalorder %s62, %s63
      %p77 = scmp.eq.s32.totalorder %s36, 7
      %p78 = por %p76, %p77
      %p80 = scmp.ne.s32.totalorder %s63, %s79
      %p81 = scmp.eq.s32.totalorder %s36, 0
      %p82 = por %p80, %p81
      %s83 = ssub.s32 %s37, %s56
      %p84 = scmp.eq.s32.totalorder %s83, 0
      %s86 = sadd.s32 %s85, 1
      %s87 = scalar_select %p84, %s85, %s86
      %p90 = pneg %p84
      %p91 = scmp.eq.s32.totalorder %s30, 7
      %p92 = por %p90, %p91
      %p93 = scmp.ne.s32.totalorder %s85, %s88
      %p94 = scmp.eq.s32.totalorder %s30, 0
      %p95 = por %p93, %p94
      %p96 = scmp.ne.s32.totalorder %s85, %s88
      %p97 = scmp.eq.s32.totalorder %s35, 7
      %p98 = por %p96, %p97
      %p99 = scmp.ne.s32.totalorder %s88, %s89
      %p100 = scmp.eq.s32.totalorder %s35, 0
      %p101 = por %p99, %p100
      %p102 = scmp.ne.s32.totalorder %s88, %s89
      %p103 = scmp.eq.s32.totalorder %s36, 7
      %p104 = por %p102, %p103
      %p106 = scmp.ne.s32.totalorder %s89, %s105
      %p107 = scmp.eq.s32.totalorder %s36, 0
      %p108 = por %p106, %p107
      %s110 = sadd.s32 %s109, 1
      %p113 = scmp.eq.s32.totalorder %s30, 7
      %p114 = scmp.ne.s32.totalorder %s109, %s111
      %p115 = scmp.eq.s32.totalorder %s30, 0
      %p116 = por %p114, %p115
      %p117 = scmp.ne.s32.totalorder %s109, %s111
      %p118 = scmp.eq.s32.totalorder %s35, 7
      %p119 = por %p117, %p118
      %p120 = scmp.ne.s32.totalorder %s111, %s112
      %p121 = scmp.eq.s32.totalorder %s35, 0
      %p122 = por %p120, %p121
      %p123 = scmp.ne.s32.totalorder %s111, %s112
      %p124 = scmp.eq.s32.totalorder %s36, 7
      %p125 = por %p123, %p124
      %p127 = scmp.ne.s32.totalorder %s112, %s126
      %p128 = scmp.eq.s32.totalorder %s36, 0
      %p129 = por %p127, %p128
      %s131 = sadd.s32 %s130, 1
      %p134 = scmp.eq.s32.totalorder %s30, 7
      %p135 = scmp.ne.s32.totalorder %s130, %s132
      %p136 = scmp.eq.s32.totalorder %s30, 0
      %p137 = por %p135, %p136
      %p138 = scmp.ne.s32.totalorder %s130, %s132
      %p139 = scmp.eq.s32.totalorder %s35, 7
      %p140 = por %p138, %p139
      %p141 = scmp.ne.s32.totalorder %s132, %s133
      %p142 = scmp.eq.s32.totalorder %s35, 0
      %p143 = por %p141, %p142
      %p144 = scmp.ne.s32.totalorder %s132, %s133
      %p145 = scmp.eq.s32.totalorder %s36, 7
      %p146 = por %p144, %p145
      %p148 = scmp.ne.s32.totalorder %s133, %s147
      %p149 = scmp.eq.s32.totalorder %s36, 0
      %p150 = por %p148, %p149
      %s151 = ssub.s32 %s39, %s48
      %p152 = scmp.eq.s32.totalorder %s151, 0
      %s154 = sadd.s32 %s153, 1
      %s155 = scalar_select %p152, %s153, %s154
      %p158 = pneg %p152
      %p159 = scmp.eq.s32.totalorder %s30, 7
      %p160 = por %p158, %p159
      %p161 = scmp.ne.s32.totalorder %s153, %s156
      %p162 = scmp.eq.s32.totalorder %s30, 0
      %p163 = por %p161, %p162
      %p164 = scmp.ne.s32.totalorder %s153, %s156
      %p165 = scmp.eq.s32.totalorder %s35, 7
      %p166 = por %p164, %p165
      %p167 = scmp.ne.s32.totalorder %s156, %s157
      %p168 = scmp.eq.s32.totalorder %s35, 0
      %p169 = por %p167, %p168
      %p170 = scmp.ne.s32.totalorder %s156, %s157
      %p171 = scmp.eq.s32.totalorder %s36, 7
      %p172 = por %p170, %p171
      %p174 = scmp.ne.s32.totalorder %s157, %s173
      %p175 = scmp.eq.s32.totalorder %s36, 0
      %p176 = por %p174, %p175
      %s177 = ssub.s32 %s39, %s48
      %p178 = scmp.eq.s32.totalorder %s177, 0
      %s180 = sadd.s32 %s179, 1
      %s181 = scalar_select %p178, %s179, %s180
      %p184 = pneg %p178
      %p185 = scmp.eq.s32.totalorder %s30, 7
      %p186 = por %p184, %p185
      %p187 = scmp.ne.s32.totalorder %s179, %s182
      %p188 = scmp.eq.s32.totalorder %s30, 0
      %p189 = por %p187, %p188
      %p190 = scmp.ne.s32.totalorder %s179, %s182
      %p191 = scmp.eq.s32.totalorder %s35, 7
      %p192 = por %p190, %p191
      %p193 = scmp.ne.s32.totalorder %s182, %s183
      %p194 = scmp.eq.s32.totalorder %s35, 0
      %p195 = por %p193, %p194
      %p196 = scmp.ne.s32.totalorder %s182, %s183
      %p197 = scmp.eq.s32.totalorder %s36, 7
      %p198 = por %p196, %p197
      %p200 = scmp.ne.s32.totalorder %s183, %s199
      %p201 = scmp.eq.s32.totalorder %s36, 0
      %p202 = por %p200, %p201
      %s203 = ssub.s32 %s39, %s48
      %p204 = scmp.eq.s32.totalorder %s203, 0
      %s206 = sadd.s32 %s205, 1
      %s207 = scalar_select %p204, %s205, %s206
      %p210 = pneg %p204
      %p211 = scmp.eq.s32.totalorder %s30, 7
      %p212 = por %p210, %p211
      %p213 = scmp.ne.s32.totalorder %s205, %s208
      %p214 = scmp.eq.s32.totalorder %s30, 0
      %p215 = por %p213, %p214
      %p216 = scmp.ne.s32.totalorder %s205, %s208
      %p217 = scmp.eq.s32.totalorder %s35, 7
      %p218 = por %p216, %p217
      %p219 = scmp.ne.s32.totalorder %s208, %s209
      %p220 = scmp.eq.s32.totalorder %s35, 0
      %p221 = por %p219, %p220
      %p222 = scmp.ne.s32.totalorder %s208, %s209
      %p223 = scmp.eq.s32.totalorder %s36, 7
      %p224 = por %p222, %p223
      %p226 = scmp.ne.s32.totalorder %s209, %s225
      %p227 = scmp.eq.s32.totalorder %s36, 0
      %p228 = por %p226, %p227
      %s229 = ssub.s32 %s39, %s48
      %p230 = scmp.eq.s32.totalorder %s229, 0
      %s232 = sadd.s32 %s231, 1
      %s233 = scalar_select %p230, %s231, %s232
      %p236 = pneg %p230
      %p237 = scmp.eq.s32.totalorder %s30, 7
      %p238 = por %p236, %p237
      %p239 = scmp.ne.s32.totalorder %s231, %s234
      %p240 = scmp.eq.s32.totalorder %s30, 0
      %p241 = por %p239, %p240
      %p242 = scmp.ne.s32.totalorder %s231, %s234
      %p243 = scmp.eq.s32.totalorder %s35, 7
      %p244 = por %p242, %p243
      %p245 = scmp.ne.s32.totalorder %s234, %s235
      %p246 = scmp.eq.s32.totalorder %s35, 0
      %p247 = por %p245, %p246
      %p248 = scmp.ne.s32.totalorder %s234, %s235
      %p249 = scmp.eq.s32.totalorder %s36, 7
      %p250 = por %p248, %p249
      %p252 = scmp.ne.s32.totalorder %s235, %s251
      %p253 = scmp.eq.s32.totalorder %s36, 0
      %p254 = por %p252, %p253
      %s256 = sadd.s32 %s255, 1
      %p259 = scmp.eq.s32.totalorder %s30, 7
      %p260 = scmp.ne.s32.totalorder %s255, %s257
      %p261 = scmp.eq.s32.totalorder %s30, 0
      %p262 = por %p260, %p261
      %p263 = scmp.ne.s32.totalorder %s255, %s257
      %p264 = scmp.eq.s32.totalorder %s35, 7
      %p265 = por %p263, %p264
      %p266 = scmp.ne.s32.totalorder %s257, %s258
      %p267 = scmp.eq.s32.totalorder %s35, 0
      %p268 = por %p266, %p267
      %p269 = scmp.ne.s32.totalorder %s257, %s258
      %p270 = scmp.eq.s32.totalorder %s36, 7
      %p271 = por %p269, %p270
      %p273 = scmp.ne.s32.totalorder %s258, %s272
      %p274 = scmp.eq.s32.totalorder %s36, 0
      %p275 = por %p273, %p274
      %s277 = sadd.s32 %s276, 1
      %p280 = scmp.eq.s32.totalorder %s30, 7
      %p281 = scmp.ne.s32.totalorder %s276, %s278
      %p282 = scmp.eq.s32.totalorder %s30, 0
      %p283 = por %p281, %p282
      %p284 = scmp.ne.s32.totalorder %s276, %s278
      %p285 = scmp.eq.s32.totalorder %s35, 7
      %p286 = por %p284, %p285
      %p287 = scmp.ne.s32.totalorder %s278, %s279
      %p288 = scmp.eq.s32.totalorder %s35, 0
      %p289 = por %p287, %p288
      %p290 = scmp.ne.s32.totalorder %s278, %s279
      %p291 = scmp.eq.s32.totalorder %s36, 7
      %p292 = por %p290, %p291
      %p294 = scmp.ne.s32.totalorder %s279, %s293
      %p295 = scmp.eq.s32.totalorder %s36, 0
      %p296 = por %p294, %p295
      %s298 = sadd.s32 %s297, 1
      %p301 = scmp.eq.s32.totalorder %s30, 7
      %p302 = scmp.ne.s32.totalorder %s297, %s299
      %p303 = scmp.eq.s32.totalorder %s30, 0
      %p304 = por %p302, %p303
      %p305 = scmp.ne.s32.totalorder %s297, %s299
      %p306 = scmp.eq.s32.totalorder %s35, 7
      %p307 = por %p305, %p306
      %p308 = scmp.ne.s32.totalorder %s299, %s300
      %p309 = scmp.eq.s32.totalorder %s35, 0
      %p310 = por %p308, %p309
      %p311 = scmp.ne.s32.totalorder %s299, %s300
      %p312 = scmp.eq.s32.totalorder %s36, 7
      %p313 = por %p311, %p312
      %p315 = scmp.ne.s32.totalorder %s300, %s314
      %p316 = scmp.eq.s32.totalorder %s36, 0
      %p317 = por %p315, %p316
      %s319 = sadd.s32 %s318, 1
      %p322 = scmp.eq.s32.totalorder %s30, 7
      %p323 = scmp.ne.s32.totalorder %s318, %s320
      %p324 = scmp.eq.s32.totalorder %s30, 0
      %p325 = por %p323, %p324
      %p326 = scmp.ne.s32.totalorder %s318, %s320
      %p327 = scmp.eq.s32.totalorder %s35, 7
      %p328 = por %p326, %p327
      %p329 = scmp.ne.s32.totalorder %s320, %s321
      %p330 = scmp.eq.s32.totalorder %s35, 0
      %p331 = por %p329, %p330
      %p332 = scmp.ne.s32.totalorder %s320, %s321
      %p333 = scmp.eq.s32.totalorder %s36, 7
      %p334 = por %p332, %p333
      %p336 = scmp.ne.s32.totalorder %s321, %s335
      %p337 = scmp.eq.s32.totalorder %s36, 0
      %p338 = por %p336, %p337
      %s340 = sadd.s32 %s339, 1
      %p343 = scmp.eq.s32.totalorder %s30, 7
      %p344 = scmp.ne.s32.totalorder %s339, %s341
      %p345 = scmp.eq.s32.totalorder %s30, 0
      %p346 = por %p344, %p345
      %p347 = scmp.ne.s32.totalorder %s339, %s341
      %p348 = scmp.eq.s32.totalorder %s35, 7
      %p349 = por %p347, %p348
      %p350 = scmp.ne.s32.totalorder %s341, %s342
      %p351 = scmp.eq.s32.totalorder %s35, 0
      %p352 = por %p350, %p351
      %p353 = scmp.ne.s32.totalorder %s341, %s342
      %p354 = scmp.eq.s32.totalorder %s36, 7
      %p355 = por %p353, %p354
      %p357 = scmp.ne.s32.totalorder %s342, %s356
      %p358 = scmp.eq.s32.totalorder %s36, 0
      %p359 = por %p357, %p358
      %s361 = sadd.s32 %s360, 1
      %p364 = scmp.eq.s32.totalorder %s30, 7
      %p365 = scmp.ne.s32.totalorder %s360, %s362
      %p366 = scmp.eq.s32.totalorder %s30, 0
      %p367 = por %p365, %p366
      %p368 = scmp.ne.s32.totalorder %s360, %s362
      %p369 = scmp.eq.s32.totalorder %s35, 7
      %p370 = por %p368, %p369
      %p371 = scmp.ne.s32.totalorder %s362, %s363
      %p372 = scmp.eq.s32.totalorder %s35, 0
      %p373 = por %p371, %p372
      %p374 = scmp.ne.s32.totalorder %s362, %s363
      %p375 = scmp.eq.s32.totalorder %s36, 7
      %p376 = por %p374, %p375
      %p378 = scmp.ne.s32.totalorder %s363, %s377
      %p379 = scmp.eq.s32.totalorder %s36, 0
      %p380 = por %p378, %p379
      %s382 = sadd.s32 %s381, 1
      %p385 = scmp.eq.s32.totalorder %s30, 7
      %p386 = scmp.ne.s32.totalorder %s381, %s383
      %p387 = scmp.eq.s32.totalorder %s30, 0
      %p388 = por %p386, %p387
      %p389 = scmp.ne.s32.totalorder %s381, %s383
      %p390 = scmp.eq.s32.totalorder %s35, 7
      %p391 = por %p389, %p390
      %p392 = scmp.ne.s32.totalorder %s383, %s384
      %p393 = scmp.eq.s32.totalorder %s35, 0
      %p394 = por %p392, %p393
      %p395 = scmp.ne.s32.totalorder %s383, %s384
      %p396 = scmp.eq.s32.totalorder %s36, 7
      %p397 = por %p395, %p396
      %p399 = scmp.ne.s32.totalorder %s384, %s398
      %p400 = scmp.eq.s32.totalorder %s36, 0
      %p401 = por %p399, %p400
      %s403 = sadd.s32 %s402, 1
      %p406 = scmp.eq.s32.totalorder %s30, 7
      %p407 = scmp.ne.s32.totalorder %s402, %s404
      %p408 = scmp.eq.s32.totalorder %s30, 0
      %p409 = por %p407, %p408
      %p410 = scmp.ne.s32.totalorder %s402, %s404
      %p411 = scmp.eq.s32.totalorder %s35, 7
      %p412 = por %p410, %p411
      %p413 = scmp.ne.s32.totalorder %s404, %s405
      %p414 = scmp.eq.s32.totalorder %s35, 0
      %p415 = por %p413, %p414
      %p416 = scmp.ne.s32.totalorder %s404, %s405
      %p417 = scmp.eq.s32.totalorder %s36, 7
      %p418 = por %p416, %p417
      %p420 = scmp.ne.s32.totalorder %s405, %s419
      %p421 = scmp.eq.s32.totalorder %s36, 0
      %p422 = por %p420, %p421
      %s423 = ssub.s32 %s37, %s56
      %s424 = ssub.s32 %s38, %s52
      %s425 = sor.u32 %s423, %s424
      %p426 = scmp.eq.s32.totalorder %s425, 0
      %s428 = sadd.s32 %s427, 1
      %s429 = scalar_select %p426, %s427, %s428
      %p432 = pneg %p426
      %p433 = scmp.eq.s32.totalorder %s30, 7
      %p434 = por %p432, %p433
      %p435 = scmp.ne.s32.totalorder %s427, %s430
      %p436 = scmp.eq.s32.totalorder %s30, 0
      %p437 = por %p435, %p436
      %p438 = scmp.ne.s32.totalorder %s427, %s430
      %p439 = scmp.eq.s32.totalorder %s35, 7
      %p440 = por %p438, %p439
      %p441 = scmp.ne.s32.totalorder %s430, %s431
      %p442 = scmp.eq.s32.totalorder %s35, 0
      %p443 = por %p441, %p442
      %p444 = scmp.ne.s32.totalorder %s430, %s431
      %p445 = scmp.eq.s32.totalorder %s36, 7
      %p446 = por %p444, %p445
      %p448 = scmp.ne.s32.totalorder %s431, %s447
      %p449 = scmp.eq.s32.totalorder %s36, 0
      %p450 = por %p448, %p449
      %s451 = ssub.s32 %s37, %s56
      %s452 = ssub.s32 %s39, %s48
      %s453 = sor.u32 %s451, %s452
      %s454 = ssub.s32 %s38, %s52
      %s455 = sor.u32 %s453, %s454
      %p456 = scmp.eq.s32.totalorder %s455, 0
      %s458 = sadd.s32 %s457, 1
      %s459 = scalar_select %p456, %s457, %s458
      %p462 = pneg %p456
      %p463 = scmp.eq.s32.totalorder %s30, 7
      %p464 = por %p462, %p463
      %p465 = scmp.ne.s32.totalorder %s457, %s460
      %p466 = scmp.eq.s32.totalorder %s30, 0
      %p467 = por %p465, %p466
      %p468 = scmp.ne.s32.totalorder %s457, %s460
      %p469 = scmp.eq.s32.totalorder %s35, 7
      %p470 = por %p468, %p469
      %p471 = scmp.ne.s32.totalorder %s460, %s461
      %p472 = scmp.eq.s32.totalorder %s35, 0
      %p473 = por %p471, %p472
      %p474 = scmp.ne.s32.totalorder %s460, %s461
      %p475 = scmp.eq.s32.totalorder %s36, 7
      %p476 = por %p474, %p475
      %p478 = scmp.ne.s32.totalorder %s461, %s477
      %p479 = scmp.eq.s32.totalorder %s36, 0
      %p480 = por %p478, %p479
      %p481 = scmp.le.s32.totalorder 1, %s30
      %p482 = scmp.lt.s32.totalorder %s30, 9
      %p483 = pnand %p481, %p482
      %p484 = pneg %p483
      // Predicated region
      $region9: #{tpu_custom_call.1} parent=5 // pred_check
        _
      $region10: #{tpu_custom_call.1} parent=5 // pred_check_branch
        %486 = sbr.rel (%p483) target = $region12
      $region11: #{tpu_custom_call.1} parent=5 // pred_region
        %s487 = ssub.s32 %s30, 1
        // Predicated region
        $region13: #{tpu_custom_call.1} parent=11 // pred_check
          %p488 = pneg %p75
        $region14: #{tpu_custom_call.1} parent=11 // pred_check_branch
          %490 = sbr.rel (%p488) target = $region16
        $region15: #{tpu_custom_call.1} parent=11 // pred_region
          %p491 = scmp.lt.s32.totalorder %s41, 0
          %s492 = scalar_select %p491, %s41, 0
          %s493 = smul.addr %s492, 8
          %s494 = scalar_lea.vmem %s0, %s493
        $region16: #{tpu_custom_call.1} parent=11 // pred_fallthru
          _
        // Predicated region
        $region17: #{tpu_custom_call.1} parent=11 // pred_check
          %p495 = pneg %p122
        $region18: #{tpu_custom_call.1} parent=11 // pred_check_branch
          %497 = sbr.rel (%p495) target = $region20
        $region19: #{tpu_custom_call.1} parent=11 // pred_region
          _
        $region20: #{tpu_custom_call.1} parent=11 // pred_fallthru
          _
        // Predicated region
        $region21: #{tpu_custom_call.1} parent=11 // pred_check
          %p498 = pneg %p143
        $region22: #{tpu_custom_call.1} parent=11 // pred_check_branch
          %500 = sbr.rel (%p498) target = $region24
        $region23: #{tpu_custom_call.1} parent=11 // pred_region
          _
        $region24: #{tpu_custom_call.1} parent=11 // pred_fallthru
          _
        // Predicated region
        $region25: #{tpu_custom_call.1} parent=11 // pred_check
          %p501 = pneg %p268
        $region26: #{tpu_custom_call.1} parent=11 // pred_check_branch
          %503 = sbr.rel (%p501) target = $region28
        $region27: #{tpu_custom_call.1} parent=11 // pred_region
          _
        $region28: #{tpu_custom_call.1} parent=11 // pred_fallthru
          _
        // Predicated region
        $region29: #{tpu_custom_call.1} parent=11 // pred_check
          %p504 = pneg %p289
        $region30: #{tpu_custom_call.1} parent=11 // pred_check_branch
          %506 = sbr.rel (%p504) target = $region32
        $region31: #{tpu_custom_call.1} parent=11 // pred_region
          _
        $region32: #{tpu_custom_call.1} parent=11 // pred_fallthru
          _
        // Predicated region
        $region33: #{tpu_custom_call.1} parent=11 // pred_check
          %p507 = pneg %p310
        $region34: #{tpu_custom_call.1} parent=11 // pred_check_branch
          %509 = sbr.rel (%p507) target = $region36
        $region35: #{tpu_custom_call.1} parent=11 // pred_region
          _
        $region36: #{tpu_custom_call.1} parent=11 // pred_fallthru
          _
        // Predicated region
        $region37: #{tpu_custom_call.1} parent=11 // pred_check
          %p510 = pneg %p331
        $region38: #{tpu_custom_call.1} parent=11 // pred_check_branch
          %512 = sbr.rel (%p510) target = $region40
        $region39: #{tpu_custom_call.1} parent=11 // pred_region
          _
        $region40: #{tpu_custom_call.1} parent=11 // pred_fallthru
          _
        // Predicated region
        $region41: #{tpu_custom_call.1} parent=11 // pred_check
          %p513 = pneg %p352
        $region42: #{tpu_custom_call.1} parent=11 // pred_check_branch
          %515 = sbr.rel (%p513) target = $region44
        $region43: #{tpu_custom_call.1} parent=11 // pred_region
          _
        $region44: #{tpu_custom_call.1} parent=11 // pred_fallthru
          _
        // Predicated region
        $region45: #{tpu_custom_call.1} parent=11 // pred_check
          %p516 = pneg %p373
        $region46: #{tpu_custom_call.1} parent=11 // pred_check_branch
          %518 = sbr.rel (%p516) target = $region48
        $region47: #{tpu_custom_call.1} parent=11 // pred_region
          _
        $region48: #{tpu_custom_call.1} parent=11 // pred_fallthru
          _
        // Predicated region
        $region49: #{tpu_custom_call.1} parent=11 // pred_check
          %p519 = pneg %p394
        $region50: #{tpu_custom_call.1} parent=11 // pred_check_branch
          %521 = sbr.rel (%p519) target = $region52
        $region51: #{tpu_custom_call.1} parent=11 // pred_region
          _
        $region52: #{tpu_custom_call.1} parent=11 // pred_fallthru
          _
        // Predicated region
        $region53: #{tpu_custom_call.1} parent=11 // pred_check
          %p522 = pneg %p415
        $region54: #{tpu_custom_call.1} parent=11 // pred_check_branch
          %524 = sbr.rel (%p522) target = $region56
        $region55: #{tpu_custom_call.1} parent=11 // pred_region
          _
        $region56: #{tpu_custom_call.1} parent=11 // pred_fallthru
          _
      $region12: #{tpu_custom_call.1} parent=5 // pred_fallthru
        _
      %p525 = scmp.lt.s32.totalorder %s30, 8
      // Predicated region
      $region57: #{tpu_custom_call.1} parent=5 // pred_check
        %p526 = pneg %p525
      $region58: #{tpu_custom_call.1} parent=5 // pred_check_branch
        %528 = sbr.rel (%p526) target = $region60
      $region59: #{tpu_custom_call.1} parent=5 // pred_region
        // Predicated region
        $region61: #{tpu_custom_call.1} parent=59 // pred_check
          %p529 = pneg %p95
        $region62: #{tpu_custom_call.1} parent=59 // pred_check_branch
          %531 = sbr.rel (%p529) target = $region64
        $region63: #{tpu_custom_call.1} parent=59 // pred_region
          %p532 = scmp.lt.s32.totalorder %s37, 1
          %s533 = scalar_select %p532, %s37, 1
          %s534 = smul.addr %s533, 8
          %s535 = scalar_lea.vmem %s1, %s534
        $region64: #{tpu_custom_call.1} parent=59 // pred_fallthru
          _
        // Predicated region
        $region65: #{tpu_custom_call.1} parent=59 // pred_check
          %p536 = pneg %p163
        $region66: #{tpu_custom_call.1} parent=59 // pred_check_branch
          %538 = sbr.rel (%p536) target = $region68
        $region67: #{tpu_custom_call.1} parent=59 // pred_region
          %p539 = scmp.lt.s32.totalorder %s39, 3
          %s540 = scalar_select %p539, %s39, 3
          %s541 = smul.addr %s540, 4
          %s542 = smul.addr %s541, 8
          %s543 = scalar_lea.vmem %s4, %s542
        $region68: #{tpu_custom_call.1} parent=59 // pred_fallthru
          _
        // Predicated region
        $region69: #{tpu_custom_call.1} parent=59 // pred_check
          %p544 = pneg %p189
        $region70: #{tpu_custom_call.1} parent=59 // pred_check_branch
          %546 = sbr.rel (%p544) target = $region72
        $region71: #{tpu_custom_call.1} parent=59 // pred_region
          %p547 = scmp.lt.s32.totalorder %s39, 3
          %s548 = scalar_select %p547, %s39, 3
          %s549 = scalar_lea.vmem %s5, %s548
        $region72: #{tpu_custom_call.1} parent=59 // pred_fallthru
          _
        // Predicated region
        $region73: #{tpu_custom_call.1} parent=59 // pred_check
          %p550 = pneg %p215
        $region74: #{tpu_custom_call.1} parent=59 // pred_check_branch
          %552 = sbr.rel (%p550) target = $region76
        $region75: #{tpu_custom_call.1} parent=59 // pred_region
          %p553 = scmp.lt.s32.totalorder %s39, 3
          %s554 = scalar_select %p553, %s39, 3
          %s555 = smul.addr %s554, 4
          %s556 = smul.addr %s555, 8
          %s557 = scalar_lea.vmem %s6, %s556
        $region76: #{tpu_custom_call.1} parent=59 // pred_fallthru
          _
        // Predicated region
        $region77: #{tpu_custom_call.1} parent=59 // pred_check
          %p558 = pneg %p241
        $region78: #{tpu_custom_call.1} parent=59 // pred_check_branch
          %560 = sbr.rel (%p558) target = $region80
        $region79: #{tpu_custom_call.1} parent=59 // pred_region
          %p561 = scmp.lt.s32.totalorder %s39, 3
          %s562 = scalar_select %p561, %s39, 3
          %s563 = scalar_lea.vmem %s7, %s562
        $region80: #{tpu_custom_call.1} parent=59 // pred_fallthru
          _
      $region60: #{tpu_custom_call.1} parent=5 // pred_fallthru
        _
      %p564 = scmp.le.s32.totalorder 1, %s30
      %p565 = scmp.lt.s32.totalorder %s30, 9
      %p566 = pnand %p564, %p565
      %p567 = pneg %p566
      // Predicated region
      $region81: #{tpu_custom_call.1} parent=5 // pred_check
        _
      $region82: #{tpu_custom_call.1} parent=5 // pred_check_branch
        %569 = sbr.rel (%p566) target = $region84
      $region83: #{tpu_custom_call.1} parent=5 // pred_region
        %s570 = ssub.s32 %s30, 1
        %p571 = scmp.lt.s32.totalorder %s41, 0
        %s572 = scalar_select %p571, %s41, 0
        %s573 = smul.addr %s572, 8
        %s574 = scalar_lea.vmem %s0, %s573
        %p575 = pneg %p75
        %p576 = pneg %p72
        %p577 = scmp.lt.s32.totalorder %s40, 1
        %s578 = scalar_select %p577, %s40, 1
        %s579 = smul.addr %s578, 8
        %s580 = scalar_lea.vmem %s1, %s579
        %p581 = pneg %p101
        %p582 = pneg %p98
        %p583 = pneg %p122
        %p584 = pneg %p119
        %p585 = pneg %p143
        %p586 = pneg %p140
        %p587 = scmp.lt.s32.totalorder %s42, 3
        %s588 = scalar_select %p587, %s42, 3
        %s589 = smul.addr %s588, 4
        %s590 = smul.addr %s589, 8
        %s591 = scalar_lea.vmem %s4, %s590
        %p592 = pneg %p169
        %p593 = pneg %p166
        %p594 = scmp.lt.s32.totalorder %s42, 3
        %s595 = scalar_select %p594, %s42, 3
        %s596 = scalar_lea.vmem %s5, %s595
        %p597 = pneg %p195
        %p598 = pneg %p192
        %p599 = scmp.lt.s32.totalorder %s42, 3
        %s600 = scalar_select %p599, %s42, 3
        %s601 = smul.addr %s600, 4
        %s602 = smul.addr %s601, 8
        %s603 = scalar_lea.vmem %s6, %s602
        %p604 = pneg %p221
        %p605 = pneg %p218
        %p606 = scmp.lt.s32.totalorder %s42, 3
        %s607 = scalar_select %p606, %s42, 3
        %s608 = scalar_lea.vmem %s7, %s607
        %p609 = pneg %p247
        %p610 = pneg %p244
        %p611 = pneg %p268
        %p612 = pneg %p265
        %p613 = pneg %p289
        %p614 = pneg %p286
        %p615 = pneg %p310
        %p616 = pneg %p307
        %p617 = pneg %p331
        %p618 = pneg %p328
        %p619 = pneg %p352
        %p620 = pneg %p349
        %p621 = pneg %p373
        %p622 = pneg %p370
        %p623 = pneg %p394
        %p624 = pneg %p391
        %p625 = pneg %p415
        %p626 = pneg %p412
        %p627 = pneg %p443
        %p628 = pneg %p440
        %s629 = sand.u32 %s430, 1
        %s630 = scalar_lea.sflag [#allocation5], %s629
        %s631 = sand.u32 %s430, 1
        %s632 = smul.addr %s631, 8
        %s633 = scalar_lea.vmem [#allocation4], %s632
        %p634 = pneg %p473
        %p635 = pneg %p470
        %s636 = sand.u32 %s460, 1
        %s637 = scalar_lea.sflag [#allocation7], %s636
        %s638 = sand.u32 %s460, 1
        %s639 = smul.addr %s638, 8
        %s640 = scalar_lea.vmem [#allocation6], %s639
        %p641 = scmp.lt.s32.totalorder %s41, 0
        %s642 = scalar_select %p641, %s41, 0
        %s643 = smul.addr %s642, 8
        %s644 = scalar_lea.vmem %s0, %s643
        %p645 = scmp.lt.s32.totalorder %s40, 1
        %s646 = scalar_select %p645, %s40, 1
        %s647 = smul.addr %s646, 8
        %s648 = scalar_lea.vmem %s1, %s647
        %p649 = scmp.lt.s32.totalorder %s42, 3
        %s650 = scalar_select %p649, %s42, 3
        %s651 = smul.addr %s650, 4
        %s652 = smul.addr %s651, 8
        %s653 = scalar_lea.vmem %s4, %s652
        %p654 = scmp.lt.s32.totalorder %s42, 3
        %s655 = scalar_select %p654, %s42, 3
        %s656 = scalar_lea.vmem %s5, %s655
        %p657 = scmp.lt.s32.totalorder %s42, 3
        %s658 = scalar_select %p657, %s42, 3
        %s659 = smul.addr %s658, 4
        %s660 = smul.addr %s659, 8
        %s661 = scalar_lea.vmem %s6, %s660
        %p662 = scmp.lt.s32.totalorder %s42, 3
        %s663 = scalar_select %p662, %s42, 3
        %s664 = scalar_lea.vmem %s7, %s663
        %s665 = smul.u32 %s41, 8
        %p666 = scmp.eq.s32.totalorder %s42, 0
        // Predicated region
        $region85: #{tpu_custom_call.1} parent=83 // pred_check
          %p667 = pneg %p666
        $region86: #{tpu_custom_call.1} parent=83 // pred_check_branch
          %669 = sbr.rel (%p667) target = $region88
        $region87: #{tpu_custom_call.1} parent=83 // pred_region
          %v670 = vld [vmem:[%s648] sm:$0xff]
          %v671 = vld [vmem:[%s2] sm:$0x1]
          %v672 = vld [vmem:[%s3] sm:$0x1]
          %vm673 = vcmask 261120
          %v674 = vsel %vm673, %v670, 0.0
          %675 = vadd.xlane.f32.xlu0 %v674
          %v676 = vpop.xlane.xlu0 %675
          %v677 = vrcp.pop 32.0
          %v678 = vmul.f32 %v676, %v677
          %v679 = vsub.f32 %v670, %v678
          %v680 = vmul.f32 %v679, %v679
          %v681 = vsel %vm673, %v680, 0.0
          %682 = vadd.xlane.f32.xlu0 %v681
          %v683 = vpop.xlane.xlu0 %682
          %v684 = vmul.f32 %v683, %v677
          %v685 = vadd.f32 %v684, 1e-05
          %v686 = vrsqrt.pop %v685
          %v687 = vmul.f32 %v679, %v686
          %v689 = vlaneseq
          %v690 = vshrl.u32 %v689, 7
          %v691 = vsub.s32 0, %v690
          %v692 = vrot.slane %v671, %v691
          %v694 = vmul.f32 %v687, %v692
          %v696 = vlaneseq
          %v697 = vshrl.u32 %v696, 7
          %v698 = vsub.s32 0, %v697
          %v699 = vrot.slane %v672, %v698
          %v701 = vadd.f32 %v694, %v699
          %702 = vst.msk [vmem:[#allocation2] sm:$0xff] %vm673, %v701
        $region88: #{tpu_custom_call.1} parent=83 // pred_fallthru
          _
        %v703 = vld [vmem:[#allocation2] sm:$0xff]
        %s704 = scalar_lea.vmem [#allocation2], %s665
        %v705 = vld [vmem:[%s704] sm:$0xff]
        %v706 = vld [vmem:[%s661] sm:$0xff]
        %v707 = vld [vmem:[%s661 + $0x8] sm:$0xff]
        %v708 = vld [vmem:[%s661 + $0x10] sm:$0xff]
        %v709 = vld [vmem:[%s661 + $0x18] sm:$0xff]
        %v710 = vld [vmem:[%s664] sm:$0x1]
        %v712 = vlaneseq
        %v713 = vshrl.u32 %v712, 7
        %v714 = vsub.s32 0, %v713
        %v715 = vrot.slane %v710, %v714
        %vm717 = vcmask 261120
        %v719 = vsel %vm717, %v703, 0
        %721 = vmatprep.subr.mxu0 0.0
        %722 = vmatpush1.msra.mxu0 %v706
        %723 = vmatprep.subr.mxu0 0.0
        %724 = vmatpush1.msra.mxu0 %v707
        %725 = vmatprep.subr.mxu0 0.0
        %726 = vmatpush1.msra.mxu0 %v708
        %727 = vmatprep.subr.mxu0 0.0
        %728 = vmatpush1.msra.mxu0 %v709
        %729 = vmatprep.subr.mxu0 0.0
        %730 = vmatpush1.msra.mxu0 0.0
        %731 = vmatprep.subr.mxu0 0.0
        %732 = vmatpush1.msra.mxu0 0.0
        %733 = vmatprep.subr.mxu0 0.0
        %734 = vmatpush1.msra.mxu0 0.0
        %735 = vmatprep.subr.mxu0 0.0
        %736 = vmatpush1.msra.mxu0 0.0
        %737 = vmatprep.subr.mxu0 0.0
        %738 = vmatpush1.msra.mxu0 0.0
        %739 = vmatprep.subr.mxu0 0.0
        %740 = vmatpush1.msra.mxu0 0.0
        %741 = vmatprep.subr.mxu0 0.0
        %742 = vmatpush1.msra.mxu0 0.0
        %743 = vmatprep.subr.mxu0 0.0
        %744 = vmatpush1.msra.mxu0 0.0
        %745 = vmatprep.subr.mxu0 0.0
        %746 = vmatpush1.msra.mxu0 0.0
        %747 = vmatprep.subr.mxu0 0.0
        %748 = vmatpush1.msra.mxu0 0.0
        %749 = vmatprep.subr.mxu0 0.0
        %750 = vmatpush1.msra.mxu0 0.0
        %751 = vmatprep.subr.mxu0 0.0
        %752 = vmatpush1.msra.mxu0 0.0
        %753 = vmatprep.subr.mxu0 0.0
        %754 = vmatpush1.msra.mxu0 0.0
        %755 = vmatprep.subr.mxu0 0.0
        %756 = vmatpush1.msra.mxu0 0.0
        %757 = vmatprep.subr.mxu0 0.0
        %758 = vmatpush1.msra.mxu0 0.0
        %759 = vmatprep.subr.mxu0 0.0
        %760 = vmatpush1.msra.mxu0 0.0
        %761 = vmatprep.subr.mxu0 0.0
        %762 = vmatpush1.msra.mxu0 0.0
        %763 = vmatprep.subr.mxu0 0.0
        %764 = vmatpush1.msra.mxu0 0.0
        %765 = vmatprep.subr.mxu0 0.0
        %766 = vmatpush1.msra.mxu0 0.0
        %767 = vmatprep.subr.mxu0 0.0
        %768 = vmatpush1.msra.mxu0 0.0
        %769 = vmatprep.subr.mxu0 0.0
        %770 = vmatpush1.msra.mxu0 0.0
        %771 = vmatprep.subr.mxu0 0.0
        %772 = vmatpush1.msra.mxu0 0.0
        %773 = vmatprep.subr.mxu0 0.0
        %774 = vmatpush1.msra.mxu0 0.0
        %775 = vmatprep.subr.mxu0 0.0
        %776 = vmatpush1.msra.mxu0 0.0
        %777 = vmatprep.subr.mxu0 0.0
        %778 = vmatpush1.msra.mxu0 0.0
        %779 = vmatprep.subr.mxu0 0.0
        %780 = vmatpush1.msra.mxu0 0.0
        %781 = vmatprep.subr.mxu0 0.0
        %782 = vmatpush1.msra.mxu0 0.0
        %783 = vmatprep.subr.mxu0 0.0
        %784 = vmatpush1.msra.mxu0 0.0
        %785 = vmatprep.mubr.f32.mxu0 0.0
        %786 = vmatmul.mubr.f32.gmra.mrb[0].mxu0 %v719
        %v787 = vpop.f32.mrb[0].mxu0
        %v788 = vadd.f32 %v715, %v787
        %v789 = vpop.f32.mrb[0].mxu0
        %790 = vdwg.mxu0
        %v791 = vld [vmem:[%s653] sm:$0xff]
        %v792 = vld [vmem:[%s653 + $0x8] sm:$0xff]
        %v793 = vld [vmem:[%s653 + $0x10] sm:$0xff]
        %v794 = vld [vmem:[%s653 + $0x18] sm:$0xff]
        %v795 = vld [vmem:[%s656] sm:$0x1]
        %v797 = vlaneseq
        %v798 = vshrl.u32 %v797, 7
        %v799 = vsub.s32 0, %v798
        %v800 = vrot.slane %v795, %v799
        %v803 = vsel %vm717, %v705, 0
        %805 = vmatprep.subr.mxu0 0.0
        %806 = vmatpush1.msra.mxu0 %v791
        %807 = vmatprep.subr.mxu0 0.0
        %808 = vmatpush1.msra.mxu0 %v792
        %809 = vmatprep.subr.mxu0 0.0
        %810 = vmatpush1.msra.mxu0 %v793
        %811 = vmatprep.subr.mxu0 0.0
        %812 = vmatpush1.msra.mxu0 %v794
        %813 = vmatprep.subr.mxu0 0.0
        %814 = vmatpush1.msra.mxu0 0.0
        %815 = vmatprep.subr.mxu0 0.0
        %816 = vmatpush1.msra.mxu0 0.0
        %817 = vmatprep.subr.mxu0 0.0
        %818 = vmatpush1.msra.mxu0 0.0
        %819 = vmatprep.subr.mxu0 0.0
        %820 = vmatpush1.msra.mxu0 0.0
        %821 = vmatprep.subr.mxu0 0.0
        %822 = vmatpush1.msra.mxu0 0.0
        %823 = vmatprep.subr.mxu0 0.0
        %824 = vmatpush1.msra.mxu0 0.0
        %825 = vmatprep.subr.mxu0 0.0
        %826 = vmatpush1.msra.mxu0 0.0
        %827 = vmatprep.subr.mxu0 0.0
        %828 = vmatpush1.msra.mxu0 0.0
        %829 = vmatprep.subr.mxu0 0.0
        %830 = vmatpush1.msra.mxu0 0.0
        %831 = vmatprep.subr.mxu0 0.0
        %832 = vmatpush1.msra.mxu0 0.0
        %833 = vmatprep.subr.mxu0 0.0
        %834 = vmatpush1.msra.mxu0 0.0
        %835 = vmatprep.subr.mxu0 0.0
        %836 = vmatpush1.msra.mxu0 0.0
        %837 = vmatprep.subr.mxu0 0.0
        %838 = vmatpush1.msra.mxu0 0.0
        %839 = vmatprep.subr.mxu0 0.0
        %840 = vmatpush1.msra.mxu0 0.0
        %841 = vmatprep.subr.mxu0 0.0
        %842 = vmatpush1.msra.mxu0 0.0
        %843 = vmatprep.subr.mxu0 0.0
        %844 = vmatpush1.msra.mxu0 0.0
        %845 = vmatprep.subr.mxu0 0.0
        %846 = vmatpush1.msra.mxu0 0.0
        %847 = vmatprep.subr.mxu0 0.0
        %848 = vmatpush1.msra.mxu0 0.0
        %849 = vmatprep.subr.mxu0 0.0
        %850 = vmatpush1.msra.mxu0 0.0
        %851 = vmatprep.subr.mxu0 0.0
        %852 = vmatpush1.msra.mxu0 0.0
        %853 = vmatprep.subr.mxu0 0.0
        %854 = vmatpush1.msra.mxu0 0.0
        %855 = vmatprep.subr.mxu0 0.0
        %856 = vmatpush1.msra.mxu0 0.0
        %857 = vmatprep.subr.mxu0 0.0
        %858 = vmatpush1.msra.mxu0 0.0
        %859 = vmatprep.subr.mxu0 0.0
        %860 = vmatpush1.msra.mxu0 0.0
        %861 = vmatprep.subr.mxu0 0.0
        %862 = vmatpush1.msra.mxu0 0.0
        %863 = vmatprep.subr.mxu0 0.0
        %864 = vmatpush1.msra.mxu0 0.0
        %865 = vmatprep.subr.mxu0 0.0
        %866 = vmatpush1.msra.mxu0 0.0
        %867 = vmatprep.subr.mxu0 0.0
        %868 = vmatpush1.msra.mxu0 0.0
        %869 = vmatprep.mubr.f32.mxu0 0.0
        %870 = vmatmul.mubr.f32.gmra.mrb[0].mxu0 %v803
        %v871 = vpop.f32.mrb[0].mxu0
        %v872 = vadd.f32 %v800, %v871
        %v873 = vpop.f32.mrb[0].mxu0
        %874 = vdwg.mxu0
        %v875 = vmul.f32 %v872, 0.35355338
        %v876 = vld [vmem:[%s644] sm:$0xff]
        %vm877 = vcmask 64512
        %v879 = vsel %vm877, %v875, 0
        %v882 = vsel %vm877, %v788, 0
        %884 = vmatprep.subr.mxu0 0.0
        %885 = vmatpush1.xpose.msra.mxu0 %v882
        %886 = vmatprep.subr.mxu0 0.0
        %887 = vmatpush1.xpose.msra.mxu0 0.0
        %888 = vmatprep.subr.mxu0 0.0
        %889 = vmatpush1.xpose.msra.mxu0 0.0
        %890 = vmatprep.subr.mxu0 0.0
        %891 = vmatpush1.xpose.msra.mxu0 0.0
        %892 = vmatprep.subr.mxu0 0.0
        %893 = vmatpush1.xpose.msra.mxu0 0.0
        %894 = vmatprep.subr.mxu0 0.0
        %895 = vmatpush1.xpose.msra.mxu0 0.0
        %896 = vmatprep.subr.mxu0 0.0
        %897 = vmatpush1.xpose.msra.mxu0 0.0
        %898 = vmatprep.subr.mxu0 0.0
        %899 = vmatpush1.xpose.msra.mxu0 0.0
        %900 = vmatprep.subr.mxu0 0.0
        %901 = vmatpush1.xpose.msra.mxu0 0.0
        %902 = vmatprep.subr.mxu0 0.0
        %903 = vmatpush1.xpose.msra.mxu0 0.0
        %904 = vmatprep.subr.mxu0 0.0
        %905 = vmatpush1.xpose.msra.mxu0 0.0
        %906 = vmatprep.subr.mxu0 0.0
        %907 = vmatpush1.xpose.msra.mxu0 0.0
        %908 = vmatprep.subr.mxu0 0.0
        %909 = vmatpush1.xpose.msra.mxu0 0.0
        %910 = vmatprep.subr.mxu0 0.0
        %911 = vmatpush1.xpose.msra.mxu0 0.0
        %912 = vmatprep.subr.mxu0 0.0
        %913 = vmatpush1.xpose.msra.mxu0 0.0
        %914 = vmatprep.subr.mxu0 0.0
        %915 = vmatpush1.xpose.msra.mxu0 0.0
        %916 = vmatprep.subr.mxu0 0.0
        %917 = vmatpush1.xpose.msra.mxu0 0.0
        %918 = vmatprep.subr.mxu0 0.0
        %919 = vmatpush1.xpose.msra.mxu0 0.0
        %920 = vmatprep.subr.mxu0 0.0
        %921 = vmatpush1.xpose.msra.mxu0 0.0
        %922 = vmatprep.subr.mxu0 0.0
        %923 = vmatpush1.xpose.msra.mxu0 0.0
        %924 = vmatprep.subr.mxu0 0.0
        %925 = vmatpush1.xpose.msra.mxu0 0.0
        %926 = vmatprep.subr.mxu0 0.0
        %927 = vmatpush1.xpose.msra.mxu0 0.0
        %928 = vmatprep.subr.mxu0 0.0
        %929 = vmatpush1.xpose.msra.mxu0 0.0
        %930 = vmatprep.subr.mxu0 0.0
        %931 = vmatpush1.xpose.msra.mxu0 0.0
        %932 = vmatprep.subr.mxu0 0.0
        %933 = vmatpush1.xpose.msra.mxu0 0.0
        %934 = vmatprep.subr.mxu0 0.0
        %935 = vmatpush1.xpose.msra.mxu0 0.0
        %936 = vmatprep.subr.mxu0 0.0
        %937 = vmatpush1.xpose.msra.mxu0 0.0
        %938 = vmatprep.subr.mxu0 0.0
        %939 = vmatpush1.xpose.msra.mxu0 0.0
        %940 = vmatprep.subr.mxu0 0.0
        %941 = vmatpush1.xpose.msra.mxu0 0.0
        %942 = vmatprep.subr.mxu0 0.0
        %943 = vmatpush1.xpose.msra.mxu0 0.0
        %944 = vmatprep.subr.mxu0 0.0
        %945 = vmatpush1.xpose.msra.mxu0 0.0
        %946 = vmatprep.subr.mxu0 0.0
        %947 = vmatpush1.xpose.msra.mxu0 0.0
        %948 = vmatprep.mubr.f32.mxu0 0.0
        %949 = vmatmul.mubr.f32.gmra.mrb[0].mxu0 %v879
        %v950 = vpop.f32.mrb[0].mxu0
        %v951 = vadd.f32 %v876, %v950
        %v952 = vpop.f32.mrb[0].mxu0
        %953 = vdwg.mxu0
        %v954 = vsel %vm877, %v951, -inf
        %955 = vmax.xlane.f32.xlu0 %v954
        %v956 = vpop.xlane.xlu0 %955
        %v957 = vsub.f32 %v951, %v956
        %v958 = vmul.f32 %v957, 1.442695
        %v959 = vpow.pop %v958
        %v960 = vsel %vm877, %v959, 0.0
        %961 = vadd.xlane.f32.xlu0 %v960
        %v962 = vpop.xlane.xlu0 %961
        %v963 = vrcp.pop %v962
        %v964 = vmul.f32 %v959, %v963
        %965 = vst.msk [vmem:[%s640] sm:$0xff] %vm877, %v964
        %966 = vrot.lane.b32.xlu0 %v788, 120
        %v967 = vpop.permute.xlu0 %966
        %v970 = vsel %vm877, %v964, 0
        %972 = vmatprep.subr.mxu0 0.0
        %973 = vmatpush1.msra.mxu0 %v967
        %974 = vmatprep.subr.mxu0 0.0
        %975 = vmatpush1.msra.mxu0 0.0
        %976 = vmatprep.subr.mxu0 0.0
        %977 = vmatpush1.msra.mxu0 0.0
        %978 = vmatprep.subr.mxu0 0.0
        %979 = vmatpush1.msra.mxu0 0.0
        %980 = vmatprep.subr.mxu0 0.0
        %981 = vmatpush1.msra.mxu0 0.0
        %982 = vmatprep.subr.mxu0 0.0
        %983 = vmatpush1.msra.mxu0 0.0
        %984 = vmatprep.subr.mxu0 0.0
        %985 = vmatpush1.msra.mxu0 0.0
        %986 = vmatprep.subr.mxu0 0.0
        %987 = vmatpush1.msra.mxu0 0.0
        %988 = vmatprep.subr.mxu0 0.0
        %989 = vmatpush1.msra.mxu0 0.0
        %990 = vmatprep.subr.mxu0 0.0
        %991 = vmatpush1.msra.mxu0 0.0
        %992 = vmatprep.subr.mxu0 0.0
        %993 = vmatpush1.msra.mxu0 0.0
        %994 = vmatprep.subr.mxu0 0.0
        %995 = vmatpush1.msra.mxu0 0.0
        %996 = vmatprep.subr.mxu0 0.0
        %997 = vmatpush1.msra.mxu0 0.0
        %998 = vmatprep.subr.mxu0 0.0
        %999 = vmatpush1.msra.mxu0 0.0
        %1000 = vmatprep.subr.mxu0 0.0
        %1001 = vmatpush1.msra.mxu0 0.0
        %1002 = vmatprep.subr.mxu0 0.0
        %1003 = vmatpush1.msra.mxu0 0.0
        %1004 = vmatprep.subr.mxu0 0.0
        %1005 = vmatpush1.msra.mxu0 0.0
        %1006 = vmatprep.subr.mxu0 0.0
        %1007 = vmatpush1.msra.mxu0 0.0
        %1008 = vmatprep.subr.mxu0 0.0
        %1009 = vmatpush1.msra.mxu0 0.0
        %1010 = vmatprep.subr.mxu0 0.0
        %1011 = vmatpush1.msra.mxu0 0.0
        %1012 = vmatprep.subr.mxu0 0.0
        %1013 = vmatpush1.msra.mxu0 0.0
        %1014 = vmatprep.subr.mxu0 0.0
        %1015 = vmatpush1.msra.mxu0 0.0
        %1016 = vmatprep.subr.mxu0 0.0
        %1017 = vmatpush1.msra.mxu0 0.0
        %1018 = vmatprep.subr.mxu0 0.0
        %1019 = vmatpush1.msra.mxu0 0.0
        %1020 = vmatprep.subr.mxu0 0.0
        %1021 = vmatpush1.msra.mxu0 0.0
        %1022 = vmatprep.subr.mxu0 0.0
        %1023 = vmatpush1.msra.mxu0 0.0
        %1024 = vmatprep.subr.mxu0 0.0
        %1025 = vmatpush1.msra.mxu0 0.0
        %1026 = vmatprep.subr.mxu0 0.0
        %1027 = vmatpush1.msra.mxu0 0.0
        %1028 = vmatprep.subr.mxu0 0.0
        %1029 = vmatpush1.msra.mxu0 0.0
        %1030 = vmatprep.subr.mxu0 0.0
        %1031 = vmatpush1.msra.mxu0 0.0
        %1032 = vmatprep.subr.mxu0 0.0
        %1033 = vmatpush1.msra.mxu0 0.0
        %1034 = vmatprep.subr.mxu0 0.0
        %1035 = vmatpush1.msra.mxu0 0.0
        %1036 = vmatprep.mubr.f32.mxu0 0.0
        %1037 = vmatmul.mubr.f32.gmra.mrb[0].mxu0 %v970
        %v1038 = vpop.f32.mrb[0].mxu0
        %v1039 = vadd.f32 0.0, %v1038
        %v1040 = vpop.f32.mrb[0].mxu0
        %1041 = vdwg.mxu0
        %s1042 = smul.u32 %s42, 8
        %s1043 = scalar_lea.vmem [#allocation3], %s1042
        %1044 = vst.msk [vmem:[%s1043] sm:$0xff] %vm877, %v1039
        %p1045 = scmp.eq.s32.totalorder %s42, 3
        // Predicated region
        $region89: #{tpu_custom_call.1} parent=83 // pred_check
          %p1046 = pneg %p1045
        $region90: #{tpu_custom_call.1} parent=83 // pred_check_branch
          %1048 = sbr.rel (%p1046) target = $region92
        $region91: #{tpu_custom_call.1} parent=83 // pred_region
          %v1049 = vld [vmem:[#allocation3] sm:$0xff]
          %s1050 = scalar_lea.vmem [#allocation3], 8
          %v1051 = vld [vmem:[%s1050] sm:$0xff]
          %s1052 = scalar_lea.vmem [#allocation3], 16
          %v1053 = vld [vmem:[%s1052] sm:$0xff]
          %s1054 = scalar_lea.vmem [#allocation3], 24
          %v1055 = vld [vmem:[%s1054] sm:$0xff]
          %1057 = vrot.lane.b32.xlu0 %v1051, 8
          %v1058 = vpop.permute.xlu0 %1057
          %1061 = vrot.lane.b32.xlu0 %v1053, 16
          %v1062 = vpop.permute.xlu0 %1061
          %1065 = vrot.lane.b32.xlu0 %v1055, 24
          %v1066 = vpop.permute.xlu0 %1065
          %v1068 = vsel %vm877, %v1049, %v1058
          %vm1069 = vcmask 130048
          %v1070 = vsel %vm1069, %v1068, %v1062
          %vm1071 = vcmask 195584
          %v1072 = vsel %vm1071, %v1070, %v1066
          %v1073 = vld [vmem:[%s8] sm:$0xff]
          %v1074 = vld [vmem:[%s8 + $0x8] sm:$0xff]
          %v1075 = vld [vmem:[%s8 + $0x10] sm:$0xff]
          %v1076 = vld [vmem:[%s8 + $0x18] sm:$0xff]
          %v1077 = vld [vmem:[%s9] sm:$0x1]
          %v1079 = vlaneseq
          %v1080 = vshrl.u32 %v1079, 7
          %v1081 = vsub.s32 0, %v1080
          %v1082 = vrot.slane %v1077, %v1081
          %v1085 = vsel %vm717, %v1072, 0
          %1087 = vmatprep.subr.mxu0 0.0
          %1088 = vmatpush1.msra.mxu0 %v1073
          %1089 = vmatprep.subr.mxu0 0.0
          %1090 = vmatpush1.msra.mxu0 %v1074
          %1091 = vmatprep.subr.mxu0 0.0
          %1092 = vmatpush1.msra.mxu0 %v1075
          %1093 = vmatprep.subr.mxu0 0.0
          %1094 = vmatpush1.msra.mxu0 %v1076
          %1095 = vmatprep.subr.mxu0 0.0
          %1096 = vmatpush1.msra.mxu0 0.0
          %1097 = vmatprep.subr.mxu0 0.0
          %1098 = vmatpush1.msra.mxu0 0.0
          %1099 = vmatprep.subr.mxu0 0.0
          %1100 = vmatpush1.msra.mxu0 0.0
          %1101 = vmatprep.subr.mxu0 0.0
          %1102 = vmatpush1.msra.mxu0 0.0
          %1103 = vmatprep.subr.mxu0 0.0
          %1104 = vmatpush1.msra.mxu0 0.0
          %1105 = vmatprep.subr.mxu0 0.0
          %1106 = vmatpush1.msra.mxu0 0.0
          %1107 = vmatprep.subr.mxu0 0.0
          %1108 = vmatpush1.msra.mxu0 0.0
          %1109 = vmatprep.subr.mxu0 0.0
          %1110 = vmatpush1.msra.mxu0 0.0
          %1111 = vmatprep.subr.mxu0 0.0
          %1112 = vmatpush1.msra.mxu0 0.0
          %1113 = vmatprep.subr.mxu0 0.0
          %1114 = vmatpush1.msra.mxu0 0.0
          %1115 = vmatprep.subr.mxu0 0.0
          %1116 = vmatpush1.msra.mxu0 0.0
          %1117 = vmatprep.subr.mxu0 0.0
          %1118 = vmatpush1.msra.mxu0 0.0
          %1119 = vmatprep.subr.mxu0 0.0
          %1120 = vmatpush1.msra.mxu0 0.0
          %1121 = vmatprep.subr.mxu0 0.0
          %1122 = vmatpush1.msra.mxu0 0.0
          %1123 = vmatprep.subr.mxu0 0.0
          %1124 = vmatpush1.msra.mxu0 0.0
          %1125 = vmatprep.subr.mxu0 0.0
          %1126 = vmatpush1.msra.mxu0 0.0
          %1127 = vmatprep.subr.mxu0 0.0
          %1128 = vmatpush1.msra.mxu0 0.0
          %1129 = vmatprep.subr.mxu0 0.0
          %1130 = vmatpush1.msra.mxu0 0.0
          %1131 = vmatprep.subr.mxu0 0.0
          %1132 = vmatpush1.msra.mxu0 0.0
          %1133 = vmatprep.subr.mxu0 0.0
          %1134 = vmatpush1.msra.mxu0 0.0
          %1135 = vmatprep.subr.mxu0 0.0
          %1136 = vmatpush1.msra.mxu0 0.0
          %1137 = vmatprep.subr.mxu0 0.0
          %1138 = vmatpush1.msra.mxu0 0.0
          %1139 = vmatprep.subr.mxu0 0.0
          %1140 = vmatpush1.msra.mxu0 0.0
          %1141 = vmatprep.subr.mxu0 0.0
          %1142 = vmatpush1.msra.mxu0 0.0
          %1143 = vmatprep.subr.mxu0 0.0
          %1144 = vmatpush1.msra.mxu0 0.0
          %1145 = vmatprep.subr.mxu0 0.0
          %1146 = vmatpush1.msra.mxu0 0.0
          %1147 = vmatprep.subr.mxu0 0.0
          %1148 = vmatpush1.msra.mxu0 0.0
          %1149 = vmatprep.subr.mxu0 0.0
          %1150 = vmatpush1.msra.mxu0 0.0
          %1151 = vmatprep.mubr.f32.mxu0 0.0
          %1152 = vmatmul.mubr.f32.gmra.mrb[0].mxu0 %v1085
          %v1153 = vpop.f32.mrb[0].mxu0
          %v1154 = vadd.f32 %v1082, %v1153
          %v1155 = vpop.f32.mrb[0].mxu0
          %1156 = vdwg.mxu0
          %s1157 = scalar_lea.vmem %s648, %s665
          %v1158 = vld [vmem:[%s1157] sm:$0xff]
          %v1159 = vadd.f32 %v1158, %v1154
          %v1160 = vld [vmem:[%s10] sm:$0x1]
          %v1161 = vld [vmem:[%s11] sm:$0x1]
          %v1162 = vsel %vm717, %v1159, 0.0
          %1163 = vadd.xlane.f32.xlu0 %v1162
          %v1164 = vpop.xlane.xlu0 %1163
          %v1165 = vrcp.pop 32.0
          %v1166 = vmul.f32 %v1164, %v1165
          %v1167 = vsub.f32 %v1159, %v1166
          %v1168 = vmul.f32 %v1167, %v1167
          %v1169 = vsel %vm717, %v1168, 0.0
          %1170 = vadd.xlane.f32.xlu0 %v1169
          %v1171 = vpop.xlane.xlu0 %1170
          %v1172 = vmul.f32 %v1171, %v1165
          %v1173 = vadd.f32 %v1172, 1e-05
          %v1174 = vrsqrt.pop %v1173
          %v1175 = vmul.f32 %v1167, %v1174
          %v1177 = vlaneseq
          %v1178 = vshrl.u32 %v1177, 7
          %v1179 = vsub.s32 0, %v1178
          %v1180 = vrot.slane %v1160, %v1179
          %v1182 = vmul.f32 %v1175, %v1180
          %v1184 = vlaneseq
          %v1185 = vshrl.u32 %v1184, 7
          %v1186 = vsub.s32 0, %v1185
          %v1187 = vrot.slane %v1161, %v1186
          %v1189 = vadd.f32 %v1182, %v1187
          %v1190 = vld [vmem:[%s12] sm:$0xff]
          %v1191 = vld [vmem:[%s12 + $0x8] sm:$0xff]
          %v1192 = vld [vmem:[%s12 + $0x10] sm:$0xff]
          %v1193 = vld [vmem:[%s12 + $0x18] sm:$0xff]
          %v1194 = vld [vmem:[%s13] sm:$0x1]
          %v1196 = vlaneseq
          %v1197 = vshrl.u32 %v1196, 7
          %v1198 = vsub.s32 0, %v1197
          %v1199 = vrot.slane %v1194, %v1198
          %v1202 = vsel %vm717, %v1189, 0
          %1204 = vmatprep.subr.mxu0 0.0
          %1205 = vmatpush1.msra.mxu0 %v1190
          %1206 = vmatprep.subr.mxu0 0.0
          %1207 = vmatpush1.msra.mxu0 %v1191
          %1208 = vmatprep.subr.mxu0 0.0
          %1209 = vmatpush1.msra.mxu0 %v1192
          %1210 = vmatprep.subr.mxu0 0.0
          %1211 = vmatpush1.msra.mxu0 %v1193
          %1212 = vmatprep.subr.mxu0 0.0
          %1213 = vmatpush1.msra.mxu0 0.0
          %1214 = vmatprep.subr.mxu0 0.0
          %1215 = vmatpush1.msra.mxu0 0.0
          %1216 = vmatprep.subr.mxu0 0.0
          %1217 = vmatpush1.msra.mxu0 0.0
          %1218 = vmatprep.subr.mxu0 0.0
          %1219 = vmatpush1.msra.mxu0 0.0
          %1220 = vmatprep.subr.mxu0 0.0
          %1221 = vmatpush1.msra.mxu0 0.0
          %1222 = vmatprep.subr.mxu0 0.0
          %1223 = vmatpush1.msra.mxu0 0.0
          %1224 = vmatprep.subr.mxu0 0.0
          %1225 = vmatpush1.msra.mxu0 0.0
          %1226 = vmatprep.subr.mxu0 0.0
          %1227 = vmatpush1.msra.mxu0 0.0
          %1228 = vmatprep.subr.mxu0 0.0
          %1229 = vmatpush1.msra.mxu0 0.0
          %1230 = vmatprep.subr.mxu0 0.0
          %1231 = vmatpush1.msra.mxu0 0.0
          %1232 = vmatprep.subr.mxu0 0.0
          %1233 = vmatpush1.msra.mxu0 0.0
          %1234 = vmatprep.subr.mxu0 0.0
          %1235 = vmatpush1.msra.mxu0 0.0
          %1236 = vmatprep.subr.mxu0 0.0
          %1237 = vmatpush1.msra.mxu0 0.0
          %1238 = vmatprep.subr.mxu0 0.0
          %1239 = vmatpush1.msra.mxu0 0.0
          %1240 = vmatprep.subr.mxu0 0.0
          %1241 = vmatpush1.msra.mxu0 0.0
          %1242 = vmatprep.subr.mxu0 0.0
          %1243 = vmatpush1.msra.mxu0 0.0
          %1244 = vmatprep.subr.mxu0 0.0
          %1245 = vmatpush1.msra.mxu0 0.0
          %1246 = vmatprep.subr.mxu0 0.0
          %1247 = vmatpush1.msra.mxu0 0.0
          %1248 = vmatprep.subr.mxu0 0.0
          %1249 = vmatpush1.msra.mxu0 0.0
          %1250 = vmatprep.subr.mxu0 0.0
          %1251 = vmatpush1.msra.mxu0 0.0
          %1252 = vmatprep.subr.mxu0 0.0
          %1253 = vmatpush1.msra.mxu0 0.0
          %1254 = vmatprep.subr.mxu0 0.0
          %1255 = vmatpush1.msra.mxu0 0.0
          %1256 = vmatprep.subr.mxu0 0.0
          %1257 = vmatpush1.msra.mxu0 0.0
          %1258 = vmatprep.subr.mxu0 0.0
          %1259 = vmatpush1.msra.mxu0 0.0
          %1260 = vmatprep.subr.mxu0 0.0
          %1261 = vmatpush1.msra.mxu0 0.0
          %1262 = vmatprep.subr.mxu0 0.0
          %1263 = vmatpush1.msra.mxu0 0.0
          %1264 = vmatprep.subr.mxu0 0.0
          %1265 = vmatpush1.msra.mxu0 0.0
          %1266 = vmatprep.subr.mxu0 0.0
          %1267 = vmatpush1.msra.mxu0 0.0
          %1268 = vmatprep.mubr.f32.mxu0 0.0
          %1269 = vmatmul.mubr.f32.gmra.mrb[0].mxu0 %v1202
          %v1270 = vpop.f32.mrb[0].mxu0
          %v1271 = vadd.f32 %v1199, %v1270
          %v1272 = vpop.f32.mrb[0].mxu0
          %1273 = vdwg.mxu0
          %v1274 = vmul.f32 %v1271, %v1271
          %v1275 = vmul.f32 %v1274, %v1271
          %v1276 = vmul.f32 %v1271, 0.5
          %v1277 = vmul.f32 %v1275, 0.044715
          %v1278 = vadd.f32 %v1271, %v1277
          %v1279 = vmul.f32 %v1278, 0.7978846
          %v1280 = vtanh.pop %v1279
          %v1281 = vadd.f32 %v1280, 1.0
          %v1282 = vmul.f32 %v1276, %v1281
          %v1283 = vld [vmem:[%s14] sm:$0xff]
          %v1284 = vld [vmem:[%s14 + $0x8] sm:$0xff]
          %v1285 = vld [vmem:[%s14 + $0x10] sm:$0xff]
          %v1286 = vld [vmem:[%s14 + $0x18] sm:$0xff]
          %v1287 = vld [vmem:[%s14 + $0x20] sm:$0xff]
          %v1288 = vld [vmem:[%s14 + $0x28] sm:$0xff]
          %v1289 = vld [vmem:[%s14 + $0x30] sm:$0xff]
          %v1290 = vld [vmem:[%s14 + $0x38] sm:$0xff]
          %v1291 = vld [vmem:[%s15] sm:$0x1]
          %v1293 = vlaneseq
          %v1294 = vshrl.u32 %v1293, 7
          %v1295 = vsub.s32 0, %v1294
          %v1296 = vrot.slane %v1291, %v1295
          %vm1298 = vcmask 523264
          %v1300 = vsel %vm1298, %v1282, 0
          %1302 = vmatprep.subr.mxu0 0.0
          %1303 = vmatpush1.msra.mxu0 %v1283
          %1304 = vmatprep.subr.mxu0 0.0
          %1305 = vmatpush1.msra.mxu0 %v1284
          %1306 = vmatprep.subr.mxu0 0.0
          %1307 = vmatpush1.msra.mxu0 %v1285
          %1308 = vmatprep.subr.mxu0 0.0
          %1309 = vmatpush1.msra.mxu0 %v1286
          %1310 = vmatprep.subr.mxu0 0.0
          %1311 = vmatpush1.msra.mxu0 %v1287
          %1312 = vmatprep.subr.mxu0 0.0
          %1313 = vmatpush1.msra.mxu0 %v1288
          %1314 = vmatprep.subr.mxu0 0.0
          %1315 = vmatpush1.msra.mxu0 %v1289
          %1316 = vmatprep.subr.mxu0 0.0
          %1317 = vmatpush1.msra.mxu0 %v1290
          %1318 = vmatprep.subr.mxu0 0.0
          %1319 = vmatpush1.msra.mxu0 0.0
          %1320 = vmatprep.subr.mxu0 0.0
          %1321 = vmatpush1.msra.mxu0 0.0
          %1322 = vmatprep.subr.mxu0 0.0
          %1323 = vmatpush1.msra.mxu0 0.0
          %1324 = vmatprep.subr.mxu0 0.0
          %1325 = vmatpush1.msra.mxu0 0.0
          %1326 = vmatprep.subr.mxu0 0.0
          %1327 = vmatpush1.msra.mxu0 0.0
          %1328 = vmatprep.subr.mxu0 0.0
          %1329 = vmatpush1.msra.mxu0 0.0
          %1330 = vmatprep.subr.mxu0 0.0
          %1331 = vmatpush1.msra.mxu0 0.0
          %1332 = vmatprep.subr.mxu0 0.0
          %1333 = vmatpush1.msra.mxu0 0.0
          %1334 = vmatprep.subr.mxu0 0.0
          %1335 = vmatpush1.msra.mxu0 0.0
          %1336 = vmatprep.subr.mxu0 0.0
          %1337 = vmatpush1.msra.mxu0 0.0
          %1338 = vmatprep.subr.mxu0 0.0
          %1339 = vmatpush1.msra.mxu0 0.0
          %1340 = vmatprep.subr.mxu0 0.0
          %1341 = vmatpush1.msra.mxu0 0.0
          %1342 = vmatprep.subr.mxu0 0.0
          %1343 = vmatpush1.msra.mxu0 0.0
          %1344 = vmatprep.subr.mxu0 0.0
          %1345 = vmatpush1.msra.mxu0 0.0
          %1346 = vmatprep.subr.mxu0 0.0
          %1347 = vmatpush1.msra.mxu0 0.0
          %1348 = vmatprep.subr.mxu0 0.0
          %1349 = vmatpush1.msra.mxu0 0.0
          %1350 = vmatprep.subr.mxu0 0.0
          %1351 = vmatpush1.msra.mxu0 0.0
          %1352 = vmatprep.subr.mxu0 0.0
          %1353 = vmatpush1.msra.mxu0 0.0
          %1354 = vmatprep.subr.mxu0 0.0
          %1355 = vmatpush1.msra.mxu0 0.0
          %1356 = vmatprep.subr.mxu0 0.0
          %1357 = vmatpush1.msra.mxu0 0.0
          %1358 = vmatprep.subr.mxu0 0.0
          %1359 = vmatpush1.msra.mxu0 0.0
          %1360 = vmatprep.subr.mxu0 0.0
          %1361 = vmatpush1.msra.mxu0 0.0
          %1362 = vmatprep.subr.mxu0 0.0
          %1363 = vmatpush1.msra.mxu0 0.0
          %1364 = vmatprep.subr.mxu0 0.0
          %1365 = vmatpush1.msra.mxu0 0.0
          %1366 = vmatprep.mubr.f32.mxu0 0.0
          %1367 = vmatmul.mubr.f32.gmra.mrb[0].mxu0 %v1300
          %v1368 = vpop.f32.mrb[0].mxu0
          %v1369 = vadd.f32 %v1296, %v1368
          %v1370 = vpop.f32.mrb[0].mxu0
          %1371 = vdwg.mxu0
          %v1372 = vadd.f32 %v1159, %v1369
          %1373 = vst.msk [vmem:[%s633] sm:$0xff] %vm717, %v1372
        $region92: #{tpu_custom_call.1} parent=83 // pred_fallthru
          _
        %s1374 = sand.u32 %s430, 1
        %s1375 = scalar_lea.sflag [#allocation5], %s1374
        %s1376 = sand.u32 %s430, 1
        %s1377 = smul.addr %s1376, 8
        %s1378 = scalar_lea.vmem [#allocation4], %s1377
        %s1379 = sand.u32 %s460, 1
        %s1380 = scalar_lea.sflag [#allocation7], %s1379
        %s1381 = sand.u32 %s460, 1
        %s1382 = smul.addr %s1381, 8
        %s1383 = scalar_lea.vmem [#allocation6], %s1382
        // Predicated region
        $region93: #{tpu_custom_call.1} parent=83 // pred_check
          %p1384 = pneg %p440
        $region94: #{tpu_custom_call.1} parent=83 // pred_check_branch
          %1386 = sbr.rel (%p1384) target = $region96
        $region95: #{tpu_custom_call.1} parent=83 // pred_region
          %s1388 = ssub.s32 128, 128
          %1389 = vsyncadd %s1375, %s1388
          %s1390 = sadd.s32 %s41, %s40
          %s1391 = smul.addr %s1390, 128
          %s1392 = scalar_lea.hbm %s16, %s1391
          %s1394 = sshll.u32 %s1378, 4
          %s1395 = int_to_ptr.vmem [resolvable:$true] %s1394
          %1397 = dma.vmem_to_hbm [thread:$0]  %s1395, 128, %s1392, %s1375
        $region96: #{tpu_custom_call.1} parent=83 // pred_fallthru
          _
        // Predicated region
        $region97: #{tpu_custom_call.1} parent=83 // pred_check
          %p1398 = pneg %p470
        $region98: #{tpu_custom_call.1} parent=83 // pred_check_branch
          %1400 = sbr.rel (%p1398) target = $region100
        $region99: #{tpu_custom_call.1} parent=83 // pred_region
          %s1402 = ssub.s32 128, 128
          %1403 = vsyncadd %s1380, %s1402
          %s1404 = sadd.s32 %s41, %s42
          %s1405 = smul.addr %s40, 4
          %s1406 = sadd.s32 %s1404, %s1405
          %s1407 = smul.addr %s1406, 128
          %s1408 = scalar_lea.hbm %s17, %s1407
          %s1410 = sshll.u32 %s1383, 4
          %s1411 = int_to_ptr.vmem [resolvable:$true] %s1410
          %1413 = dma.vmem_to_hbm [thread:$0]  %s1411, 128, %s1408, %s1380
        $region100: #{tpu_custom_call.1} parent=83 // pred_fallthru
          _
      $region84: #{tpu_custom_call.1} parent=5 // pred_fallthru
        _
      %p1414 = scmp.le.s32.totalorder 2, %s30
      // Predicated region
      $region101: #{tpu_custom_call.1} parent=5 // pred_check
        %p1415 = pneg %p1414
      $region102: #{tpu_custom_call.1} parent=5 // pred_check_branch
        %1417 = sbr.rel (%p1415) target = $region104
      $region103: #{tpu_custom_call.1} parent=5 // pred_region
        %s1418 = ssub.s32 %s30, 2
        // Predicated region
        $region105: #{tpu_custom_call.1} parent=103 // pred_check
          %p1419 = pneg %p446
        $region106: #{tpu_custom_call.1} parent=103 // pred_check_branch
          %1421 = sbr.rel (%p1419) target = $region108
        $region107: #{tpu_custom_call.1} parent=103 // pred_region
          %s1422 = sand.u32 %s431, 1
          %s1423 = scalar_lea.sflag [#allocation5], %s1422
          %s1424 = sand.u32 %s431, 1
          %s1425 = smul.addr %s1424, 8
          %s1426 = scalar_lea.vmem [#allocation4], %s1425
          %1427 = dma.done %s1423, 128
        $region108: #{tpu_custom_call.1} parent=103 // pred_fallthru
          _
        // Predicated region
        $region109: #{tpu_custom_call.1} parent=103 // pred_check
          %p1428 = pneg %p476
        $region110: #{tpu_custom_call.1} parent=103 // pred_check_branch
          %1430 = sbr.rel (%p1428) target = $region112
        $region111: #{tpu_custom_call.1} parent=103 // pred_region
          %s1431 = sand.u32 %s461, 1
          %s1432 = scalar_lea.sflag [#allocation7], %s1431
          %s1433 = sand.u32 %s461, 1
          %s1434 = smul.addr %s1433, 8
          %s1435 = scalar_lea.vmem [#allocation6], %s1434
          %1436 = dma.done %s1432, 128
        $region112: #{tpu_custom_call.1} parent=103 // pred_fallthru
          _
      $region104: #{tpu_custom_call.1} parent=5 // pred_fallthru
        _
    $region6: #{tpu_custom_call.1} parent=1 // loop_footer
      %s34 = sadd.s32 1, %s30
    $region7: #{tpu_custom_call.1} parent=1 // loop_footer_branch
      %29 = sbr.rel target = $region3
    $region8: #{tpu_custom_call.1} parent=1 // loop_exit
      _
    %1437 = vsyncpa [#allocation5], 1
    %s1438 = scalar_lea.sflag [#allocation5], 1
    %1439 = vsyncpa %s1438, 1
    %1440 = vsyncpa [#allocation7], 1
    %s1441 = scalar_lea.sflag [#allocation7], 1
    %1442 = vsyncpa %s1441, 1

// kernel: tpu_custom_call.1
$region0: #{tpu_custom_call.1}
  #allocation0 [shape = 'u32[]', space=smem, size = 0x4, offset = 0x4, fixed_abs, tag = 'smem constant byte address 0x4 - core index']
  #allocation1 [shape = 'u32[144,128]{1,0:T(1,128)}', space=vmem, size = 0x12000, scoped, tag = 'internal scratch']
  #allocation2 [shape = 'f32[8,32]{1,0:T(8,128)}', space=vmem, size = 0x1000, scoped, tag = 'scratch operand']
  #allocation3 [shape = 'f32[4,8,8]{2,1,0:T(8,128)}', space=vmem, size = 0x4000, scoped, tag = 'scratch operand']
  %s0 = inlined_call_operand.vmem [shape: f32[8,8], index: 0, kind: input, shape index: {}]
  %s1 = inlined_call_operand.vmem [shape: f32[2,8,32], index: 1, kind: input, shape index: {}]
  %s2 = inlined_call_operand.vmem [shape: f32[1,32], index: 2, kind: input, shape index: {}]
  %s3 = inlined_call_operand.vmem [shape: f32[1,32], index: 3, kind: input, shape index: {}]
  %s4 = inlined_call_operand.vmem [shape: f32[4,32,8], index: 4, kind: input, shape index: {}]
  %s5 = inlined_call_operand.vmem [shape: f32[4,1,8], index: 5, kind: input, shape index: {}]
  %s6 = inlined_call_operand.vmem [shape: f32[4,32,16], index: 6, kind: input, shape index: {}]
  %s7 = inlined_call_operand.vmem [shape: f32[4,1,16], index: 7, kind: input, shape index: {}]
  %s8 = inlined_call_operand.vmem [shape: f32[32,32], index: 8, kind: input, shape index: {}]
  %s9 = inlined_call_operand.vmem [shape: f32[1,32], index: 9, kind: input, shape index: {}]
  %s10 = inlined_call_operand.vmem [shape: f32[1,32], index: 10, kind: input, shape index: {}]
  %s11 = inlined_call_operand.vmem [shape: f32[1,32], index: 11, kind: input, shape index: {}]
  %s12 = inlined_call_operand.vmem [shape: f32[32,64], index: 12, kind: input, shape index: {}]
  %s13 = inlined_call_operand.vmem [shape: f32[1,64], index: 13, kind: input, shape index: {}]
  %s14 = inlined_call_operand.vmem [shape: f32[64,32], index: 14, kind: input, shape index: {}]
  %s15 = inlined_call_operand.vmem [shape: f32[1,32], index: 15, kind: input, shape index: {}]
  %s16 = inlined_call_operand.hbm [shape: f32[2,8,32], index: 16, kind: output, shape index: {0}]
  %s17 = inlined_call_operand.hbm [shape: f32[2,4,8,8], index: 17, kind: output, shape index: {1}]
  %18 = xla_tuple %s16, %s17
  %s19 = sld [smem:[#allocation0]]
  $region113: #{tpu_custom_call.1} parent=0
    _
  %s21 = ssub.s32 1, %s19
  %s22 = scalar_select 0, %s21, %s19
  $region1: #{tpu_custom_call.1} parent=0
    #allocation4 [shape = 'u8[8192]{0}', space=vmem, size = 0x2000, scoped, tag = 'output window, operand 0']
    #allocation5 [shape = 's32[2]{0}', space=sflag, size = 0x8, scoped, tag = 'scoped memory for tpu_custom_call.1']
    #allocation6 [shape = 'u8[8192]{0}', space=vmem, size = 0x2000, scoped, tag = 'output window, operand 1']
    #allocation7 [shape = 's32[2]{0}', space=sflag, size = 0x8, scoped, tag = 'scoped memory for tpu_custom_call.1']
    %23 = vsyncpa [#allocation5], 0
    %s24 = scalar_lea.sflag [#allocation5], 1
    %25 = vsyncpa %s24, 0
    %26 = vsyncpa [#allocation7], 0
    %s27 = scalar_lea.sflag [#allocation7], 1
    %28 = vsyncpa %s27, 0
    loop: start=0, step=1, limit=10
    $region2: #{tpu_custom_call.1} parent=1 // loop_pre_header
      _
    $region3: #{tpu_custom_call.1} parent=1 // loop_header
      %s30 = sphi 0, %s34
      %p31 = scmp.ge.s32.totalorder %s30, 10
      %s37 = sphi 0, %s56
      %s38 = sphi 0, %s52
      %s39 = sphi 0, %s48
      %s40 = sphi 0, %s37
      %s41 = sphi 0, %s38
      %s42 = sphi 0, %s39
      %s43 = sphi 0, %s40
      %s44 = sphi 0, %s41
      %s45 = sphi 0, %s42
      %s59 = sphi 0, %s61
      %s62 = sphi 0, %s59
      %s63 = sphi 0, %s62
      %s79 = sphi 0, %s63
      %s85 = sphi 0, %s87
      %s88 = sphi 0, %s85
      %s89 = sphi 0, %s88
      %s105 = sphi 0, %s89
      %s109 = sphi 0, %s109
      %s111 = sphi 0, %s109
      %s112 = sphi 0, %s111
      %s126 = sphi 0, %s112
      %s130 = sphi 0, %s130
      %s132 = sphi 0, %s130
      %s133 = sphi 0, %s132
      %s147 = sphi 0, %s133
      %s153 = sphi 0, %s155
      %s156 = sphi 0, %s153
      %s157 = sphi 0, %s156
      %s173 = sphi 0, %s157
      %s179 = sphi 0, %s181
      %s182 = sphi 0, %s179
      %s183 = sphi 0, %s182
      %s199 = sphi 0, %s183
      %s205 = sphi 0, %s207
      %s208 = sphi 0, %s205
      %s209 = sphi 0, %s208
      %s225 = sphi 0, %s209
      %s231 = sphi 0, %s233
      %s234 = sphi 0, %s231
      %s235 = sphi 0, %s234
      %s251 = sphi 0, %s235
      %s255 = sphi 0, %s255
      %s257 = sphi 0, %s255
      %s258 = sphi 0, %s257
      %s272 = sphi 0, %s258
      %s276 = sphi 0, %s276
      %s278 = sphi 0, %s276
      %s279 = sphi 0, %s278
      %s293 = sphi 0, %s279
      %s297 = sphi 0, %s297
      %s299 = sphi 0, %s297
      %s300 = sphi 0, %s299
      %s314 = sphi 0, %s300
      %s318 = sphi 0, %s318
      %s320 = sphi 0, %s318
      %s321 = sphi 0, %s320
      %s335 = sphi 0, %s321
      %s339 = sphi 0, %s339
      %s341 = sphi 0, %s339
      %s342 = sphi 0, %s341
      %s356 = sphi 0, %s342
      %s360 = sphi 0, %s360
      %s362 = sphi 0, %s360
      %s363 = sphi 0, %s362
      %s377 = sphi 0, %s363
      %s381 = sphi 0, %s381
      %s383 = sphi 0, %s381
      %s384 = sphi 0, %s383
      %s398 = sphi 0, %s384
      %s402 = sphi 0, %s402
      %s404 = sphi 0, %s402
      %s405 = sphi 0, %s404
      %s419 = sphi 0, %s405
      %s427 = sphi 0, %s429
      %s430 = sphi 0, %s427
      %s431 = sphi 0, %s430
      %s447 = sphi 0, %s431
      %s457 = sphi 0, %s459
      %s460 = sphi 0, %s457
      %s461 = sphi 0, %s460
      %s477 = sphi 0, %s461
    $region4: #{tpu_custom_call.1} parent=1 // loop_header_branch
      %33 = sbr.rel (%p31) target = $region8
    $region5: #{tpu_custom_call.1} parent=1 // loop_body
      %s35 = ssub.s32 %s30, 1
      %s36 = ssub.s32 %s30, 2
      %s46 = sadd.s32 1, %s39
      %p47 = scmp.ge.s32.totalorder %s46, 4
      %s48 = scalar_select %p47, 0, %s46
      %s49 = sadd.s32 1, %s38
      %s50 = scalar_select %p47, %s49, %s38
      %p51 = scmp.ge.s32.totalorder %s50, 1
      %s52 = scalar_select %p51, 0, %s50
      %s53 = sadd.s32 1, %s37
      %s54 = scalar_select %p51, %s53, %s37
      %p55 = scmp.ge.s32.totalorder %s54, 2
      %s56 = scalar_select %p55, 0, %s54
      %s57 = ssub.s32 %s38, %s52
      %p58 = scmp.eq.s32.totalorder %s57, 0
      %s60 = sadd.s32 %s59, 1
      %s61 = scalar_select %p58, %s59, %s60
      %p64 = pneg %p58
      %p65 = scmp.eq.s32.totalorder %s30, 7
      %p66 = por %p64, %p65
      %p67 = scmp.ne.s32.totalorder %s59, %s62
      %p68 = scmp.eq.s32.totalorder %s30, 0
      %p69 = por %p67, %p68
      %p70 = scmp.ne.s32.totalorder %s59, %s62
      %p71 = scmp.eq.s32.totalorder %s35, 7
      %p72 = por %p70, %p71
      %p73 = scmp.ne.s32.totalorder %s62, %s63
      %p74 = scmp.eq.s32.totalorder %s35, 0
      %p75 = por %p73, %p74
      %p76 = scmp.ne.s32.totalorder %s62, %s63
      %p77 = scmp.eq.s32.totalorder %s36, 7
      %p78 = por %p76, %p77
      %p80 = scmp.ne.s32.totalorder %s63, %s79
      %p81 = scmp.eq.s32.totalorder %s36, 0
      %p82 = por %p80, %p81
      %s83 = ssub.s32 %s37, %s56
      %p84 = scmp.eq.s32.totalorder %s83, 0
      %s86 = sadd.s32 %s85, 1
      %s87 = scalar_select %p84, %s85, %s86
      %p90 = pneg %p84
      %p91 = scmp.eq.s32.totalorder %s30, 7
      %p92 = por %p90, %p91
      %p93 = scmp.ne.s32.totalorder %s85, %s88
      %p94 = scmp.eq.s32.totalorder %s30, 0
      %p95 = por %p93, %p94
      %p96 = scmp.ne.s32.totalorder %s85, %s88
      %p97 = scmp.eq.s32.totalorder %s35, 7
      %p98 = por %p96, %p97
      %p99 = scmp.ne.s32.totalorder %s88, %s89
      %p100 = scmp.eq.s32.totalorder %s35, 0
      %p101 = por %p99, %p100
      %p102 = scmp.ne.s32.totalorder %s88, %s89
      %p103 = scmp.eq.s32.totalorder %s36, 7
      %p104 = por %p102, %p103
      %p106 = scmp.ne.s32.totalorder %s89, %s105
      %p107 = scmp.eq.s32.totalorder %s36, 0
      %p108 = por %p106, %p107
      %s110 = sadd.s32 %s109, 1
      %p113 = scmp.eq.s32.totalorder %s30, 7
      %p114 = scmp.ne.s32.totalorder %s109, %s111
      %p115 = scmp.eq.s32.totalorder %s30, 0
      %p116 = por %p114, %p115
      %p117 = scmp.ne.s32.totalorder %s109, %s111
      %p118 = scmp.eq.s32.totalorder %s35, 7
      %p119 = por %p117, %p118
      %p120 = scmp.ne.s32.totalorder %s111, %s112
      %p121 = scmp.eq.s32.totalorder %s35, 0
      %p122 = por %p120, %p121
      %p123 = scmp.ne.s32.totalorder %s111, %s112
      %p124 = scmp.eq.s32.totalorder %s36, 7
      %p125 = por %p123, %p124
      %p127 = scmp.ne.s32.totalorder %s112, %s126
      %p128 = scmp.eq.s32.totalorder %s36, 0
      %p129 = por %p127, %p128
      %s131 = sadd.s32 %s130, 1
      %p134 = scmp.eq.s32.totalorder %s30, 7
      %p135 = scmp.ne.s32.totalorder %s130, %s132
      %p136 = scmp.eq.s32.totalorder %s30, 0
      %p137 = por %p135, %p136
      %p138 = scmp.ne.s32.totalorder %s130, %s132
      %p139 = scmp.eq.s32.totalorder %s35, 7
      %p140 = por %p138, %p139
      %p141 = scmp.ne.s32.totalorder %s132, %s133
      %p142 = scmp.eq.s32.totalorder %s35, 0
      %p143 = por %p141, %p142
      %p144 = scmp.ne.s32.totalorder %s132, %s133
      %p145 = scmp.eq.s32.totalorder %s36, 7
      %p146 = por %p144, %p145
      %p148 = scmp.ne.s32.totalorder %s133, %s147
      %p149 = scmp.eq.s32.totalorder %s36, 0
      %p150 = por %p148, %p149
      %s151 = ssub.s32 %s39, %s48
      %p152 = scmp.eq.s32.totalorder %s151, 0
      %s154 = sadd.s32 %s153, 1
      %s155 = scalar_select %p152, %s153, %s154
      %p158 = pneg %p152
      %p159 = scmp.eq.s32.totalorder %s30, 7
      %p160 = por %p158, %p159
      %p161 = scmp.ne.s32.totalorder %s153, %s156
      %p162 = scmp.eq.s32.totalorder %s30, 0
      %p163 = por %p161, %p162
      %p164 = scmp.ne.s32.totalorder %s153, %s156
      %p165 = scmp.eq.s32.totalorder %s35, 7
      %p166 = por %p164, %p165
      %p167 = scmp.ne.s32.totalorder %s156, %s157
      %p168 = scmp.eq.s32.totalorder %s35, 0
      %p169 = por %p167, %p168
      %p170 = scmp.ne.s32.totalorder %s156, %s157
      %p171 = scmp.eq.s32.totalorder %s36, 7
      %p172 = por %p170, %p171
      %p174 = scmp.ne.s32.totalorder %s157, %s173
      %p175 = scmp.eq.s32.totalorder %s36, 0
      %p176 = por %p174, %p175
      %s177 = ssub.s32 %s39, %s48
      %p178 = scmp.eq.s32.totalorder %s177, 0
      %s180 = sadd.s32 %s179, 1
      %s181 = scalar_select %p178, %s179, %s180
      %p184 = pneg %p178
      %p185 = scmp.eq.s32.totalorder %s30, 7
      %p186 = por %p184, %p185
      %p187 = scmp.ne.s32.totalorder %s179, %s182
      %p188 = scmp.eq.s32.totalorder %s30, 0
      %p189 = por %p187, %p188
      %p190 = scmp.ne.s32.totalorder %s179, %s182
      %p191 = scmp.eq.s32.totalorder %s35, 7
      %p192 = por %p190, %p191
      %p193 = scmp.ne.s32.totalorder %s182, %s183
      %p194 = scmp.eq.s32.totalorder %s35, 0
      %p195 = por %p193, %p194
      %p196 = scmp.ne.s32.totalorder %s182, %s183
      %p197 = scmp.eq.s32.totalorder %s36, 7
      %p198 = por %p196, %p197
      %p200 = scmp.ne.s32.totalorder %s183, %s199
      %p201 = scmp.eq.s32.totalorder %s36, 0
      %p202 = por %p200, %p201
      %s203 = ssub.s32 %s39, %s48
      %p204 = scmp.eq.s32.totalorder %s203, 0
      %s206 = sadd.s32 %s205, 1
      %s207 = scalar_select %p204, %s205, %s206
      %p210 = pneg %p204
      %p211 = scmp.eq.s32.totalorder %s30, 7
      %p212 = por %p210, %p211
      %p213 = scmp.ne.s32.totalorder %s205, %s208
      %p214 = scmp.eq.s32.totalorder %s30, 0
      %p215 = por %p213, %p214
      %p216 = scmp.ne.s32.totalorder %s205, %s208
      %p217 = scmp.eq.s32.totalorder %s35, 7
      %p218 = por %p216, %p217
      %p219 = scmp.ne.s32.totalorder %s208, %s209
      %p220 = scmp.eq.s32.totalorder %s35, 0
      %p221 = por %p219, %p220
      %p222 = scmp.ne.s32.totalorder %s208, %s209
      %p223 = scmp.eq.s32.totalorder %s36, 7
      %p224 = por %p222, %p223
      %p226 = scmp.ne.s32.totalorder %s209, %s225
      %p227 = scmp.eq.s32.totalorder %s36, 0
      %p228 = por %p226, %p227
      %s229 = ssub.s32 %s39, %s48
      %p230 = scmp.eq.s32.totalorder %s229, 0
      %s232 = sadd.s32 %s231, 1
      %s233 = scalar_select %p230, %s231, %s232
      %p236 = pneg %p230
      %p237 = scmp.eq.s32.totalorder %s30, 7
      %p238 = por %p236, %p237
      %p239 = scmp.ne.s32.totalorder %s231, %s234
      %p240 = scmp.eq.s32.totalorder %s30, 0
      %p241 = por %p239, %p240
      %p242 = scmp.ne.s32.totalorder %s231, %s234
      %p243 = scmp.eq.s32.totalorder %s35, 7
      %p244 = por %p242, %p243
      %p245 = scmp.ne.s32.totalorder %s234, %s235
      %p246 = scmp.eq.s32.totalorder %s35, 0
      %p247 = por %p245, %p246
      %p248 = scmp.ne.s32.totalorder %s234, %s235
      %p249 = scmp.eq.s32.totalorder %s36, 7
      %p250 = por %p248, %p249
      %p252 = scmp.ne.s32.totalorder %s235, %s251
      %p253 = scmp.eq.s32.totalorder %s36, 0
      %p254 = por %p252, %p253
      %s256 = sadd.s32 %s255, 1
      %p259 = scmp.eq.s32.totalorder %s30, 7
      %p260 = scmp.ne.s32.totalorder %s255, %s257
      %p261 = scmp.eq.s32.totalorder %s30, 0
      %p262 = por %p260, %p261
      %p263 = scmp.ne.s32.totalorder %s255, %s257
      %p264 = scmp.eq.s32.totalorder %s35, 7
      %p265 = por %p263, %p264
      %p266 = scmp.ne.s32.totalorder %s257, %s258
      %p267 = scmp.eq.s32.totalorder %s35, 0
      %p268 = por %p266, %p267
      %p269 = scmp.ne.s32.totalorder %s257, %s258
      %p270 = scmp.eq.s32.totalorder %s36, 7
      %p271 = por %p269, %p270
      %p273 = scmp.ne.s32.totalorder %s258, %s272
      %p274 = scmp.eq.s32.totalorder %s36, 0
      %p275 = por %p273, %p274
      %s277 = sadd.s32 %s276, 1
      %p280 = scmp.eq.s32.totalorder %s30, 7
      %p281 = scmp.ne.s32.totalorder %s276, %s278
      %p282 = scmp.eq.s32.totalorder %s30, 0
      %p283 = por %p281, %p282
      %p284 = scmp.ne.s32.totalorder %s276, %s278
      %p285 = scmp.eq.s32.totalorder %s35, 7
      %p286 = por %p284, %p285
      %p287 = scmp.ne.s32.totalorder %s278, %s279
      %p288 = scmp.eq.s32.totalorder %s35, 0
      %p289 = por %p287, %p288
      %p290 = scmp.ne.s32.totalorder %s278, %s279
      %p291 = scmp.eq.s32.totalorder %s36, 7
      %p292 = por %p290, %p291
      %p294 = scmp.ne.s32.totalorder %s279, %s293
      %p295 = scmp.eq.s32.totalorder %s36, 0
      %p296 = por %p294, %p295
      %s298 = sadd.s32 %s297, 1
      %p301 = scmp.eq.s32.totalorder %s30, 7
      %p302 = scmp.ne.s32.totalorder %s297, %s299
      %p303 = scmp.eq.s32.totalorder %s30, 0
      %p304 = por %p302, %p303
      %p305 = scmp.ne.s32.totalorder %s297, %s299
      %p306 = scmp.eq.s32.totalorder %s35, 7
      %p307 = por %p305, %p306
      %p308 = scmp.ne.s32.totalorder %s299, %s300
      %p309 = scmp.eq.s32.totalorder %s35, 0
      %p310 = por %p308, %p309
      %p311 = scmp.ne.s32.totalorder %s299, %s300
      %p312 = scmp.eq.s32.totalorder %s36, 7
      %p313 = por %p311, %p312
      %p315 = scmp.ne.s32.totalorder %s300, %s314
      %p316 = scmp.eq.s32.totalorder %s36, 0
      %p317 = por %p315, %p316
      %s319 = sadd.s32 %s318, 1
      %p322 = scmp.eq.s32.totalorder %s30, 7
      %p323 = scmp.ne.s32.totalorder %s318, %s320
      %p324 = scmp.eq.s32.totalorder %s30, 0
      %p325 = por %p323, %p324
      %p326 = scmp.ne.s32.totalorder %s318, %s320
      %p327 = scmp.eq.s32.totalorder %s35, 7
      %p328 = por %p326, %p327
      %p329 = scmp.ne.s32.totalorder %s320, %s321
      %p330 = scmp.eq.s32.totalorder %s35, 0
      %p331 = por %p329, %p330
      %p332 = scmp.ne.s32.totalorder %s320, %s321
      %p333 = scmp.eq.s32.totalorder %s36, 7
      %p334 = por %p332, %p333
      %p336 = scmp.ne.s32.totalorder %s321, %s335
      %p337 = scmp.eq.s32.totalorder %s36, 0
      %p338 = por %p336, %p337
      %s340 = sadd.s32 %s339, 1
      %p343 = scmp.eq.s32.totalorder %s30, 7
      %p344 = scmp.ne.s32.totalorder %s339, %s341
      %p345 = scmp.eq.s32.totalorder %s30, 0
      %p346 = por %p344, %p345
      %p347 = scmp.ne.s32.totalorder %s339, %s341
      %p348 = scmp.eq.s32.totalorder %s35, 7
      %p349 = por %p347, %p348
      %p350 = scmp.ne.s32.totalorder %s341, %s342
      %p351 = scmp.eq.s32.totalorder %s35, 0
      %p352 = por %p350, %p351
      %p353 = scmp.ne.s32.totalorder %s341, %s342
      %p354 = scmp.eq.s32.totalorder %s36, 7
      %p355 = por %p353, %p354
      %p357 = scmp.ne.s32.totalorder %s342, %s356
      %p358 = scmp.eq.s32.totalorder %s36, 0
      %p359 = por %p357, %p358
      %s361 = sadd.s32 %s360, 1
      %p364 = scmp.eq.s32.totalorder %s30, 7
      %p365 = scmp.ne.s32.totalorder %s360, %s362
      %p366 = scmp.eq.s32.totalorder %s30, 0
      %p367 = por %p365, %p366
      %p368 = scmp.ne.s32.totalorder %s360, %s362
      %p369 = scmp.eq.s32.totalorder %s35, 7
      %p370 = por %p368, %p369
      %p371 = scmp.ne.s32.totalorder %s362, %s363
      %p372 = scmp.eq.s32.totalorder %s35, 0
      %p373 = por %p371, %p372
      %p374 = scmp.ne.s32.totalorder %s362, %s363
      %p375 = scmp.eq.s32.totalorder %s36, 7
      %p376 = por %p374, %p375
      %p378 = scmp.ne.s32.totalorder %s363, %s377
      %p379 = scmp.eq.s32.totalorder %s36, 0
      %p380 = por %p378, %p379
      %s382 = sadd.s32 %s381, 1
      %p385 = scmp.eq.s32.totalorder %s30, 7
      %p386 = scmp.ne.s32.totalorder %s381, %s383
      %p387 = scmp.eq.s32.totalorder %s30, 0
      %p388 = por %p386, %p387
      %p389 = scmp.ne.s32.totalorder %s381, %s383
      %p390 = scmp.eq.s32.totalorder %s35, 7
      %p391 = por %p389, %p390
      %p392 = scmp.ne.s32.totalorder %s383, %s384
      %p393 = scmp.eq.s32.totalorder %s35, 0
      %p394 = por %p392, %p393
      %p395 = scmp.ne.s32.totalorder %s383, %s384
      %p396 = scmp.eq.s32.totalorder %s36, 7
      %p397 = por %p395, %p396
      %p399 = scmp.ne.s32.totalorder %s384, %s398
      %p400 = scmp.eq.s32.totalorder %s36, 0
      %p401 = por %p399, %p400
      %s403 = sadd.s32 %s402, 1
      %p406 = scmp.eq.s32.totalorder %s30, 7
      %p407 = scmp.ne.s32.totalorder %s402, %s404
      %p408 = scmp.eq.s32.totalorder %s30, 0
      %p409 = por %p407, %p408
      %p410 = scmp.ne.s32.totalorder %s402, %s404
      %p411 = scmp.eq.s32.totalorder %s35, 7
      %p412 = por %p410, %p411
      %p413 = scmp.ne.s32.totalorder %s404, %s405
      %p414 = scmp.eq.s32.totalorder %s35, 0
      %p415 = por %p413, %p414
      %p416 = scmp.ne.s32.totalorder %s404, %s405
      %p417 = scmp.eq.s32.totalorder %s36, 7
      %p418 = por %p416, %p417
      %p420 = scmp.ne.s32.totalorder %s405, %s419
      %p421 = scmp.eq.s32.totalorder %s36, 0
      %p422 = por %p420, %p421
      %s423 = ssub.s32 %s37, %s56
      %s424 = ssub.s32 %s38, %s52
      %s425 = sor.u32 %s423, %s424
      %p426 = scmp.eq.s32.totalorder %s425, 0
      %s428 = sadd.s32 %s427, 1
      %s429 = scalar_select %p426, %s427, %s428
      %p432 = pneg %p426
      %p433 = scmp.eq.s32.totalorder %s30, 7
      %p434 = por %p432, %p433
      %p435 = scmp.ne.s32.totalorder %s427, %s430
      %p436 = scmp.eq.s32.totalorder %s30, 0
      %p437 = por %p435, %p436
      %p438 = scmp.ne.s32.totalorder %s427, %s430
      %p439 = scmp.eq.s32.totalorder %s35, 7
      %p440 = por %p438, %p439
      %p441 = scmp.ne.s32.totalorder %s430, %s431
      %p442 = scmp.eq.s32.totalorder %s35, 0
      %p443 = por %p441, %p442
      %p444 = scmp.ne.s32.totalorder %s430, %s431
      %p445 = scmp.eq.s32.totalorder %s36, 7
      %p446 = por %p444, %p445
      %p448 = scmp.ne.s32.totalorder %s431, %s447
      %p449 = scmp.eq.s32.totalorder %s36, 0
      %p450 = por %p448, %p449
      %s451 = ssub.s32 %s37, %s56
      %s452 = ssub.s32 %s39, %s48
      %s453 = sor.u32 %s451, %s452
      %s454 = ssub.s32 %s38, %s52
      %s455 = sor.u32 %s453, %s454
      %p456 = scmp.eq.s32.totalorder %s455, 0
      %s458 = sadd.s32 %s457, 1
      %s459 = scalar_select %p456, %s457, %s458
      %p462 = pneg %p456
      %p463 = scmp.eq.s32.totalorder %s30, 7
      %p464 = por %p462, %p463
      %p465 = scmp.ne.s32.totalorder %s457, %s460
      %p466 = scmp.eq.s32.totalorder %s30, 0
      %p467 = por %p465, %p466
      %p468 = scmp.ne.s32.totalorder %s457, %s460
      %p469 = scmp.eq.s32.totalorder %s35, 7
      %p470 = por %p468, %p469
      %p471 = scmp.ne.s32.totalorder %s460, %s461
      %p472 = scmp.eq.s32.totalorder %s35, 0
      %p473 = por %p471, %p472
      %p474 = scmp.ne.s32.totalorder %s460, %s461
      %p475 = scmp.eq.s32.totalorder %s36, 7
      %p476 = por %p474, %p475
      %p478 = scmp.ne.s32.totalorder %s461, %s477
      %p479 = scmp.eq.s32.totalorder %s36, 0
      %p480 = por %p478, %p479
      %p481 = scmp.le.s32.totalorder 1, %s30
      %p482 = scmp.lt.s32.totalorder %s30, 9
      %p483 = pnand %p481, %p482
      %p484 = pneg %p483
      // Predicated region
      $region9: #{tpu_custom_call.1} parent=5 // pred_check
        _
      $region10: #{tpu_custom_call.1} parent=5 // pred_check_branch
        %486 = sbr.rel (%p483) target = $region12
      $region11: #{tpu_custom_call.1} parent=5 // pred_region
        %s487 = ssub.s32 %s30, 1
        // Predicated region
        $region13: #{tpu_custom_call.1} parent=11 // pred_check
          %p488 = pneg %p75
        $region14: #{tpu_custom_call.1} parent=11 // pred_check_branch
          %490 = sbr.rel (%p488) target = $region16
        $region15: #{tpu_custom_call.1} parent=11 // pred_region
          %p491 = scmp.lt.s32.totalorder %s41, 0
          %s492 = scalar_select %p491, %s41, 0
          %s493 = smul.addr %s492, 8
          %s494 = scalar_lea.vmem %s0, %s493
        $region16: #{tpu_custom_call.1} parent=11 // pred_fallthru
          _
        // Predicated region
        $region17: #{tpu_custom_call.1} parent=11 // pred_check
          %p495 = pneg %p122
        $region18: #{tpu_custom_call.1} parent=11 // pred_check_branch
          %497 = sbr.rel (%p495) target = $region20
        $region19: #{tpu_custom_call.1} parent=11 // pred_region
          _
        $region20: #{tpu_custom_call.1} parent=11 // pred_fallthru
          _
        // Predicated region
        $region21: #{tpu_custom_call.1} parent=11 // pred_check
          %p498 = pneg %p143
        $region22: #{tpu_custom_call.1} parent=11 // pred_check_branch
          %500 = sbr.rel (%p498) target = $region24
        $region23: #{tpu_custom_call.1} parent=11 // pred_region
          _
        $region24: #{tpu_custom_call.1} parent=11 // pred_fallthru
          _
        // Predicated region
        $region25: #{tpu_custom_call.1} parent=11 // pred_check
          %p501 = pneg %p268
        $region26: #{tpu_custom_call.1} parent=11 // pred_check_branch
          %503 = sbr.rel (%p501) target = $region28
        $region27: #{tpu_custom_call.1} parent=11 // pred_region
          _
        $region28: #{tpu_custom_call.1} parent=11 // pred_fallthru
          _
        // Predicated region
        $region29: #{tpu_custom_call.1} parent=11 // pred_check
          %p504 = pneg %p289
        $region30: #{tpu_custom_call.1} parent=11 // pred_check_branch
          %506 = sbr.rel (%p504) target = $region32
        $region31: #{tpu_custom_call.1} parent=11 // pred_region
          _
        $region32: #{tpu_custom_call.1} parent=11 // pred_fallthru
          _
        // Predicated region
        $region33: #{tpu_custom_call.1} parent=11 // pred_check
          %p507 = pneg %p310
        $region34: #{tpu_custom_call.1} parent=11 // pred_check_branch
          %509 = sbr.rel (%p507) target = $region36
        $region35: #{tpu_custom_call.1} parent=11 // pred_region
          _
        $region36: #{tpu_custom_call.1} parent=11 // pred_fallthru
          _
        // Predicated region
        $region37: #{tpu_custom_call.1} parent=11 // pred_check
          %p510 = pneg %p331
        $region38: #{tpu_custom_call.1} parent=11 // pred_check_branch
          %512 = sbr.rel (%p510) target = $region40
        $region39: #{tpu_custom_call.1} parent=11 // pred_region
          _
        $region40: #{tpu_custom_call.1} parent=11 // pred_fallthru
          _
        // Predicated region
        $region41: #{tpu_custom_call.1} parent=11 // pred_check
          %p513 = pneg %p352
        $region42: #{tpu_custom_call.1} parent=11 // pred_check_branch
          %515 = sbr.rel (%p513) target = $region44
        $region43: #{tpu_custom_call.1} parent=11 // pred_region
          _
        $region44: #{tpu_custom_call.1} parent=11 // pred_fallthru
          _
        // Predicated region
        $region45: #{tpu_custom_call.1} parent=11 // pred_check
          %p516 = pneg %p373
        $region46: #{tpu_custom_call.1} parent=11 // pred_check_branch
          %518 = sbr.rel (%p516) target = $region48
        $region47: #{tpu_custom_call.1} parent=11 // pred_region
          _
        $region48: #{tpu_custom_call.1} parent=11 // pred_fallthru
          _
        // Predicated region
        $region49: #{tpu_custom_call.1} parent=11 // pred_check
          %p519 = pneg %p394
        $region50: #{tpu_custom_call.1} parent=11 // pred_check_branch
          %521 = sbr.rel (%p519) target = $region52
        $region51: #{tpu_custom_call.1} parent=11 // pred_region
          _
        $region52: #{tpu_custom_call.1} parent=11 // pred_fallthru
          _
        // Predicated region
        $region53: #{tpu_custom_call.1} parent=11 // pred_check
          %p522 = pneg %p415
        $region54: #{tpu_custom_call.1} parent=11 // pred_check_branch
          %524 = sbr.rel (%p522) target = $region56
        $region55: #{tpu_custom_call.1} parent=11 // pred_region
          _
        $region56: #{tpu_custom_call.1} parent=11 // pred_fallthru
          _
      $region12: #{tpu_custom_call.1} parent=5 // pred_fallthru
        _
      %p525 = scmp.lt.s32.totalorder %s30, 8
      // Predicated region
      $region57: #{tpu_custom_call.1} parent=5 // pred_check
        %p526 = pneg %p525
      $region58: #{tpu_custom_call.1} parent=5 // pred_check_branch
        %528 = sbr.rel (%p526) target = $region60
      $region59: #{tpu_custom_call.1} parent=5 // pred_region
        // Predicated region
        $region61: #{tpu_custom_call.1} parent=59 // pred_check
          %p529 = pneg %p95
        $region62: #{tpu_custom_call.1} parent=59 // pred_check_branch
          %531 = sbr.rel (%p529) target = $region64
        $region63: #{tpu_custom_call.1} parent=59 // pred_region
          %p532 = scmp.lt.s32.totalorder %s37, 1
          %s533 = scalar_select %p532, %s37, 1
          %s534 = smul.addr %s533, 8
          %s535 = scalar_lea.vmem %s1, %s534
        $region64: #{tpu_custom_call.1} parent=59 // pred_fallthru
          _
        // Predicated region
        $region65: #{tpu_custom_call.1} parent=59 // pred_check
          %p536 = pneg %p163
        $region66: #{tpu_custom_call.1} parent=59 // pred_check_branch
          %538 = sbr.rel (%p536) target = $region68
        $region67: #{tpu_custom_call.1} parent=59 // pred_region
          %p539 = scmp.lt.s32.totalorder %s39, 3
          %s540 = scalar_select %p539, %s39, 3
          %s541 = smul.addr %s540, 4
          %s542 = smul.addr %s541, 8
          %s543 = scalar_lea.vmem %s4, %s542
        $region68: #{tpu_custom_call.1} parent=59 // pred_fallthru
          _
        // Predicated region
        $region69: #{tpu_custom_call.1} parent=59 // pred_check
          %p544 = pneg %p189
        $region70: #{tpu_custom_call.1} parent=59 // pred_check_branch
          %546 = sbr.rel (%p544) target = $region72
        $region71: #{tpu_custom_call.1} parent=59 // pred_region
          %p547 = scmp.lt.s32.totalorder %s39, 3
          %s548 = scalar_select %p547, %s39, 3
          %s549 = scalar_lea.vmem %s5, %s548
        $region72: #{tpu_custom_call.1} parent=59 // pred_fallthru
          _
        // Predicated region
        $region73: #{tpu_custom_call.1} parent=59 // pred_check
          %p550 = pneg %p215
        $region74: #{tpu_custom_call.1} parent=59 // pred_check_branch
          %552 = sbr.rel (%p550) target = $region76
        $region75: #{tpu_custom_call.1} parent=59 // pred_region
          %p553 = scmp.lt.s32.totalorder %s39, 3
          %s554 = scalar_select %p553, %s39, 3
          %s555 = smul.addr %s554, 4
          %s556 = smul.addr %s555, 8
          %s557 = scalar_lea.vmem %s6, %s556
        $region76: #{tpu_custom_call.1} parent=59 // pred_fallthru
          _
        // Predicated region
        $region77: #{tpu_custom_call.1} parent=59 // pred_check
          %p558 = pneg %p241
        $region78: #{tpu_custom_call.1} parent=59 // pred_check_branch
          %560 = sbr.rel (%p558) target = $region80
        $region79: #{tpu_custom_call.1} parent=59 // pred_region
          %p561 = scmp.lt.s32.totalorder %s39, 3
          %s562 = scalar_select %p561, %s39, 3
          %s563 = scalar_lea.vmem %s7, %s562
        $region80: #{tpu_custom_call.1} parent=59 // pred_fallthru
          _
      $region60: #{tpu_custom_call.1} parent=5 // pred_fallthru
        _
      %p564 = scmp.le.s32.totalorder 1, %s30
      %p565 = scmp.lt.s32.totalorder %s30, 9
      %p566 = pnand %p564, %p565
      %p567 = pneg %p566
      // Predicated region
      $region81: #{tpu_custom_call.1} parent=5 // pred_check
        _
      $region82: #{tpu_custom_call.1} parent=5 // pred_check_branch
        %569 = sbr.rel (%p566) target = $region84
      $region83: #{tpu_custom_call.1} parent=5 // pred_region
        %s570 = ssub.s32 %s30, 1
        %p571 = scmp.lt.s32.totalorder %s41, 0
        %s572 = scalar_select %p571, %s41, 0
        %s573 = smul.addr %s572, 8
        %s574 = scalar_lea.vmem %s0, %s573
        %p575 = pneg %p75
        %p576 = pneg %p72
        %p577 = scmp.lt.s32.totalorder %s40, 1
        %s578 = scalar_select %p577, %s40, 1
        %s579 = smul.addr %s578, 8
        %s580 = scalar_lea.vmem %s1, %s579
        %p581 = pneg %p101
        %p582 = pneg %p98
        %p583 = pneg %p122
        %p584 = pneg %p119
        %p585 = pneg %p143
        %p586 = pneg %p140
        %p587 = scmp.lt.s32.totalorder %s42, 3
        %s588 = scalar_select %p587, %s42, 3
        %s589 = smul.addr %s588, 4
        %s590 = smul.addr %s589, 8
        %s591 = scalar_lea.vmem %s4, %s590
        %p592 = pneg %p169
        %p593 = pneg %p166
        %p594 = scmp.lt.s32.totalorder %s42, 3
        %s595 = scalar_select %p594, %s42, 3
        %s596 = scalar_lea.vmem %s5, %s595
        %p597 = pneg %p195
        %p598 = pneg %p192
        %p599 = scmp.lt.s32.totalorder %s42, 3
        %s600 = scalar_select %p599, %s42, 3
        %s601 = smul.addr %s600, 4
        %s602 = smul.addr %s601, 8
        %s603 = scalar_lea.vmem %s6, %s602
        %p604 = pneg %p221
        %p605 = pneg %p218
        %p606 = scmp.lt.s32.totalorder %s42, 3
        %s607 = scalar_select %p606, %s42, 3
        %s608 = scalar_lea.vmem %s7, %s607
        %p609 = pneg %p247
        %p610 = pneg %p244
        %p611 = pneg %p268
        %p612 = pneg %p265
        %p613 = pneg %p289
        %p614 = pneg %p286
        %p615 = pneg %p310
        %p616 = pneg %p307
        %p617 = pneg %p331
        %p618 = pneg %p328
        %p619 = pneg %p352
        %p620 = pneg %p349
        %p621 = pneg %p373
        %p622 = pneg %p370
        %p623 = pneg %p394
        %p624 = pneg %p391
        %p625 = pneg %p415
        %p626 = pneg %p412
        %p627 = pneg %p443
        %p628 = pneg %p440
        %s629 = sand.u32 %s430, 1
        %s630 = scalar_lea.sflag [#allocation5], %s629
        %s631 = sand.u32 %s430, 1
        %s632 = smul.addr %s631, 8
        %s633 = scalar_lea.vmem [#allocation4], %s632
        %p634 = pneg %p473
        %p635 = pneg %p470
        %s636 = sand.u32 %s460, 1
        %s637 = scalar_lea.sflag [#allocation7], %s636
        %s638 = sand.u32 %s460, 1
        %s639 = smul.addr %s638, 8
        %s640 = scalar_lea.vmem [#allocation6], %s639
        %p641 = scmp.lt.s32.totalorder %s41, 0
        %s642 = scalar_select %p641, %s41, 0
        %s643 = smul.addr %s642, 8
        %s644 = scalar_lea.vmem %s0, %s643
        %p645 = scmp.lt.s32.totalorder %s40, 1
        %s646 = scalar_select %p645, %s40, 1
        %s647 = smul.addr %s646, 8
        %s648 = scalar_lea.vmem %s1, %s647
        %p649 = scmp.lt.s32.totalorder %s42, 3
        %s650 = scalar_select %p649, %s42, 3
        %s651 = smul.addr %s650, 4
        %s652 = smul.addr %s651, 8
        %s653 = scalar_lea.vmem %s4, %s652
        %p654 = scmp.lt.s32.totalorder %s42, 3
        %s655 = scalar_select %p654, %s42, 3
        %s656 = scalar_lea.vmem %s5, %s655
        %p657 = scmp.lt.s32.totalorder %s42, 3
        %s658 = scalar_select %p657, %s42, 3
        %s659 = smul.addr %s658, 4
        %s660 = smul.addr %s659, 8
        %s661 = scalar_lea.vmem %s6, %s660
        %p662 = scmp.lt.s32.totalorder %s42, 3
        %s663 = scalar_select %p662, %s42, 3
        %s664 = scalar_lea.vmem %s7, %s663
        %s665 = smul.u32 %s41, 8
        %p666 = scmp.eq.s32.totalorder %s42, 0
        // Predicated region
        $region85: #{tpu_custom_call.1} parent=83 // pred_check
          %p667 = pneg %p666
        $region86: #{tpu_custom_call.1} parent=83 // pred_check_branch
          %669 = sbr.rel (%p667) target = $region88
        $region87: #{tpu_custom_call.1} parent=83 // pred_region
          %v670 = vld [vmem:[%s648] sm:$0xff]
          %v671 = vld [vmem:[%s2] sm:$0x1]
          %v672 = vld [vmem:[%s3] sm:$0x1]
          %vm673 = vcmask 261120
          %v674 = vsel %vm673, %v670, 0.0
          %675 = vadd.xlane.f32.xlu0 %v674
          %v676 = vpop.xlane.xlu0 %675
          %v677 = vrcp.pop 32.0
          %v678 = vmul.f32 %v676, %v677
          %v679 = vsub.f32 %v670, %v678
          %v680 = vmul.f32 %v679, %v679
          %v681 = vsel %vm673, %v680, 0.0
          %682 = vadd.xlane.f32.xlu0 %v681
          %v683 = vpop.xlane.xlu0 %682
          %v684 = vmul.f32 %v683, %v677
          %v685 = vadd.f32 %v684, 1e-05
          %v686 = vrsqrt.pop %v685
          %v687 = vmul.f32 %v679, %v686
          %v689 = vlaneseq
          %v690 = vshrl.u32 %v689, 7
          %v691 = vsub.s32 0, %v690
          %v692 = vrot.slane %v671, %v691
          %v694 = vmul.f32 %v687, %v692
          %v696 = vlaneseq
          %v697 = vshrl.u32 %v696, 7
          %v698 = vsub.s32 0, %v697
          %v699 = vrot.slane %v672, %v698
          %v701 = vadd.f32 %v694, %v699
          %702 = vst.msk [vmem:[#allocation2] sm:$0xff] %vm673, %v701
        $region88: #{tpu_custom_call.1} parent=83 // pred_fallthru
          _
        %v703 = vld [vmem:[#allocation2] sm:$0xff]
        %s704 = scalar_lea.vmem [#allocation2], %s665
        %v705 = vld [vmem:[%s704] sm:$0xff]
        %v706 = vld [vmem:[%s661] sm:$0xff]
        %v707 = vld [vmem:[%s661 + $0x8] sm:$0xff]
        %v708 = vld [vmem:[%s661 + $0x10] sm:$0xff]
        %v709 = vld [vmem:[%s661 + $0x18] sm:$0xff]
        %v710 = vld [vmem:[%s664] sm:$0x1]
        %v712 = vlaneseq
        %v713 = vshrl.u32 %v712, 7
        %v714 = vsub.s32 0, %v713
        %v715 = vrot.slane %v710, %v714
        %vm717 = vcmask 261120
        %v719 = vsel %vm717, %v703, 0
        %721 = vmatprep.subr.mxu0 0.0
        %722 = vmatpush1.msra.mxu0 %v706
        %723 = vmatprep.subr.mxu0 0.0
        %724 = vmatpush1.msra.mxu0 %v707
        %725 = vmatprep.subr.mxu0 0.0
        %726 = vmatpush1.msra.mxu0 %v708
        %727 = vmatprep.subr.mxu0 0.0
        %728 = vmatpush1.msra.mxu0 %v709
        %729 = vmatprep.subr.mxu0 0.0
        %730 = vmatpush1.msra.mxu0 0.0
        %731 = vmatprep.subr.mxu0 0.0
        %732 = vmatpush1.msra.mxu0 0.0
        %733 = vmatprep.subr.mxu0 0.0
        %734 = vmatpush1.msra.mxu0 0.0
        %735 = vmatprep.subr.mxu0 0.0
        %736 = vmatpush1.msra.mxu0 0.0
        %737 = vmatprep.subr.mxu0 0.0
        %738 = vmatpush1.msra.mxu0 0.0
        %739 = vmatprep.subr.mxu0 0.0
        %740 = vmatpush1.msra.mxu0 0.0
        %741 = vmatprep.subr.mxu0 0.0
        %742 = vmatpush1.msra.mxu0 0.0
        %743 = vmatprep.subr.mxu0 0.0
        %744 = vmatpush1.msra.mxu0 0.0
        %745 = vmatprep.subr.mxu0 0.0
        %746 = vmatpush1.msra.mxu0 0.0
        %747 = vmatprep.subr.mxu0 0.0
        %748 = vmatpush1.msra.mxu0 0.0
        %749 = vmatprep.subr.mxu0 0.0
        %750 = vmatpush1.msra.mxu0 0.0
        %751 = vmatprep.subr.mxu0 0.0
        %752 = vmatpush1.msra.mxu0 0.0
        %753 = vmatprep.subr.mxu0 0.0
        %754 = vmatpush1.msra.mxu0 0.0
        %755 = vmatprep.subr.mxu0 0.0
        %756 = vmatpush1.msra.mxu0 0.0
        %757 = vmatprep.subr.mxu0 0.0
        %758 = vmatpush1.msra.mxu0 0.0
        %759 = vmatprep.subr.mxu0 0.0
        %760 = vmatpush1.msra.mxu0 0.0
        %761 = vmatprep.subr.mxu0 0.0
        %762 = vmatpush1.msra.mxu0 0.0
        %763 = vmatprep.subr.mxu0 0.0
        %764 = vmatpush1.msra.mxu0 0.0
        %765 = vmatprep.subr.mxu0 0.0
        %766 = vmatpush1.msra.mxu0 0.0
        %767 = vmatprep.subr.mxu0 0.0
        %768 = vmatpush1.msra.mxu0 0.0
        %769 = vmatprep.subr.mxu0 0.0
        %770 = vmatpush1.msra.mxu0 0.0
        %771 = vmatprep.subr.mxu0 0.0
        %772 = vmatpush1.msra.mxu0 0.0
        %773 = vmatprep.subr.mxu0 0.0
        %774 = vmatpush1.msra.mxu0 0.0
        %775 = vmatprep.subr.mxu0 0.0
        %776 = vmatpush1.msra.mxu0 0.0
        %777 = vmatprep.subr.mxu0 0.0
        %778 = vmatpush1.msra.mxu0 0.0
        %779 = vmatprep.subr.mxu0 0.0
        %780 = vmatpush1.msra.mxu0 0.0
        %781 = vmatprep.subr.mxu0 0.0
        %782 = vmatpush1.msra.mxu0 0.0
        %783 = vmatprep.subr.mxu0 0.0
        %784 = vmatpush1.msra.mxu0 0.0
        %785 = vmatprep.mubr.f32.mxu0 0.0
        %786 = vmatmul.mubr.f32.gmra.mrb[0].mxu0 %v719
        %v787 = vpop.f32.mrb[0].mxu0
        %v788 = vadd.f32 %v715, %v787
        %v789 = vpop.f32.mrb[0].mxu0
        %790 = vdwg.mxu0
        %v791 = vld [vmem:[%s653] sm:$0xff]
        %v792 = vld [vmem:[%s653 + $0x8] sm:$0xff]
        %v793 = vld [vmem:[%s653 + $0x10] sm:$0xff]
        %v794 = vld [vmem:[%s653 + $0x18] sm:$0xff]
        %v795 = vld [vmem:[%s656] sm:$0x1]
        %v797 = vlaneseq
        %v798 = vshrl.u32 %v797, 7
        %v799 = vsub.s32 0, %v798
        %v800 = vrot.slane %v795, %v799
        %v803 = vsel %vm717, %v705, 0
        %805 = vmatprep.subr.mxu0 0.0
        %806 = vmatpush1.msra.mxu0 %v791
        %807 = vmatprep.subr.mxu0 0.0
        %808 = vmatpush1.msra.mxu0 %v792
        %809 = vmatprep.subr.mxu0 0.0
        %810 = vmatpush1.msra.mxu0 %v793
        %811 = vmatprep.subr.mxu0 0.0
        %812 = vmatpush1.msra.mxu0 %v794
        %813 = vmatprep.subr.mxu0 0.0
        %814 = vmatpush1.msra.mxu0 0.0
        %815 = vmatprep.subr.mxu0 0.0
        %816 = vmatpush1.msra.mxu0 0.0
        %817 = vmatprep.subr.mxu0 0.0
        %818 = vmatpush1.msra.mxu0 0.0
        %819 = vmatprep.subr.mxu0 0.0
        %820 = vmatpush1.msra.mxu0 0.0
        %821 = vmatprep.subr.mxu0 0.0
        %822 = vmatpush1.msra.mxu0 0.0
        %823 = vmatprep.subr.mxu0 0.0
        %824 = vmatpush1.msra.mxu0 0.0
        %825 = vmatprep.subr.mxu0 0.0
        %826 = vmatpush1.msra.mxu0 0.0
        %827 = vmatprep.subr.mxu0 0.0
        %828 = vmatpush1.msra.mxu0 0.0
        %829 = vmatprep.subr.mxu0 0.0
        %830 = vmatpush1.msra.mxu0 0.0
        %831 = vmatprep.subr.mxu0 0.0
        %832 = vmatpush1.msra.mxu0 0.0
        %833 = vmatprep.subr.mxu0 0.0
        %834 = vmatpush1.msra.mxu0 0.0
        %835 = vmatprep.subr.mxu0 0.0
        %836 = vmatpush1.msra.mxu0 0.0
        %837 = vmatprep.subr.mxu0 0.0
        %838 = vmatpush1.msra.mxu0 0.0
        %839 = vmatprep.subr.mxu0 0.0
        %840 = vmatpush1.msra.mxu0 0.0
        %841 = vmatprep.subr.mxu0 0.0
        %842 = vmatpush1.msra.mxu0 0.0
        %843 = vmatprep.subr.mxu0 0.0
        %844 = vmatpush1.msra.mxu0 0.0
        %845 = vmatprep.subr.mxu0 0.0
        %846 = vmatpush1.msra.mxu0 0.0
        %847 = vmatprep.subr.mxu0 0.0
        %848 = vmatpush1.msra.mxu0 0.0
        %849 = vmatprep.subr.mxu0 0.0
        %850 = vmatpush1.msra.mxu0 0.0
        %851 = vmatprep.subr.mxu0 0.0
        %852 = vmatpush1.msra.mxu0 0.0
        %853 = vmatprep.subr.mxu0 0.0
        %854 = vmatpush1.msra.mxu0 0.0
        %855 = vmatprep.subr.mxu0 0.0
        %856 = vmatpush1.msra.mxu0 0.0
        %857 = vmatprep.subr.mxu0 0.0
        %858 = vmatpush1.msra.mxu0 0.0
        %859 = vmatprep.subr.mxu0 0.0
        %860 = vmatpush1.msra.mxu0 0.0
        %861 = vmatprep.subr.mxu0 0.0
        %862 = vmatpush1.msra.mxu0 0.0
        %863 = vmatprep.subr.mxu0 0.0
        %864 = vmatpush1.msra.mxu0 0.0
        %865 = vmatprep.subr.mxu0 0.0
        %866 = vmatpush1.msra.mxu0 0.0
        %867 = vmatprep.subr.mxu0 0.0
        %868 = vmatpush1.msra.mxu0 0.0
        %869 = vmatprep.mubr.f32.mxu0 0.0
        %870 = vmatmul.mubr.f32.gmra.mrb[0].mxu0 %v803
        %v871 = vpop.f32.mrb[0].mxu0
        %v872 = vadd.f32 %v800, %v871
        %v873 = vpop.f32.mrb[0].mxu0
        %874 = vdwg.mxu0
        %v875 = vmul.f32 %v872, 0.35355338
        %v876 = vld [vmem:[%s644] sm:$0xff]
        %vm877 = vcmask 64512
        %v879 = vsel %vm877, %v875, 0
        %v882 = vsel %vm877, %v788, 0
        %884 = vmatprep.subr.mxu0 0.0
        %885 = vmatpush1.xpose.msra.mxu0 %v882
        %886 = vmatprep.subr.mxu0 0.0
        %887 = vmatpush1.xpose.msra.mxu0 0.0
        %888 = vmatprep.subr.mxu0 0.0
        %889 = vmatpush1.xpose.msra.mxu0 0.0
        %890 = vmatprep.subr.mxu0 0.0
        %891 = vmatpush1.xpose.msra.mxu0 0.0
        %892 = vmatprep.subr.mxu0 0.0
        %893 = vmatpush1.xpose.msra.mxu0 0.0
        %894 = vmatprep.subr.mxu0 0.0
        %895 = vmatpush1.xpose.msra.mxu0 0.0
        %896 = vmatprep.subr.mxu0 0.0
        %897 = vmatpush1.xpose.msra.mxu0 0.0
        %898 = vmatprep.subr.mxu0 0.0
        %899 = vmatpush1.xpose.msra.mxu0 0.0
        %900 = vmatprep.subr.mxu0 0.0
        %901 = vmatpush1.xpose.msra.mxu0 0.0
        %902 = vmatprep.subr.mxu0 0.0
        %903 = vmatpush1.xpose.msra.mxu0 0.0
        %904 = vmatprep.subr.mxu0 0.0
        %905 = vmatpush1.xpose.msra.mxu0 0.0
        %906 = vmatprep.subr.mxu0 0.0
        %907 = vmatpush1.xpose.msra.mxu0 0.0
        %908 = vmatprep.subr.mxu0 0.0
        %909 = vmatpush1.xpose.msra.mxu0 0.0
        %910 = vmatprep.subr.mxu0 0.0
        %911 = vmatpush1.xpose.msra.mxu0 0.0
        %912 = vmatprep.subr.mxu0 0.0
        %913 = vmatpush1.xpose.msra.mxu0 0.0
        %914 = vmatprep.subr.mxu0 0.0
        %915 = vmatpush1.xpose.msra.mxu0 0.0
        %916 = vmatprep.subr.mxu0 0.0
        %917 = vmatpush1.xpose.msra.mxu0 0.0
        %918 = vmatprep.subr.mxu0 0.0
        %919 = vmatpush1.xpose.msra.mxu0 0.0
        %920 = vmatprep.subr.mxu0 0.0
        %921 = vmatpush1.xpose.msra.mxu0 0.0
        %922 = vmatprep.subr.mxu0 0.0
        %923 = vmatpush1.xpose.msra.mxu0 0.0
        %924 = vmatprep.subr.mxu0 0.0
        %925 = vmatpush1.xpose.msra.mxu0 0.0
        %926 = vmatprep.subr.mxu0 0.0
        %927 = vmatpush1.xpose.msra.mxu0 0.0
        %928 = vmatprep.subr.mxu0 0.0
        %929 = vmatpush1.xpose.msra.mxu0 0.0
        %930 = vmatprep.subr.mxu0 0.0
        %931 = vmatpush1.xpose.msra.mxu0 0.0
        %932 = vmatprep.subr.mxu0 0.0
        %933 = vmatpush1.xpose.msra.mxu0 0.0
        %934 = vmatprep.subr.mxu0 0.0
        %935 = vmatpush1.xpose.msra.mxu0 0.0
        %936 = vmatprep.subr.mxu0 0.0
        %937 = vmatpush1.xpose.msra.mxu0 0.0
        %938 = vmatprep.subr.mxu0 0.0
        %939 = vmatpush1.xpose.msra.mxu0 0.0
        %940 = vmatprep.subr.mxu0 0.0
        %941 = vmatpush1.xpose.msra.mxu0 0.0
        %942 = vmatprep.subr.mxu0 0.0
        %943 = vmatpush1.xpose.msra.mxu0 0.0
        %944 = vmatprep.subr.mxu0 0.0
        %945 = vmatpush1.xpose.msra.mxu0 0.0
        %946 = vmatprep.subr.mxu0 0.0
        %947 = vmatpush1.xpose.msra.mxu0 0.0
        %948 = vmatprep.mubr.f32.mxu0 0.0
        %949 = vmatmul.mubr.f32.gmra.mrb[0].mxu0 %v879
        %v950 = vpop.f32.mrb[0].mxu0
        %v951 = vadd.f32 %v876, %v950
        %v952 = vpop.f32.mrb[0].mxu0
        %953 = vdwg.mxu0
        %v954 = vsel %vm877, %v951, -inf
        %955 = vmax.xlane.f32.xlu0 %v954
        %v956 = vpop.xlane.xlu0 %955
        %v957 = vsub.f32 %v951, %v956
        %v958 = vmul.f32 %v957, 1.442695
        %v959 = vpow.pop %v958
        %v960 = vsel %vm877, %v959, 0.0
        %961 = vadd.xlane.f32.xlu0 %v960
        %v962 = vpop.xlane.xlu0 %961
        %v963 = vrcp.pop %v962
        %v964 = vmul.f32 %v959, %v963
        %965 = vst.msk [vmem:[%s640] sm:$0xff] %vm877, %v964
        %966 = vrot.lane.b32.xlu0 %v788, 120
        %v967 = vpop.permute.xlu0 %966
        %v970 = vsel %vm877, %v964, 0
        %972 = vmatprep.subr.mxu0 0.0
        %973 = vmatpush1.msra.mxu0 %v967
        %974 = vmatprep.subr.mxu0 0.0
        %975 = vmatpush1.msra.mxu0 0.0
        %976 = vmatprep.subr.mxu0 0.0
        %977 = vmatpush1.msra.mxu0 0.0
        %978 = vmatprep.subr.mxu0 0.0
        %979 = vmatpush1.msra.mxu0 0.0
        %980 = vmatprep.subr.mxu0 0.0
        %981 = vmatpush1.msra.mxu0 0.0
        %982 = vmatprep.subr.mxu0 0.0
        %983 = vmatpush1.msra.mxu0 0.0
        %984 = vmatprep.subr.mxu0 0.0
        %985 = vmatpush1.msra.mxu0 0.0
        %986 = vmatprep.subr.mxu0 0.0
        %987 = vmatpush1.msra.mxu0 0.0
        %988 = vmatprep.subr.mxu0 0.0
        %989 = vmatpush1.msra.mxu0 0.0
        %990 = vmatprep.subr.mxu0 0.0
        %991 = vmatpush1.msra.mxu0 0.0
        %992 = vmatprep.subr.mxu0 0.0
        %993 = vmatpush1.msra.mxu0 0.0
        %994 = vmatprep.subr.mxu0 0.0
        %995 = vmatpush1.msra.mxu0 0.0
        %996 = vmatprep.subr.mxu0 0.0
        %997 = vmatpush1.msra.mxu0 0.0
        %998 = vmatprep.subr.mxu0 0.0
        %999 = vmatpush1.msra.mxu0 0.0
        %1000 = vmatprep.subr.mxu0 0.0
        %1001 = vmatpush1.msra.mxu0 0.0
        %1002 = vmatprep.subr.mxu0 0.0
        %1003 = vmatpush1.msra.mxu0 0.0
        %1004 = vmatprep.subr.mxu0 0.0
        %1005 = vmatpush1.msra.mxu0 0.0
        %1006 = vmatprep.subr.mxu0 0.0
        %1007 = vmatpush1.msra.mxu0 0.0
        %1008 = vmatprep.subr.mxu0 0.0
        %1009 = vmatpush1.msra.mxu0 0.0
        %1010 = vmatprep.subr.mxu0 0.0
        %1011 = vmatpush1.msra.mxu0 0.0
        %1012 = vmatprep.subr.mxu0 0.0
        %1013 = vmatpush1.msra.mxu0 0.0
        %1014 = vmatprep.subr.mxu0 0.0
        %1015 = vmatpush1.msra.mxu0 0.0
        %1016 = vmatprep.subr.mxu0 0.0
        %1017 = vmatpush1.msra.mxu0 0.0
        %1018 = vmatprep.subr.mxu0 0.0
        %1019 = vmatpush1.msra.mxu0 0.0
        %1020 = vmatprep.subr.mxu0 0.0
        %1021 = vmatpush1.msra.mxu0 0.0
        %1022 = vmatprep.subr.mxu0 0.0
        %1023 = vmatpush1.msra.mxu0 0.0
        %1024 = vmatprep.subr.mxu0 0.0
        %1025 = vmatpush1.msra.mxu0 0.0
        %1026 = vmatprep.subr.mxu0 0.0
        %1027 = vmatpush1.msra.mxu0 0.0
        %1028 = vmatprep.subr.mxu0 0.0
        %1029 = vmatpush1.msra.mxu0 0.0
        %1030 = vmatprep.subr.mxu0 0.0
        %1031 = vmatpush1.msra.mxu0 0.0
        %1032 = vmatprep.subr.mxu0 0.0
        %1033 = vmatpush1.msra.mxu0 0.0
        %1034 = vmatprep.subr.mxu0 0.0
        %1035 = vmatpush1.msra.mxu0 0.0
        %1036 = vmatprep.mubr.f32.mxu0 0.0
        %1037 = vmatmul.mubr.f32.gmra.mrb[0].mxu0 %v970
        %v1038 = vpop.f32.mrb[0].mxu0
        %v1039 = vadd.f32 0.0, %v1038
        %v1040 = vpop.f32.mrb[0].mxu0
        %1041 = vdwg.mxu0
        %s1042 = smul.u32 %s42, 8
        %s1043 = scalar_lea.vmem [#allocation3], %s1042
        %1044 = vst.msk [vmem:[%s1043] sm:$0xff] %vm877, %v1039
        %p1045 = scmp.eq.s32.totalorder %s42, 3
        // Predicated region
        $region89: #{tpu_custom_call.1} parent=83 // pred_check
          %p1046 = pneg %p1045
        $region90: #{tpu_custom_call.1} parent=83 // pred_check_branch
          %1048 = sbr.rel (%p1046) target = $region92
        $region91: #{tpu_custom_call.1} parent=83 // pred_region
          %v1049 = vld [vmem:[#allocation3] sm:$0xff]
          %s1050 = scalar_lea.vmem [#allocation3], 8
          %v1051 = vld [vmem:[%s1050] sm:$0xff]
          %s1052 = scalar_lea.vmem [#allocation3], 16
          %v1053 = vld [vmem:[%s1052] sm:$0xff]
          %s1054 = scalar_lea.vmem [#allocation3], 24
          %v1055 = vld [vmem:[%s1054] sm:$0xff]
          %1057 = vrot.lane.b32.xlu0 %v1051, 8
          %v1058 = vpop.permute.xlu0 %1057
          %1061 = vrot.lane.b32.xlu0 %v1053, 16
          %v1062 = vpop.permute.xlu0 %1061
          %1065 = vrot.lane.b32.xlu0 %v1055, 24
          %v1066 = vpop.permute.xlu0 %1065
          %v1068 = vsel %vm877, %v1049, %v1058
          %vm1069 = vcmask 130048
          %v1070 = vsel %vm1069, %v1068, %v1062
          %vm1071 = vcmask 195584
          %v1072 = vsel %vm1071, %v1070, %v1066
          %v1073 = vld [vmem:[%s8] sm:$0xff]
          %v1074 = vld [vmem:[%s8 + $0x8] sm:$0xff]
          %v1075 = vld [vmem:[%s8 + $0x10] sm:$0xff]
          %v1076 = vld [vmem:[%s8 + $0x18] sm:$0xff]
          %v1077 = vld [vmem:[%s9] sm:$0x1]
          %v1079 = vlaneseq
          %v1080 = vshrl.u32 %v1079, 7
          %v1081 = vsub.s32 0, %v1080
          %v1082 = vrot.slane %v1077, %v1081
          %v1085 = vsel %vm717, %v1072, 0
          %1087 = vmatprep.subr.mxu0 0.0
          %1088 = vmatpush1.msra.mxu0 %v1073
          %1089 = vmatprep.subr.mxu0 0.0
          %1090 = vmatpush1.msra.mxu0 %v1074
          %1091 = vmatprep.subr.mxu0 0.0
          %1092 = vmatpush1.msra.mxu0 %v1075
          %1093 = vmatprep.subr.mxu0 0.0
          %1094 = vmatpush1.msra.mxu0 %v1076
          %1095 = vmatprep.subr.mxu0 0.0
          %1096 = vmatpush1.msra.mxu0 0.0
          %1097 = vmatprep.subr.mxu0 0.0
          %1098 = vmatpush1.msra.mxu0 0.0
          %1099 = vmatprep.subr.mxu0 0.0
          %1100 = vmatpush1.msra.mxu0 0.0
          %1101 = vmatprep.subr.mxu0 0.0
          %1102 = vmatpush1.msra.mxu0 0.0
          %1103 = vmatprep.subr.mxu0 0.0
          %1104 = vmatpush1.msra.mxu0 0.0
          %1105 = vmatprep.subr.mxu0 0.0
          %1106 = vmatpush1.msra.mxu0 0.0
          %1107 = vmatprep.subr.mxu0 0.0
          %1108 = vmatpush1.msra.mxu0 0.0
          %1109 = vmatprep.subr.mxu0 0.0
          %1110 = vmatpush1.msra.mxu0 0.0
          %1111 = vmatprep.subr.mxu0 0.0
          %1112 = vmatpush1.msra.mxu0 0.0
          %1113 = vmatprep.subr.mxu0 0.0
          %1114 = vmatpush1.msra.mxu0 0.0
          %1115 = vmatprep.subr.mxu0 0.0
          %1116 = vmatpush1.msra.mxu0 0.0
          %1117 = vmatprep.subr.mxu0 0.0
          %1118 = vmatpush1.msra.mxu0 0.0
          %1119 = vmatprep.subr.mxu0 0.0
          %1120 = vmatpush1.msra.mxu0 0.0
          %1121 = vmatprep.subr.mxu0 0.0
          %1122 = vmatpush1.msra.mxu0 0.0
          %1123 = vmatprep.subr.mxu0 0.0
          %1124 = vmatpush1.msra.mxu0 0.0
          %1125 = vmatprep.subr.mxu0 0.0
          %1126 = vmatpush1.msra.mxu0 0.0
          %1127 = vmatprep.subr.mxu0 0.0
          %1128 = vmatpush1.msra.mxu0 0.0
          %1129 = vmatprep.subr.mxu0 0.0
          %1130 = vmatpush1.msra.mxu0 0.0
          %1131 = vmatprep.subr.mxu0 0.0
          %1132 = vmatpush1.msra.mxu0 0.0
          %1133 = vmatprep.subr.mxu0 0.0
          %1134 = vmatpush1.msra.mxu0 0.0
          %1135 = vmatprep.subr.mxu0 0.0
          %1136 = vmatpush1.msra.mxu0 0.0
          %1137 = vmatprep.subr.mxu0 0.0
          %1138 = vmatpush1.msra.mxu0 0.0
          %1139 = vmatprep.subr.mxu0 0.0
          %1140 = vmatpush1.msra.mxu0 0.0
          %1141 = vmatprep.subr.mxu0 0.0
          %1142 = vmatpush1.msra.mxu0 0.0
          %1143 = vmatprep.subr.mxu0 0.0
          %1144 = vmatpush1.msra.mxu0 0.0
          %1145 = vmatprep.subr.mxu0 0.0
          %1146 = vmatpush1.msra.mxu0 0.0
          %1147 = vmatprep.subr.mxu0 0.0
          %1148 = vmatpush1.msra.mxu0 0.0
          %1149 = vmatprep.subr.mxu0 0.0
          %1150 = vmatpush1.msra.mxu0 0.0
          %1151 = vmatprep.mubr.f32.mxu0 0.0
          %1152 = vmatmul.mubr.f32.gmra.mrb[0].mxu0 %v1085
          %v1153 = vpop.f32.mrb[0].mxu0
          %v1154 = vadd.f32 %v1082, %v1153
          %v1155 = vpop.f32.mrb[0].mxu0
          %1156 = vdwg.mxu0
          %s1157 = scalar_lea.vmem %s648, %s665
          %v1158 = vld [vmem:[%s1157] sm:$0xff]
          %v1159 = vadd.f32 %v1158, %v1154
          %v1160 = vld [vmem:[%s10] sm:$0x1]
          %v1161 = vld [vmem:[%s11] sm:$0x1]
          %v1162 = vsel %vm717, %v1159, 0.0
          %1163 = vadd.xlane.f32.xlu0 %v1162
          %v1164 = vpop.xlane.xlu0 %1163
          %v1165 = vrcp.pop 32.0
          %v1166 = vmul.f32 %v1164, %v1165
          %v1167 = vsub.f32 %v1159, %v1166
          %v1168 = vmul.f32 %v1167, %v1167
          %v1169 = vsel %vm717, %v1168, 0.0
          %1170 = vadd.xlane.f32.xlu0 %v1169
          %v1171 = vpop.xlane.xlu0 %1170
          %v1172 = vmul.f32 %v1171, %v1165
          %v1173 = vadd.f32 %v1172, 1e-05
          %v1174 = vrsqrt.pop %v1173
          %v1175 = vmul.f32 %v1167, %v1174
          %v1177 = vlaneseq
          %v1178 = vshrl.u32 %v1177, 7
          %v1179 = vsub.s32 0, %v1178
          %v1180 = vrot.slane %v1160, %v1179
          %v1182 = vmul.f32 %v1175, %v1180
          %v1184 = vlaneseq
          %v1185 = vshrl.u32 %v1184, 7
          %v1186 = vsub.s32 0, %v1185
          %v1187 = vrot.slane %v1161, %v1186
          %v1189 = vadd.f32 %v1182, %v1187
          %v1190 = vld [vmem:[%s12] sm:$0xff]
          %v1191 = vld [vmem:[%s12 + $0x8] sm:$0xff]
          %v1192 = vld [vmem:[%s12 + $0x10] sm:$0xff]
          %v1193 = vld [vmem:[%s12 + $0x18] sm:$0xff]
          %v1194 = vld [vmem:[%s13] sm:$0x1]
          %v1196 = vlaneseq
          %v1197 = vshrl.u32 %v1196, 7
          %v1198 = vsub.s32 0, %v1197
          %v1199 = vrot.slane %v1194, %v1198
          %v1202 = vsel %vm717, %v1189, 0
          %1204 = vmatprep.subr.mxu0 0.0
          %1205 = vmatpush1.msra.mxu0 %v1190
          %1206 = vmatprep.subr.mxu0 0.0
          %1207 = vmatpush1.msra.mxu0 %v1191
          %1208 = vmatprep.subr.mxu0 0.0
          %1209 = vmatpush1.msra.mxu0 %v1192
          %1210 = vmatprep.subr.mxu0 0.0
          %1211 = vmatpush1.msra.mxu0 %v1193
          %1212 = vmatprep.subr.mxu0 0.0
          %1213 = vmatpush1.msra.mxu0 0.0
          %1214 = vmatprep.subr.mxu0 0.0
          %1215 = vmatpush1.msra.mxu0 0.0
          %1216 = vmatprep.subr.mxu0 0.0
          %1217 = vmatpush1.msra.mxu0 0.0
          %1218 = vmatprep.subr.mxu0 0.0
          %1219 = vmatpush1.msra.mxu0 0.0
          %1220 = vmatprep.subr.mxu0 0.0
          %1221 = vmatpush1.msra.mxu0 0.0
          %1222 = vmatprep.subr.mxu0 0.0
          %1223 = vmatpush1.msra.mxu0 0.0
          %1224 = vmatprep.subr.mxu0 0.0
          %1225 = vmatpush1.msra.mxu0 0.0
          %1226 = vmatprep.subr.mxu0 0.0
          %1227 = vmatpush1.msra.mxu0 0.0
          %1228 = vmatprep.subr.mxu0 0.0
          %1229 = vmatpush1.msra.mxu0 0.0
          %1230 = vmatprep.subr.mxu0 0.0
          %1231 = vmatpush1.msra.mxu0 0.0
          %1232 = vmatprep.subr.mxu0 0.0
          %1233 = vmatpush1.msra.mxu0 0.0
          %1234 = vmatprep.subr.mxu0 0.0
          %1235 = vmatpush1.msra.mxu0 0.0
          %1236 = vmatprep.subr.mxu0 0.0
          %1237 = vmatpush1.msra.mxu0 0.0
          %1238 = vmatprep.subr.mxu0 0.0
          %1239 = vmatpush1.msra.mxu0 0.0
          %1240 = vmatprep.subr.mxu0 0.0
          %1241 = vmatpush1.msra.mxu0 0.0
          %1242 = vmatprep.subr.mxu0 0.0
          %1243 = vmatpush1.msra.mxu0 0.0
          %1244 = vmatprep.subr.mxu0 0.0
          %1245 = vmatpush1.msra.mxu0 0.0
          %1246 = vmatprep.subr.mxu0 0.0
          %1247 = vmatpush1.msra.mxu0 0.0
          %1248 = vmatprep.subr.mxu0 0.0
          %1249 = vmatpush1.msra.mxu0 0.0
          %1250 = vmatprep.subr.mxu0 0.0
          %1251 = vmatpush1.msra.mxu0 0.0
          %1252 = vmatprep.subr.mxu0 0.0
          %1253 = vmatpush1.msra.mxu0 0.0
          %1254 = vmatprep.subr.mxu0 0.0
          %1255 = vmatpush1.msra.mxu0 0.0
          %1256 = vmatprep.subr.mxu0 0.0
          %1257 = vmatpush1.msra.mxu0 0.0
          %1258 = vmatprep.subr.mxu0 0.0
          %1259 = vmatpush1.msra.mxu0 0.0
          %1260 = vmatprep.subr.mxu0 0.0
          %1261 = vmatpush1.msra.mxu0 0.0
          %1262 = vmatprep.subr.mxu0 0.0
          %1263 = vmatpush1.msra.mxu0 0.0
          %1264 = vmatprep.subr.mxu0 0.0
          %1265 = vmatpush1.msra.mxu0 0.0
          %1266 = vmatprep.subr.mxu0 0.0
          %1267 = vmatpush1.msra.mxu0 0.0
          %1268 = vmatprep.mubr.f32.mxu0 0.0
          %1269 = vmatmul.mubr.f32.gmra.mrb[0].mxu0 %v1202
          %v1270 = vpop.f32.mrb[0].mxu0
          %v1271 = vadd.f32 %v1199, %v1270
          %v1272 = vpop.f32.mrb[0].mxu0
          %1273 = vdwg.mxu0
          %v1274 = vmul.f32 %v1271, %v1271
          %v1275 = vmul.f32 %v1274, %v1271
          %v1276 = vmul.f32 %v1271, 0.5
          %v1277 = vmul.f32 %v1275, 0.044715
          %v1278 = vadd.f32 %v1271, %v1277
          %v1279 = vmul.f32 %v1278, 0.7978846
          %v1280 = vtanh.pop %v1279
          %v1281 = vadd.f32 %v1280, 1.0
          %v1282 = vmul.f32 %v1276, %v1281
          %v1283 = vld [vmem:[%s14] sm:$0xff]
          %v1284 = vld [vmem:[%s14 + $0x8] sm:$0xff]
          %v1285 = vld [vmem:[%s14 + $0x10] sm:$0xff]
          %v1286 = vld [vmem:[%s14 + $0x18] sm:$0xff]
          %v1287 = vld [vmem:[%s14 + $0x20] sm:$0xff]
          %v1288 = vld [vmem:[%s14 + $0x28] sm:$0xff]
          %v1289 = vld [vmem:[%s14 + $0x30] sm:$0xff]
          %v1290 = vld [vmem:[%s14 + $0x38] sm:$0xff]
          %v1291 = vld [vmem:[%s15] sm:$0x1]
          %v1293 = vlaneseq
          %v1294 = vshrl.u32 %v1293, 7
          %v1295 = vsub.s32 0, %v1294
          %v1296 = vrot.slane %v1291, %v1295
          %vm1298 = vcmask 523264
          %v1300 = vsel %vm1298, %v1282, 0
          %1302 = vmatprep.subr.mxu0 0.0
          %1303 = vmatpush1.msra.mxu0 %v1283
          %1304 = vmatprep.subr.mxu0 0.0
          %1305 = vmatpush1.msra.mxu0 %v1284
          %1306 = vmatprep.subr.mxu0 0.0
          %1307 = vmatpush1.msra.mxu0 %v1285
          %1308 = vmatprep.subr.mxu0 0.0
          %1309 = vmatpush1.msra.mxu0 %v1286
          %1310 = vmatprep.subr.mxu0 0.0
          %1311 = vmatpush1.msra.mxu0 %v1287
          %1312 = vmatprep.subr.mxu0 0.0
          %1313 = vmatpush1.msra.mxu0 %v1288
          %1314 = vmatprep.subr.mxu0 0.0
          %1315 = vmatpush1.msra.mxu0 %v1289
          %1316 = vmatprep.subr.mxu0 0.0
          %1317 = vmatpush1.msra.mxu0 %v1290
          %1318 = vmatprep.subr.mxu0 0.0
          %1319 = vmatpush1.msra.mxu0 0.0
          %1320 = vmatprep.subr.mxu0 0.0
          %1321 = vmatpush1.msra.mxu0 0.0
          %1322 = vmatprep.subr.mxu0 0.0
          %1323 = vmatpush1.msra.mxu0 0.0
          %1324 = vmatprep.subr.mxu0 0.0
          %1325 = vmatpush1.msra.mxu0 0.0
          %1326 = vmatprep.subr.mxu0 0.0
          %1327 = vmatpush1.msra.mxu0 0.0
          %1328 = vmatprep.subr.mxu0 0.0
          %1329 = vmatpush1.msra.mxu0 0.0
          %1330 = vmatprep.subr.mxu0 0.0
          %1331 = vmatpush1.msra.mxu0 0.0
          %1332 = vmatprep.subr.mxu0 0.0
          %1333 = vmatpush1.msra.mxu0 0.0
          %1334 = vmatprep.subr.mxu0 0.0
          %1335 = vmatpush1.msra.mxu0 0.0
          %1336 = vmatprep.subr.mxu0 0.0
          %1337 = vmatpush1.msra.mxu0 0.0
          %1338 = vmatprep.subr.mxu0 0.0
          %1339 = vmatpush1.msra.mxu0 0.0
          %1340 = vmatprep.subr.mxu0 0.0
          %1341 = vmatpush1.msra.mxu0 0.0
          %1342 = vmatprep.subr.mxu0 0.0
          %1343 = vmatpush1.msra.mxu0 0.0
          %1344 = vmatprep.subr.mxu0 0.0
          %1345 = vmatpush1.msra.mxu0 0.0
          %1346 = vmatprep.subr.mxu0 0.0
          %1347 = vmatpush1.msra.mxu0 0.0
          %1348 = vmatprep.subr.mxu0 0.0
          %1349 = vmatpush1.msra.mxu0 0.0
          %1350 = vmatprep.subr.mxu0 0.0
          %1351 = vmatpush1.msra.mxu0 0.0
          %1352 = vmatprep.subr.mxu0 0.0
          %1353 = vmatpush1.msra.mxu0 0.0
          %1354 = vmatprep.subr.mxu0 0.0
          %1355 = vmatpush1.msra.mxu0 0.0
          %1356 = vmatprep.subr.mxu0 0.0
          %1357 = vmatpush1.msra.mxu0 0.0
          %1358 = vmatprep.subr.mxu0 0.0
          %1359 = vmatpush1.msra.mxu0 0.0
          %1360 = vmatprep.subr.mxu0 0.0
          %1361 = vmatpush1.msra.mxu0 0.0
          %1362 = vmatprep.subr.mxu0 0.0
          %1363 = vmatpush1.msra.mxu0 0.0
          %1364 = vmatprep.subr.mxu0 0.0
          %1365 = vmatpush1.msra.mxu0 0.0
          %1366 = vmatprep.mubr.f32.mxu0 0.0
          %1367 = vmatmul.mubr.f32.gmra.mrb[0].mxu0 %v1300
          %v1368 = vpop.f32.mrb[0].mxu0
          %v1369 = vadd.f32 %v1296, %v1368
          %v1370 = vpop.f32.mrb[0].mxu0
          %1371 = vdwg.mxu0
          %v1372 = vadd.f32 %v1159, %v1369
          %1373 = vst.msk [vmem:[%s633] sm:$0xff] %vm717, %v1372
        $region92: #{tpu_custom_call.1} parent=83 // pred_fallthru
          _
        %s1374 = sand.u32 %s430, 1
        %s1375 = scalar_lea.sflag [#allocation5], %s1374
        %s1376 = sand.u32 %s430, 1
        %s1377 = smul.addr %s1376, 8
        %s1378 = scalar_lea.vmem [#allocation4], %s1377
        %s1379 = sand.u32 %s460, 1
        %s1380 = scalar_lea.sflag [#allocation7], %s1379
        %s1381 = sand.u32 %s460, 1
        %s1382 = smul.addr %s1381, 8
        %s1383 = scalar_lea.vmem [#allocation6], %s1382
        // Predicated region
        $region93: #{tpu_custom_call.1} parent=83 // pred_check
          %p1384 = pneg %p440
        $region94: #{tpu_custom_call.1} parent=83 // pred_check_branch
          %1386 = sbr.rel (%p1384) target = $region96
        $region95: #{tpu_custom_call.1} parent=83 // pred_region
          %s1388 = ssub.s32 128, 128
          %1389 = vsyncadd %s1375, %s1388
          %s1390 = sadd.s32 %s41, %s40
          %s1391 = smul.addr %s1390, 128
          %s1392 = scalar_lea.hbm %s16, %s1391
          %s1394 = sshll.u32 %s1378, 4
          %s1395 = int_to_ptr.vmem [resolvable:$true] %s1394
          %1397 = dma.vmem_to_hbm [thread:$0]  %s1395, 128, %s1392, %s1375
        $region96: #{tpu_custom_call.1} parent=83 // pred_fallthru
          _
        // Predicated region
        $region97: #{tpu_custom_call.1} parent=83 // pred_check
          %p1398 = pneg %p470
        $region98: #{tpu_custom_call.1} parent=83 // pred_check_branch
          %1400 = sbr.rel (%p1398) target = $region100
        $region99: #{tpu_custom_call.1} parent=83 // pred_region
          %s1402 = ssub.s32 128, 128
          %1403 = vsyncadd %s1380, %s1402
          %s1404 = sadd.s32 %s41, %s42
          %s1405 = smul.addr %s40, 4
          %s1406 = sadd.s32 %s1404, %s1405
          %s1407 = smul.addr %s1406, 128
          %s1408 = scalar_lea.hbm %s17, %s1407
          %s1410 = sshll.u32 %s1383, 4
          %s1411 = int_to_ptr.vmem [resolvable:$true] %s1410
          %1413 = dma.vmem_to_hbm [thread:$0]  %s1411, 128, %s1408, %s1380
        $region100: #{tpu_custom_call.1} parent=83 // pred_fallthru
          _
      $region84: #{tpu_custom_call.1} parent=5 // pred_fallthru
        _
      %p1414 = scmp.le.s32.totalorder 2, %s30
      // Predicated region
      $region101: #{tpu_custom_call.1} parent=5 // pred_check
        %p1415 = pneg %p1414
      $region102: #{tpu_custom_call.1} parent=5 // pred_check_branch
        %1417 = sbr.rel (%p1415) target = $region104
      $region103: #{tpu_custom_call.1} parent=5 // pred_region
        %s1418 = ssub.s32 %s30, 2
        // Predicated region
        $region105: #{tpu_custom_call.1} parent=103 // pred_check
          %p1419 = pneg %p446
        $region106: #{tpu_custom_call.1} parent=103 // pred_check_branch
          %1421 = sbr.rel (%p1419) target = $region108
        $region107: #{tpu_custom_call.1} parent=103 // pred_region
          %s1422 = sand.u32 %s431, 1
          %s1423 = scalar_lea.sflag [#allocation5], %s1422
          %s1424 = sand.u32 %s431, 1
          %s1425 = smul.addr %s1424, 8
          %s1426 = scalar_lea.vmem [#allocation4], %s1425
          %1427 = dma.done %s1423, 128
        $region108: #{tpu_custom_call.1} parent=103 // pred_fallthru
          _
        // Predicated region
        $region109: #{tpu_custom_call.1} parent=103 // pred_check
          %p1428 = pneg %p476
        $region110: #{tpu_custom_call.1} parent=103 // pred_check_branch
          %1430 = sbr.rel (%p1428) target = $region112
        $region111: #{tpu_custom_call.1} parent=103 // pred_region
          %s1431 = sand.u32 %s461, 1
          %s1432 = scalar_lea.sflag [#allocation7], %s1431
          %s1433 = sand.u32 %s461, 1
          %s1434 = smul.addr %s1433, 8
          %s1435 = scalar_lea.vmem [#allocation6], %s1434
          %1436 = dma.done %s1432, 128
        $region112: #{tpu_custom_call.1} parent=103 // pred_fallthru
          _
      $region104: #{tpu_custom_call.1} parent=5 // pred_fallthru
        _
    $region6: #{tpu_custom_call.1} parent=1 // loop_footer
      %s34 = sadd.s32 1, %s30
    $region7: #{tpu_custom_call.1} parent=1 // loop_footer_branch
      %29 = sbr.rel target = $region3
    $region8: #{tpu_custom_call.1} parent=1 // loop_exit
      _
    %1437 = vsyncpa [#allocation5], 1
    %s1438 = scalar_lea.sflag [#allocation5], 1
    %1439 = vsyncpa %s1438, 1
    %1440 = vsyncpa [#allocation7], 1
    %s1441 = scalar_lea.sflag [#allocation7], 1
    %1442 = vsyncpa %s1441, 1

</llo_original>
